<compile_context>
chip_gen: v7x
topology: tpu7x:2x2x1
jax: 0.10.0
libtpu: 0.0.40
codegen_flags: <defaults>
</compile_context>

<pallas_src>
import jax
import jax.numpy as jnp
from jax import lax
from jax.experimental import pallas as pl
from jax.experimental.pallas import tpu as pltpu

EPS = 1e-3
FEATURES = 32          # module default features=32
RES = 32               # resX = resY = resZ (module default 256; small demo size)
HW = RES * RES
LOG2_RES = RES.bit_length() - 1
CENTER = 0.0
SCALE = 2.0
OFFSET = 0.07217
TILE_N = 512           # points processed per grid step
K_CHUNK = 256          # flattened plane columns (k = h*RES + w) per inner-loop step
OUT_W = 3 * FEATURES
OUT_PAD = 128          # lane-dense padded output width

assert RES & (RES - 1) == 0, "RES must be a power of two for the shift/mask index math"
assert HW % K_CHUNK == 0 and K_CHUNK % 8 == 0


def triplane_kernel(coords_ref, pxy_ref, pxz_ref, pyz_ref, out_ref):
    c = coords_ref[...]                                   # (TILE_N, 3)
    xn = (c - CENTER) / SCALE + 0.5 + OFFSET              # normalized to ~[0, 1]
    ix = xn * (RES - 1.0)                                 # unnormalized sample index
    ix_x = ix[:, 0:1]
    ix_y = ix[:, 1:2]
    ix_z = ix[:, 2:3]

    out_ref[...] = jnp.zeros_like(out_ref)

    def hat(idx_row, q_col):
        # Bilinear weight for align_corners=True + padding_mode='zeros' is a
        # tent function of the distance to the pixel center: max(0, 1 - |d|).
        return jnp.maximum(0.0, 1.0 - jnp.abs(q_col - idx_row))

    def body(j, carry):
        base = pl.multiple_of(j * K_CHUNK, K_CHUNK)
        # Flat plane index k = h*RES + w for this chunk of contraction columns.
        kk = lax.broadcasted_iota(jnp.int32, (1, K_CHUNK), 1) + base
        h_idx = (kk >> LOG2_RES).astype(jnp.float32)      # k // RES
        w_idx = (kk & (RES - 1)).astype(jnp.float32)      # k %  RES

        a_wx = hat(w_idx, ix_x)   # width  weights driven by x (planes xy & xz)
        a_hz = hat(h_idx, ix_z)   # height weights driven by z (planes xz & yz)
        # Single-use factors fused directly into the products; products cast to
        # bf16 so the MXU runs at native rate (accumulation stays f32).
        w_xy = (hat(h_idx, ix_y) * a_wx).astype(jnp.bfloat16)
        w_xz = (a_hz * a_wx).astype(jnp.bfloat16)
        w_yz = (a_hz * hat(w_idx, ix_y)).astype(jnp.bfloat16)

        sl = pl.ds(base, K_CHUNK)
        # Slabs carry their feature block at disjoint lanes, so the three dots
        # accumulate into the same lane-dense (TILE_N, 128) tile.
        part = jnp.dot(w_xy, pxy_ref[sl, :], preferred_element_type=jnp.float32)
        part = part + jnp.dot(w_xz, pxz_ref[sl, :], preferred_element_type=jnp.float32)
        part = part + jnp.dot(w_yz, pyz_ref[sl, :], preferred_element_type=jnp.float32)
        out_ref[...] += part
        return carry

    lax.fori_loop(0, HW // K_CHUNK, body, 0)


def _flatten_plane(plane, col_offset, total_cols):
    # (1, C, H, W) -> (H*W, total_cols) features-last bf16 slab with the C
    # feature columns placed at [col_offset, col_offset + C); other columns zero.
    c = plane.shape[1]
    s = plane[0].transpose(1, 2, 0).reshape(-1, c)
    s = jnp.pad(s, ((0, 0), (col_offset, total_cols - col_offset - c)))
    return s.astype(jnp.bfloat16)


@jax.jit
def triplane_forward(x, plane_xy, plane_xz, plane_yz):
    shape = x.shape
    assert shape[-1] == 3
    c = plane_xy.shape[1]
    out_w = 3 * c
    out_pad = ((out_w + 127) // 128) * 128               # lane-dense output width

    # TODO(synk): the module's host-side range assertion (x in [0,1] after
    # normalization) is dropped -- float(jnp.max/min) forces a blocking device
    # sync and breaks jit; use jax.experimental.checkify if the check is needed.

    coords = x.reshape(-1, 3).astype(jnp.float32)
    n = coords.shape[0]
    n_pad = ((n + TILE_N - 1) // TILE_N) * TILE_N
    if n_pad != n:
        coords = jnp.pad(coords, ((0, n_pad - n), (0, 0)))

    pxy = _flatten_plane(plane_xy, 0 * c, out_pad)
    pxz = _flatten_plane(plane_xz, 1 * c, out_pad)
    pyz = _flatten_plane(plane_yz, 2 * c, out_pad)

    hw = pxy.shape[0]
    cost = pl.CostEstimate(
        flops=2 * 3 * n_pad * hw * out_pad,
        transcendentals=0,
        bytes_accessed=coords.size * 4 + 3 * hw * out_pad * 2 + n_pad * out_pad * 4,
    )

    out = pl.pallas_call(
        triplane_kernel,
        out_shape=jax.ShapeDtypeStruct((n_pad, out_pad), jnp.float32),
        grid_spec=pltpu.PrefetchScalarGridSpec(
            num_scalar_prefetch=0,
            grid=(n_pad // TILE_N,),
            in_specs=[
                pl.BlockSpec((TILE_N, 3), lambda i: (i, 0)),
                # Grid-invariant slabs: constant index_map, so they are fetched
                # once and stay VMEM-resident across all grid steps.
                pl.BlockSpec((hw, out_pad), lambda i: (0, 0)),
                pl.BlockSpec((hw, out_pad), lambda i: (0, 0)),
                pl.BlockSpec((hw, out_pad), lambda i: (0, 0)),
            ],
            out_specs=pl.BlockSpec((TILE_N, out_pad), lambda i: (i, 0)),
        ),
        compiler_params=pltpu.CompilerParams(
            dimension_semantics=("parallel",),
            vmem_limit_bytes=24 * 1024 * 1024),
        cost_estimate=cost,
    )(coords, pxy, pxz, pyz)

    return out[:n, :out_w].reshape(*shape[:-1], out_w)


def triplane_reference(x, plane_xy, plane_xz, plane_yz):
    """Pure-JAX f32 reference (gather-based bilinear, zero padding, align_corners)."""
    shape = x.shape
    c = plane_xy.shape[1]
    xn = (x - CENTER) / SCALE + 0.5 + OFFSET
    g = (xn * 2.0 - 1.0).reshape(-1, 3)

    def sample(plane, gw, gh):          # plane: (C, H, W)
        _, H, W = plane.shape
        ix = (gw + 1.0) * 0.5 * (W - 1)
        iy = (gh + 1.0) * 0.5 * (H - 1)
        ix0f = jnp.floor(ix)
        iy0f = jnp.floor(iy)
        tx = ix - ix0f
        ty = iy - iy0f
        ix0 = ix0f.astype(jnp.int32)
        iy0 = iy0f.astype(jnp.int32)
        ix1 = ix0 + 1
        iy1 = iy0 + 1

        def get(h, w):
            valid = (h >= 0) & (h <= H - 1) & (w >= 0) & (w <= W - 1)
            hc = jnp.clip(h, 0, H - 1)
            wc = jnp.clip(w, 0, W - 1)
            v = plane[:, hc, wc]        # (C, N)
            return jnp.where(valid[None, :], v, 0.0)

        v = (get(iy0, ix0) * ((1.0 - tx) * (1.0 - ty))[None]
             + get(iy0, ix1) * (tx * (1.0 - ty))[None]
             + get(iy1, ix0) * ((1.0 - tx) * ty)[None]
             + get(iy1, ix1) * (tx * ty)[None])
        return v.T                      # (N, C)

    f_xy = sample(plane_xy[0], g[:, 0], g[:, 1])
    f_xz = sample(plane_xz[0], g[:, 0], g[:, 2])
    f_yz = sample(plane_yz[0], g[:, 1], g[:, 2])
    feat = jnp.concatenate([f_xy, f_xz, f_yz], axis=1)
    return feat.reshape(*shape[:-1], 3 * c)


if __name__ == "__main__":
    key = jax.random.PRNGKey(0)
    k1, k2, k3, k4 = jax.random.split(key, 4)

    # Deterministic "parameters" (module __init__ uses torch.randn at these shapes).
    plane_xy = jax.random.normal(k1, (1, FEATURES, RES, RES), jnp.float32)
    plane_xz = jax.random.normal(k2, (1, FEATURES, RES, RES), jnp.float32)
    plane_yz = jax.random.normal(k3, (1, FEATURES, RES, RES), jnp.float32)

    # 4096 points -> an 8-step grid (>= 2 steps so the v7x megacore can shard
    # the "parallel" axis); values chosen so the module's range assert would hold.
    x = jax.random.uniform(k4, (2, 2048, 3), jnp.float32, minval=-1.1, maxval=0.85)

    out = triplane_forward(x, plane_xy, plane_xz, plane_yz)
    out = jax.block_until_ready(out)

    ref = triplane_reference(x, plane_xy, plane_xz, plane_yz)
    assert out.shape == (2, 2048, 3 * FEATURES), out.shape
    max_err = float(jnp.max(jnp.abs(out - ref)))
    # bf16 MXU operands: expect ~1e-2 max abs error vs the f32 reference.
    assert max_err < 5e-2, f"max abs error vs reference: {max_err}"

    print("KERNEL_OK")
</pallas_src>

<mosaic_0001>
module attributes {stable_mosaic.version = 11 : i64} {
  func.func @triplane_kernel(%arg0: i32, %arg1: memref<512x3xf32, #tpu.memory_space<vmem>>, %arg2: memref<1024x128xbf16, #tpu.memory_space<vmem>>, %arg3: memref<1024x128xbf16, #tpu.memory_space<vmem>>, %arg4: memref<1024x128xbf16, #tpu.memory_space<vmem>>, %arg5: memref<512x128xf32, #tpu.memory_space<vmem>>) attributes {dimension_semantics = [#tpu.dimension_semantics<parallel>], iteration_bounds = array<i64: 8>, scalar_prefetch = 0 : i64, scratch_operands = 0 : i64, tpu.core_type = #tpu.core_type<tc>, window_params = [{transform_indices = @transform_0, window_bounds = array<i64: 512, 3>}, {pipeline_mode = #tpu.pipeline_mode<synchronous>, transform_indices = @transform_1, window_bounds = array<i64: 1024, 128>}, {pipeline_mode = #tpu.pipeline_mode<synchronous>, transform_indices = @transform_2, window_bounds = array<i64: 1024, 128>}, {pipeline_mode = #tpu.pipeline_mode<synchronous>, transform_indices = @transform_3, window_bounds = array<i64: 1024, 128>}, {transform_indices = @transform_4, window_bounds = array<i64: 512, 128>}]} {
    %c0 = arith.constant 0 : index
    %c0_0 = arith.constant 0 : index
    %0 = vector.load %arg1[%c0, %c0_0] : memref<512x3xf32, #tpu.memory_space<vmem>>, vector<512x3xf32>
    %cst = arith.constant 0.000000e+00 : f32
    %1 = vector.broadcast %cst : f32 to vector<512x3xf32>
    %2 = arith.subf %0, %1 : vector<512x3xf32>
    %cst_1 = arith.constant 2.000000e+00 : f32
    %3 = vector.broadcast %cst_1 : f32 to vector<512x3xf32>
    %4 = arith.divf %2, %3 : vector<512x3xf32>
    %cst_2 = arith.constant 5.000000e-01 : f32
    %5 = vector.broadcast %cst_2 : f32 to vector<512x3xf32>
    %6 = arith.addf %4, %5 : vector<512x3xf32>
    %cst_3 = arith.constant 7.217000e-02 : f32
    %7 = vector.broadcast %cst_3 : f32 to vector<512x3xf32>
    %8 = arith.addf %6, %7 : vector<512x3xf32>
    %cst_4 = arith.constant 3.100000e+01 : f32
    %9 = vector.broadcast %cst_4 : f32 to vector<512x3xf32>
    %10 = arith.mulf %8, %9 : vector<512x3xf32>
    %11 = vector.extract_strided_slice %10 {offsets = [0, 0], sizes = [512, 1], strides = [1, 1]} : vector<512x3xf32> to vector<512x1xf32>
    %12 = vector.extract_strided_slice %10 {offsets = [0, 1], sizes = [512, 1], strides = [1, 1]} : vector<512x3xf32> to vector<512x1xf32>
    %13 = vector.extract_strided_slice %10 {offsets = [0, 2], sizes = [512, 1], strides = [1, 1]} : vector<512x3xf32> to vector<512x1xf32>
    %cst_5 = arith.constant 0.000000e+00 : f32
    %14 = vector.broadcast %cst_5 : f32 to vector<512x128xf32>
    %c0_6 = arith.constant 0 : index
    %c0_7 = arith.constant 0 : index
    %15 = vector.load %arg5[%c0_6, %c0_7] : memref<512x128xf32, #tpu.memory_space<vmem>>, vector<512x128xf32>
    tpu.vector_store %arg5[%c0_6, %c0_7], %14 {strides = array<i32>} : memref<512x128xf32, #tpu.memory_space<vmem>>, vector<512x128xf32>,
    %c0_i32 = arith.constant 0 : i32
    %c4_i32 = arith.constant 4 : i32
    %16 = arith.addi %c0_i32, %c4_i32 : i32
    %c1_i32 = arith.constant 1 : i32
    scf.for %arg6 = %c0_i32 to %16 step %c1_i32  : i32 {
      %c256_i32 = arith.constant 256 : i32
      %17 = arith.muli %arg6, %c256_i32 : i32
      %18 = tpu.assume_multiple %17, 256 : i32
      %19 = tpu.iota {dimensions = array<i32: 1>} : vector<1x256xi32>
      %20 = vector.broadcast %18 : i32 to vector<1x256xi32>
      %21 = arith.addi %19, %20 : vector<1x256xi32>
      %c5_i32 = arith.constant 5 : i32
      %22 = vector.broadcast %c5_i32 : i32 to vector<1x256xi32>
      %23 = arith.shrsi %21, %22 : vector<1x256xi32>
      %24 = arith.sitofp %23 : vector<1x256xi32> to vector<1x256xf32>
      %c31_i32 = arith.constant 31 : i32
      %25 = vector.broadcast %c31_i32 : i32 to vector<1x256xi32>
      %26 = arith.andi %21, %25 : vector<1x256xi32>
      %27 = arith.sitofp %26 : vector<1x256xi32> to vector<1x256xf32>
      %28 = vector.broadcast %11 : vector<512x1xf32> to vector<512x256xf32>
      %29 = vector.broadcast %27 : vector<1x256xf32> to vector<512x256xf32>
      %30 = arith.subf %28, %29 : vector<512x256xf32>
      %31 = math.absf %30 : vector<512x256xf32>
      %cst_9 = arith.constant 1.000000e+00 : f32
      %32 = vector.broadcast %cst_9 : f32 to vector<512x256xf32>
      %33 = arith.subf %32, %31 : vector<512x256xf32>
      %cst_10 = arith.constant 0.000000e+00 : f32
      %34 = vector.broadcast %cst_10 : f32 to vector<512x256xf32>
      %35 = arith.maximumf %34, %33 : vector<512x256xf32>
      %36 = vector.broadcast %13 : vector<512x1xf32> to vector<512x256xf32>
      %37 = vector.broadcast %24 : vector<1x256xf32> to vector<512x256xf32>
      %38 = arith.subf %36, %37 : vector<512x256xf32>
      %39 = math.absf %38 : vector<512x256xf32>
      %cst_11 = arith.constant 1.000000e+00 : f32
      %40 = vector.broadcast %cst_11 : f32 to vector<512x256xf32>
      %41 = arith.subf %40, %39 : vector<512x256xf32>
      %cst_12 = arith.constant 0.000000e+00 : f32
      %42 = vector.broadcast %cst_12 : f32 to vector<512x256xf32>
      %43 = arith.maximumf %42, %41 : vector<512x256xf32>
      %44 = vector.broadcast %12 : vector<512x1xf32> to vector<512x256xf32>
      %45 = vector.broadcast %24 : vector<1x256xf32> to vector<512x256xf32>
      %46 = arith.subf %44, %45 : vector<512x256xf32>
      %47 = math.absf %46 : vector<512x256xf32>
      %cst_13 = arith.constant 1.000000e+00 : f32
      %48 = vector.broadcast %cst_13 : f32 to vector<512x256xf32>
      %49 = arith.subf %48, %47 : vector<512x256xf32>
      %cst_14 = arith.constant 0.000000e+00 : f32
      %50 = vector.broadcast %cst_14 : f32 to vector<512x256xf32>
      %51 = arith.maximumf %50, %49 : vector<512x256xf32>
      %52 = arith.mulf %51, %35 : vector<512x256xf32>
      %53 = arith.truncf %52 : vector<512x256xf32> to vector<512x256xbf16>
      %54 = arith.mulf %43, %35 : vector<512x256xf32>
      %55 = arith.truncf %54 : vector<512x256xf32> to vector<512x256xbf16>
      %56 = vector.broadcast %12 : vector<512x1xf32> to vector<512x256xf32>
      %57 = vector.broadcast %27 : vector<1x256xf32> to vector<512x256xf32>
      %58 = arith.subf %56, %57 : vector<512x256xf32>
      %59 = math.absf %58 : vector<512x256xf32>
      %cst_15 = arith.constant 1.000000e+00 : f32
      %60 = vector.broadcast %cst_15 : f32 to vector<512x256xf32>
      %61 = arith.subf %60, %59 : vector<512x256xf32>
      %cst_16 = arith.constant 0.000000e+00 : f32
      %62 = vector.broadcast %cst_16 : f32 to vector<512x256xf32>
      %63 = arith.maximumf %62, %61 : vector<512x256xf32>
      %64 = arith.mulf %43, %63 : vector<512x256xf32>
      %65 = arith.truncf %64 : vector<512x256xf32> to vector<512x256xbf16>
      %66 = arith.index_cast %18 : i32 to index
      %c0_17 = arith.constant 0 : index
      %67 = vector.load %arg2[%66, %c0_17] : memref<1024x128xbf16, #tpu.memory_space<vmem>>, vector<256x128xbf16>
      %cst_18 = arith.constant dense<0.000000e+00> : vector<512x128xf32>
      %68 = tpu.matmul %53, %67, %cst_18 {dimension_numbers = #tpu.dot_dimension_numbers<[1], [0], [0], [1], [0, 0, 1, 1], [], []>} : vector<512x256xbf16>, vector<256x128xbf16>, vector<512x128xf32> -> vector<512x128xf32>
      %69 = arith.index_cast %18 : i32 to index
      %c0_19 = arith.constant 0 : index
      %70 = vector.load %arg3[%69, %c0_19] : memref<1024x128xbf16, #tpu.memory_space<vmem>>, vector<256x128xbf16>
      %cst_20 = arith.constant dense<0.000000e+00> : vector<512x128xf32>
      %71 = tpu.matmul %55, %70, %cst_20 {dimension_numbers = #tpu.dot_dimension_numbers<[1], [0], [0], [1], [0, 0, 1, 1], [], []>} : vector<512x256xbf16>, vector<256x128xbf16>, vector<512x128xf32> -> vector<512x128xf32>
      %72 = arith.addf %68, %71 : vector<512x128xf32>
      %73 = arith.index_cast %18 : i32 to index
      %c0_21 = arith.constant 0 : index
      %74 = vector.load %arg4[%73, %c0_21] : memref<1024x128xbf16, #tpu.memory_space<vmem>>, vector<256x128xbf16>
      %cst_22 = arith.constant dense<0.000000e+00> : vector<512x128xf32>
      %75 = tpu.matmul %65, %74, %cst_22 {dimension_numbers = #tpu.dot_dimension_numbers<[1], [0], [0], [1], [0, 0, 1, 1], [], []>} : vector<512x256xbf16>, vector<256x128xbf16>, vector<512x128xf32> -> vector<512x128xf32>
      %76 = arith.addf %72, %75 : vector<512x128xf32>
      %c0_23 = arith.constant 0 : index
      %c0_24 = arith.constant 0 : index
      %77 = vector.load %arg5[%c0_23, %c0_24] : memref<512x128xf32, #tpu.memory_space<vmem>>, vector<512x128xf32>
      %78 = arith.addf %77, %76 : vector<512x128xf32>
      %c0_25 = arith.constant 0 : index
      %c0_26 = arith.constant 0 : index
      %79 = vector.load %arg5[%c0_25, %c0_26] : memref<512x128xf32, #tpu.memory_space<vmem>>, vector<512x128xf32>
      tpu.vector_store %arg5[%c0_25, %c0_26], %78 {strides = array<i32>} : memref<512x128xf32, #tpu.memory_space<vmem>>, vector<512x128xf32>,
    }
    %c4_i32_8 = arith.constant 4 : i32
    return
  }
  func.func @transform_0(%arg0: i32) -> (i32, i32) {
    %c0_i32 = arith.constant 0 : i32
    %c0_i32_0 = arith.constant 0 : i32
    return %arg0, %c0_i32 : i32, i32
  }
  func.func @transform_1(%arg0: i32) -> (i32, i32) {
    %c0_i32 = arith.constant 0 : i32
    %c0_i32_0 = arith.constant 0 : i32
    %c0_i32_1 = arith.constant 0 : i32
    return %c0_i32, %c0_i32_0 : i32, i32
  }
  func.func @transform_2(%arg0: i32) -> (i32, i32) {
    %c0_i32 = arith.constant 0 : i32
    %c0_i32_0 = arith.constant 0 : i32
    %c0_i32_1 = arith.constant 0 : i32
    return %c0_i32, %c0_i32_0 : i32, i32
  }
  func.func @transform_3(%arg0: i32) -> (i32, i32) {
    %c0_i32 = arith.constant 0 : i32
    %c0_i32_0 = arith.constant 0 : i32
    %c0_i32_1 = arith.constant 0 : i32
    return %c0_i32, %c0_i32_0 : i32, i32
  }
  func.func @transform_4(%arg0: i32) -> (i32, i32) {
    %c0_i32 = arith.constant 0 : i32
    %c0_i32_0 = arith.constant 0 : i32
    return %arg0, %c0_i32 : i32, i32
  }
}

</mosaic_0001>

<llo_original>
// kernel: triplane_forward.1
$region0: #{triplane_forward.1}
  #allocation0 [shape = 'u32[]', space=smem, size = 0x4, offset = 0x4, fixed_abs, tag = 'smem constant byte address 0x4 - core index']
  #allocation1 [shape = 'u32[144,128]{1,0:T(1,128)}', space=vmem, size = 0x12000, scoped, tag = 'internal scratch']
  %s0 = inlined_call_operand.vmem [shape: f32[4096,3], index: 0, kind: input, shape index: {}]
  %s1 = inlined_call_operand.vmem [shape: bf16[1024,128], index: 1, kind: input, shape index: {}]
  %s2 = inlined_call_operand.vmem [shape: bf16[1024,128], index: 2, kind: input, shape index: {}]
  %s3 = inlined_call_operand.vmem [shape: bf16[1024,128], index: 3, kind: input, shape index: {}]
  %s4 = inlined_call_operand.vmem [shape: f32[4096,128], index: 4, kind: output, shape index: {}]
  %s5 = sld [smem:[#allocation0]]
  $region56: #{triplane_forward.1} parent=0
    _
  %s7 = ssub.s32 1, %s5
  %s8 = scalar_select 0, %s7, %s5
  loop: start=0, step=1, limit=10
  $region2: #{triplane_forward.1} parent=0 // loop_pre_header
    _
  $region3: #{triplane_forward.1} parent=0 // loop_header
    %s10 = sphi 0, %s14
    %p11 = scmp.ge.s32.totalorder %s10, 10
    %s20 = sphi 0, %s22
    %s23 = sphi 0, %s20
    %s24 = sphi 0, %s23
    %s40 = sphi 0, %s24
    %s44 = sphi 0, %s44
    %s46 = sphi 0, %s44
    %s47 = sphi 0, %s46
    %s61 = sphi 0, %s47
    %s65 = sphi 0, %s65
    %s67 = sphi 0, %s65
    %s68 = sphi 0, %s67
    %s82 = sphi 0, %s68
    %s86 = sphi 0, %s86
    %s88 = sphi 0, %s86
    %s89 = sphi 0, %s88
    %s103 = sphi 0, %s89
    %s109 = sphi 0, %s111
    %s112 = sphi 0, %s109
    %s113 = sphi 0, %s112
    %s129 = sphi 0, %s113
  $region4: #{triplane_forward.1} parent=0 // loop_header_branch
    %13 = sbr.rel (%p11) target = $region8
  $region5: #{triplane_forward.1} parent=0 // loop_body
    %s15 = ssub.s32 %s10, 1
    %s16 = ssub.s32 %s10, 2
    %s17 = sadd.s32 %s10, 1
    %s18 = ssub.s32 %s10, %s17
    %p19 = scmp.eq.s32.totalorder %s18, 0
    %s21 = sadd.s32 %s20, 1
    %s22 = scalar_select %p19, %s20, %s21
    %p25 = pneg %p19
    %p26 = scmp.eq.s32.totalorder %s10, 7
    %p27 = por %p25, %p26
    %p28 = scmp.ne.s32.totalorder %s20, %s23
    %p29 = scmp.eq.s32.totalorder %s10, 0
    %p30 = por %p28, %p29
    %p31 = scmp.ne.s32.totalorder %s20, %s23
    %p32 = scmp.eq.s32.totalorder %s15, 7
    %p33 = por %p31, %p32
    %p34 = scmp.ne.s32.totalorder %s23, %s24
    %p35 = scmp.eq.s32.totalorder %s15, 0
    %p36 = por %p34, %p35
    %p37 = scmp.ne.s32.totalorder %s23, %s24
    %p38 = scmp.eq.s32.totalorder %s16, 7
    %p39 = por %p37, %p38
    %p41 = scmp.ne.s32.totalorder %s24, %s40
    %p42 = scmp.eq.s32.totalorder %s16, 0
    %p43 = por %p41, %p42
    %s45 = sadd.s32 %s44, 1
    %p48 = scmp.eq.s32.totalorder %s10, 7
    %p49 = scmp.ne.s32.totalorder %s44, %s46
    %p50 = scmp.eq.s32.totalorder %s10, 0
    %p51 = por %p49, %p50
    %p52 = scmp.ne.s32.totalorder %s44, %s46
    %p53 = scmp.eq.s32.totalorder %s15, 7
    %p54 = por %p52, %p53
    %p55 = scmp.ne.s32.totalorder %s46, %s47
    %p56 = scmp.eq.s32.totalorder %s15, 0
    %p57 = por %p55, %p56
    %p58 = scmp.ne.s32.totalorder %s46, %s47
    %p59 = scmp.eq.s32.totalorder %s16, 7
    %p60 = por %p58, %p59
    %p62 = scmp.ne.s32.totalorder %s47, %s61
    %p63 = scmp.eq.s32.totalorder %s16, 0
    %p64 = por %p62, %p63
    %s66 = sadd.s32 %s65, 1
    %p69 = scmp.eq.s32.totalorder %s10, 7
    %p70 = scmp.ne.s32.totalorder %s65, %s67
    %p71 = scmp.eq.s32.totalorder %s10, 0
    %p72 = por %p70, %p71
    %p73 = scmp.ne.s32.totalorder %s65, %s67
    %p74 = scmp.eq.s32.totalorder %s15, 7
    %p75 = por %p73, %p74
    %p76 = scmp.ne.s32.totalorder %s67, %s68
    %p77 = scmp.eq.s32.totalorder %s15, 0
    %p78 = por %p76, %p77
    %p79 = scmp.ne.s32.totalorder %s67, %s68
    %p80 = scmp.eq.s32.totalorder %s16, 7
    %p81 = por %p79, %p80
    %p83 = scmp.ne.s32.totalorder %s68, %s82
    %p84 = scmp.eq.s32.totalorder %s16, 0
    %p85 = por %p83, %p84
    %s87 = sadd.s32 %s86, 1
    %p90 = scmp.eq.s32.totalorder %s10, 7
    %p91 = scmp.ne.s32.totalorder %s86, %s88
    %p92 = scmp.eq.s32.totalorder %s10, 0
    %p93 = por %p91, %p92
    %p94 = scmp.ne.s32.totalorder %s86, %s88
    %p95 = scmp.eq.s32.totalorder %s15, 7
    %p96 = por %p94, %p95
    %p97 = scmp.ne.s32.totalorder %s88, %s89
    %p98 = scmp.eq.s32.totalorder %s15, 0
    %p99 = por %p97, %p98
    %p100 = scmp.ne.s32.totalorder %s88, %s89
    %p101 = scmp.eq.s32.totalorder %s16, 7
    %p102 = por %p100, %p101
    %p104 = scmp.ne.s32.totalorder %s89, %s103
    %p105 = scmp.eq.s32.totalorder %s16, 0
    %p106 = por %p104, %p105
    %s107 = ssub.s32 %s10, %s17
    %p108 = scmp.eq.s32.totalorder %s107, 0
    %s110 = sadd.s32 %s109, 1
    %s111 = scalar_select %p108, %s109, %s110
    %p114 = pneg %p108
    %p115 = scmp.eq.s32.totalorder %s10, 7
    %p116 = por %p114, %p115
    %p117 = scmp.ne.s32.totalorder %s109, %s112
    %p118 = scmp.eq.s32.totalorder %s10, 0
    %p119 = por %p117, %p118
    %p120 = scmp.ne.s32.totalorder %s109, %s112
    %p121 = scmp.eq.s32.totalorder %s15, 7
    %p122 = por %p120, %p121
    %p123 = scmp.ne.s32.totalorder %s112, %s113
    %p124 = scmp.eq.s32.totalorder %s15, 0
    %p125 = por %p123, %p124
    %p126 = scmp.ne.s32.totalorder %s112, %s113
    %p127 = scmp.eq.s32.totalorder %s16, 7
    %p128 = por %p126, %p127
    %p130 = scmp.ne.s32.totalorder %s113, %s129
    %p131 = scmp.eq.s32.totalorder %s16, 0
    %p132 = por %p130, %p131
    %p133 = scmp.le.s32.totalorder 1, %s10
    %p134 = scmp.lt.s32.totalorder %s10, 9
    %p135 = pnand %p133, %p134
    %p136 = pneg %p135
    // Predicated region
    $region9: #{triplane_forward.1} parent=5 // pred_check
      _
    $region10: #{triplane_forward.1} parent=5 // pred_check_branch
      %138 = sbr.rel (%p135) target = $region12
    $region11: #{triplane_forward.1} parent=5 // pred_region
      %s139 = ssub.s32 %s10, 1
      // Predicated region
      $region13: #{triplane_forward.1} parent=11 // pred_check
        %p140 = pneg %p57
      $region14: #{triplane_forward.1} parent=11 // pred_check_branch
        %142 = sbr.rel (%p140) target = $region16
      $region15: #{triplane_forward.1} parent=11 // pred_region
        _
      $region16: #{triplane_forward.1} parent=11 // pred_fallthru
        _
      // Predicated region
      $region17: #{triplane_forward.1} parent=11 // pred_check
        %p143 = pneg %p78
      $region18: #{triplane_forward.1} parent=11 // pred_check_branch
        %145 = sbr.rel (%p143) target = $region20
      $region19: #{triplane_forward.1} parent=11 // pred_region
        _
      $region20: #{triplane_forward.1} parent=11 // pred_fallthru
        _
      // Predicated region
      $region21: #{triplane_forward.1} parent=11 // pred_check
        %p146 = pneg %p99
      $region22: #{triplane_forward.1} parent=11 // pred_check_branch
        %148 = sbr.rel (%p146) target = $region24
      $region23: #{triplane_forward.1} parent=11 // pred_region
        _
      $region24: #{triplane_forward.1} parent=11 // pred_fallthru
        _
    $region12: #{triplane_forward.1} parent=5 // pred_fallthru
      _
    %p149 = scmp.lt.s32.totalorder %s10, 8
    // Predicated region
    $region25: #{triplane_forward.1} parent=5 // pred_check
      %p150 = pneg %p149
    $region26: #{triplane_forward.1} parent=5 // pred_check_branch
      %152 = sbr.rel (%p150) target = $region28
    $region27: #{triplane_forward.1} parent=5 // pred_region
      // Predicated region
      $region29: #{triplane_forward.1} parent=27 // pred_check
        %p153 = pneg %p30
      $region30: #{triplane_forward.1} parent=27 // pred_check_branch
        %155 = sbr.rel (%p153) target = $region32
      $region31: #{triplane_forward.1} parent=27 // pred_region
        %s156 = smul.u32 64, %s10
        %p157 = scmp.lt.s32.totalorder %s156, 511
        %s158 = scalar_select %p157, %s156, 511
        %s159 = smul.addr %s158, 8
        %s160 = scalar_lea.vmem %s0, %s159
        %s161 = smul.u32 64, %s10
      $region32: #{triplane_forward.1} parent=27 // pred_fallthru
        _
    $region28: #{triplane_forward.1} parent=5 // pred_fallthru
      _
    %p162 = scmp.le.s32.totalorder 1, %s10
    %p163 = scmp.lt.s32.totalorder %s10, 9
    %p164 = pnand %p162, %p163
    %p165 = pneg %p164
    // Predicated region
    $region33: #{triplane_forward.1} parent=5 // pred_check
      _
    $region34: #{triplane_forward.1} parent=5 // pred_check_branch
      %167 = sbr.rel (%p164) target = $region36
    $region35: #{triplane_forward.1} parent=5 // pred_region
      %s168 = ssub.s32 %s10, 1
      %s169 = smul.u32 64, %s15
      %p170 = scmp.lt.s32.totalorder %s169, 511
      %s171 = scalar_select %p170, %s169, 511
      %s172 = smul.addr %s171, 8
      %s173 = scalar_lea.vmem %s0, %s172
      %p174 = pneg %p36
      %p175 = pneg %p33
      %p176 = pneg %p57
      %p177 = pneg %p54
      %p178 = pneg %p78
      %p179 = pneg %p75
      %p180 = pneg %p99
      %p181 = pneg %p96
      %p182 = pneg %p125
      %p183 = pneg %p122
      %s184 = smul.u32 64, %s15
      %p185 = scmp.lt.s32.totalorder %s184, 511
      %s186 = scalar_select %p185, %s184, 511
      %s187 = smul.addr %s186, 8
      %s188 = scalar_lea.vmem %s4, %s187
      %s189 = smul.u32 64, %s15
      %p190 = scmp.lt.s32.totalorder %s189, 511
      %s191 = scalar_select %p190, %s189, 511
      %s192 = smul.addr %s191, 8
      %s193 = scalar_lea.vmem %s0, %s192
      %s194 = smul.u32 64, %s15
      %s195 = smul.u32 64, %s15
      %p196 = scmp.lt.s32.totalorder %s195, 511
      %s197 = scalar_select %p196, %s195, 511
      %s198 = smul.addr %s197, 8
      %s199 = scalar_lea.vmem %s4, %s198
      %s200 = smul.u32 64, %s15
      %v202 = vld [vmem:[%s193] sm:$0xff]
      %v203 = vld [vmem:[%s193 + $0x8] sm:$0xff]
      %v204 = vld [vmem:[%s193 + $0x10] sm:$0xff]
      %v205 = vld [vmem:[%s193 + $0x18] sm:$0xff]
      %v206 = vld [vmem:[%s193 + $0x20] sm:$0xff]
      %v207 = vld [vmem:[%s193 + $0x28] sm:$0xff]
      %v208 = vld [vmem:[%s193 + $0x30] sm:$0xff]
      %v209 = vld [vmem:[%s193 + $0x38] sm:$0xff]
      %v210 = vld [vmem:[%s193 + $0x40] sm:$0xff]
      %v211 = vld [vmem:[%s193 + $0x48] sm:$0xff]
      %v212 = vld [vmem:[%s193 + $0x50] sm:$0xff]
      %v213 = vld [vmem:[%s193 + $0x58] sm:$0xff]
      %v214 = vld [vmem:[%s193 + $0x60] sm:$0xff]
      %v215 = vld [vmem:[%s193 + $0x68] sm:$0xff]
      %v216 = vld [vmem:[%s193 + $0x70] sm:$0xff]
      %v217 = vld [vmem:[%s193 + $0x78] sm:$0xff]
      %v218 = vld [vmem:[%s193 + $0x80] sm:$0xff]
      %v219 = vld [vmem:[%s193 + $0x88] sm:$0xff]
      %v220 = vld [vmem:[%s193 + $0x90] sm:$0xff]
      %v221 = vld [vmem:[%s193 + $0x98] sm:$0xff]
      %v222 = vld [vmem:[%s193 + $0xa0] sm:$0xff]
      %v223 = vld [vmem:[%s193 + $0xa8] sm:$0xff]
      %v224 = vld [vmem:[%s193 + $0xb0] sm:$0xff]
      %v225 = vld [vmem:[%s193 + $0xb8] sm:$0xff]
      %v226 = vld [vmem:[%s193 + $0xc0] sm:$0xff]
      %v227 = vld [vmem:[%s193 + $0xc8] sm:$0xff]
      %v228 = vld [vmem:[%s193 + $0xd0] sm:$0xff]
      %v229 = vld [vmem:[%s193 + $0xd8] sm:$0xff]
      %v230 = vld [vmem:[%s193 + $0xe0] sm:$0xff]
      %v231 = vld [vmem:[%s193 + $0xe8] sm:$0xff]
      %v232 = vld [vmem:[%s193 + $0xf0] sm:$0xff]
      %v233 = vld [vmem:[%s193 + $0xf8] sm:$0xff]
      %v234 = vld [vmem:[%s193 + $0x100] sm:$0xff]
      %v235 = vld [vmem:[%s193 + $0x108] sm:$0xff]
      %v236 = vld [vmem:[%s193 + $0x110] sm:$0xff]
      %v237 = vld [vmem:[%s193 + $0x118] sm:$0xff]
      %v238 = vld [vmem:[%s193 + $0x120] sm:$0xff]
      %v239 = vld [vmem:[%s193 + $0x128] sm:$0xff]
      %v240 = vld [vmem:[%s193 + $0x130] sm:$0xff]
      %v241 = vld [vmem:[%s193 + $0x138] sm:$0xff]
      %v242 = vld [vmem:[%s193 + $0x140] sm:$0xff]
      %v243 = vld [vmem:[%s193 + $0x148] sm:$0xff]
      %v244 = vld [vmem:[%s193 + $0x150] sm:$0xff]
      %v245 = vld [vmem:[%s193 + $0x158] sm:$0xff]
      %v246 = vld [vmem:[%s193 + $0x160] sm:$0xff]
      %v247 = vld [vmem:[%s193 + $0x168] sm:$0xff]
      %v248 = vld [vmem:[%s193 + $0x170] sm:$0xff]
      %v249 = vld [vmem:[%s193 + $0x178] sm:$0xff]
      %v250 = vld [vmem:[%s193 + $0x180] sm:$0xff]
      %v251 = vld [vmem:[%s193 + $0x188] sm:$0xff]
      %v252 = vld [vmem:[%s193 + $0x190] sm:$0xff]
      %v253 = vld [vmem:[%s193 + $0x198] sm:$0xff]
      %v254 = vld [vmem:[%s193 + $0x1a0] sm:$0xff]
      %v255 = vld [vmem:[%s193 + $0x1a8] sm:$0xff]
      %v256 = vld [vmem:[%s193 + $0x1b0] sm:$0xff]
      %v257 = vld [vmem:[%s193 + $0x1b8] sm:$0xff]
      %v258 = vld [vmem:[%s193 + $0x1c0] sm:$0xff]
      %v259 = vld [vmem:[%s193 + $0x1c8] sm:$0xff]
      %v260 = vld [vmem:[%s193 + $0x1d0] sm:$0xff]
      %v261 = vld [vmem:[%s193 + $0x1d8] sm:$0xff]
      %v262 = vld [vmem:[%s193 + $0x1e0] sm:$0xff]
      %v263 = vld [vmem:[%s193 + $0x1e8] sm:$0xff]
      %v264 = vld [vmem:[%s193 + $0x1f0] sm:$0xff]
      %v265 = vld [vmem:[%s193 + $0x1f8] sm:$0xff]
      %v266 = vrcp.pop 2.0
      %v267 = vmul.f32 %v202, %v266
      %v268 = vmul.f32 %v203, %v266
      %v269 = vmul.f32 %v204, %v266
      %v270 = vmul.f32 %v205, %v266
      %v271 = vmul.f32 %v206, %v266
      %v272 = vmul.f32 %v207, %v266
      %v273 = vmul.f32 %v208, %v266
      %v274 = vmul.f32 %v209, %v266
      %v275 = vmul.f32 %v210, %v266
      %v276 = vmul.f32 %v211, %v266
      %v277 = vmul.f32 %v212, %v266
      %v278 = vmul.f32 %v213, %v266
      %v279 = vmul.f32 %v214, %v266
      %v280 = vmul.f32 %v215, %v266
      %v281 = vmul.f32 %v216, %v266
      %v282 = vmul.f32 %v217, %v266
      %v283 = vmul.f32 %v218, %v266
      %v284 = vmul.f32 %v219, %v266
      %v285 = vmul.f32 %v220, %v266
      %v286 = vmul.f32 %v221, %v266
      %v287 = vmul.f32 %v222, %v266
      %v288 = vmul.f32 %v223, %v266
      %v289 = vmul.f32 %v224, %v266
      %v290 = vmul.f32 %v225, %v266
      %v291 = vmul.f32 %v226, %v266
      %v292 = vmul.f32 %v227, %v266
      %v293 = vmul.f32 %v228, %v266
      %v294 = vmul.f32 %v229, %v266
      %v295 = vmul.f32 %v230, %v266
      %v296 = vmul.f32 %v231, %v266
      %v297 = vmul.f32 %v232, %v266
      %v298 = vmul.f32 %v233, %v266
      %v299 = vmul.f32 %v234, %v266
      %v300 = vmul.f32 %v235, %v266
      %v301 = vmul.f32 %v236, %v266
      %v302 = vmul.f32 %v237, %v266
      %v303 = vmul.f32 %v238, %v266
      %v304 = vmul.f32 %v239, %v266
      %v305 = vmul.f32 %v240, %v266
      %v306 = vmul.f32 %v241, %v266
      %v307 = vmul.f32 %v242, %v266
      %v308 = vmul.f32 %v243, %v266
      %v309 = vmul.f32 %v244, %v266
      %v310 = vmul.f32 %v245, %v266
      %v311 = vmul.f32 %v246, %v266
      %v312 = vmul.f32 %v247, %v266
      %v313 = vmul.f32 %v248, %v266
      %v314 = vmul.f32 %v249, %v266
      %v315 = vmul.f32 %v250, %v266
      %v316 = vmul.f32 %v251, %v266
      %v317 = vmul.f32 %v252, %v266
      %v318 = vmul.f32 %v253, %v266
      %v319 = vmul.f32 %v254, %v266
      %v320 = vmul.f32 %v255, %v266
      %v321 = vmul.f32 %v256, %v266
      %v322 = vmul.f32 %v257, %v266
      %v323 = vmul.f32 %v258, %v266
      %v324 = vmul.f32 %v259, %v266
      %v325 = vmul.f32 %v260, %v266
      %v326 = vmul.f32 %v261, %v266
      %v327 = vmul.f32 %v262, %v266
      %v328 = vmul.f32 %v263, %v266
      %v329 = vmul.f32 %v264, %v266
      %v330 = vmul.f32 %v265, %v266
      %v331 = vadd.f32 %v267, 0.5
      %v332 = vadd.f32 %v268, 0.5
      %v333 = vadd.f32 %v269, 0.5
      %v334 = vadd.f32 %v270, 0.5
      %v335 = vadd.f32 %v271, 0.5
      %v336 = vadd.f32 %v272, 0.5
      %v337 = vadd.f32 %v273, 0.5
      %v338 = vadd.f32 %v274, 0.5
      %v339 = vadd.f32 %v275, 0.5
      %v340 = vadd.f32 %v276, 0.5
      %v341 = vadd.f32 %v277, 0.5
      %v342 = vadd.f32 %v278, 0.5
      %v343 = vadd.f32 %v279, 0.5
      %v344 = vadd.f32 %v280, 0.5
      %v345 = vadd.f32 %v281, 0.5
      %v346 = vadd.f32 %v282, 0.5
      %v347 = vadd.f32 %v283, 0.5
      %v348 = vadd.f32 %v284, 0.5
      %v349 = vadd.f32 %v285, 0.5
      %v350 = vadd.f32 %v286, 0.5
      %v351 = vadd.f32 %v287, 0.5
      %v352 = vadd.f32 %v288, 0.5
      %v353 = vadd.f32 %v289, 0.5
      %v354 = vadd.f32 %v290, 0.5
      %v355 = vadd.f32 %v291, 0.5
      %v356 = vadd.f32 %v292, 0.5
      %v357 = vadd.f32 %v293, 0.5
      %v358 = vadd.f32 %v294, 0.5
      %v359 = vadd.f32 %v295, 0.5
      %v360 = vadd.f32 %v296, 0.5
      %v361 = vadd.f32 %v297, 0.5
      %v362 = vadd.f32 %v298, 0.5
      %v363 = vadd.f32 %v299, 0.5
      %v364 = vadd.f32 %v300, 0.5
      %v365 = vadd.f32 %v301, 0.5
      %v366 = vadd.f32 %v302, 0.5
      %v367 = vadd.f32 %v303, 0.5
      %v368 = vadd.f32 %v304, 0.5
      %v369 = vadd.f32 %v305, 0.5
      %v370 = vadd.f32 %v306, 0.5
      %v371 = vadd.f32 %v307, 0.5
      %v372 = vadd.f32 %v308, 0.5
      %v373 = vadd.f32 %v309, 0.5
      %v374 = vadd.f32 %v310, 0.5
      %v375 = vadd.f32 %v311, 0.5
      %v376 = vadd.f32 %v312, 0.5
      %v377 = vadd.f32 %v313, 0.5
      %v378 = vadd.f32 %v314, 0.5
      %v379 = vadd.f32 %v315, 0.5
      %v380 = vadd.f32 %v316, 0.5
      %v381 = vadd.f32 %v317, 0.5
      %v382 = vadd.f32 %v318, 0.5
      %v383 = vadd.f32 %v319, 0.5
      %v384 = vadd.f32 %v320, 0.5
      %v385 = vadd.f32 %v321, 0.5
      %v386 = vadd.f32 %v322, 0.5
      %v387 = vadd.f32 %v323, 0.5
      %v388 = vadd.f32 %v324, 0.5
      %v389 = vadd.f32 %v325, 0.5
      %v390 = vadd.f32 %v326, 0.5
      %v391 = vadd.f32 %v327, 0.5
      %v392 = vadd.f32 %v328, 0.5
      %v393 = vadd.f32 %v329, 0.5
      %v394 = vadd.f32 %v330, 0.5
      %v395 = vadd.f32 %v331, 0.07217
      %v396 = vadd.f32 %v332, 0.07217
      %v397 = vadd.f32 %v333, 0.07217
      %v398 = vadd.f32 %v334, 0.07217
      %v399 = vadd.f32 %v335, 0.07217
      %v400 = vadd.f32 %v336, 0.07217
      %v401 = vadd.f32 %v337, 0.07217
      %v402 = vadd.f32 %v338, 0.07217
      %v403 = vadd.f32 %v339, 0.07217
      %v404 = vadd.f32 %v340, 0.07217
      %v405 = vadd.f32 %v341, 0.07217
      %v406 = vadd.f32 %v342, 0.07217
      %v407 = vadd.f32 %v343, 0.07217
      %v408 = vadd.f32 %v344, 0.07217
      %v409 = vadd.f32 %v345, 0.07217
      %v410 = vadd.f32 %v346, 0.07217
      %v411 = vadd.f32 %v347, 0.07217
      %v412 = vadd.f32 %v348, 0.07217
      %v413 = vadd.f32 %v349, 0.07217
      %v414 = vadd.f32 %v350, 0.07217
      %v415 = vadd.f32 %v351, 0.07217
      %v416 = vadd.f32 %v352, 0.07217
      %v417 = vadd.f32 %v353, 0.07217
      %v418 = vadd.f32 %v354, 0.07217
      %v419 = vadd.f32 %v355, 0.07217
      %v420 = vadd.f32 %v356, 0.07217
      %v421 = vadd.f32 %v357, 0.07217
      %v422 = vadd.f32 %v358, 0.07217
      %v423 = vadd.f32 %v359, 0.07217
      %v424 = vadd.f32 %v360, 0.07217
      %v425 = vadd.f32 %v361, 0.07217
      %v426 = vadd.f32 %v362, 0.07217
      %v427 = vadd.f32 %v363, 0.07217
      %v428 = vadd.f32 %v364, 0.07217
      %v429 = vadd.f32 %v365, 0.07217
      %v430 = vadd.f32 %v366, 0.07217
      %v431 = vadd.f32 %v367, 0.07217
      %v432 = vadd.f32 %v368, 0.07217
      %v433 = vadd.f32 %v369, 0.07217
      %v434 = vadd.f32 %v370, 0.07217
      %v435 = vadd.f32 %v371, 0.07217
      %v436 = vadd.f32 %v372, 0.07217
      %v437 = vadd.f32 %v373, 0.07217
      %v438 = vadd.f32 %v374, 0.07217
      %v439 = vadd.f32 %v375, 0.07217
      %v440 = vadd.f32 %v376, 0.07217
      %v441 = vadd.f32 %v377, 0.07217
      %v442 = vadd.f32 %v378, 0.07217
      %v443 = vadd.f32 %v379, 0.07217
      %v444 = vadd.f32 %v380, 0.07217
      %v445 = vadd.f32 %v381, 0.07217
      %v446 = vadd.f32 %v382, 0.07217
      %v447 = vadd.f32 %v383, 0.07217
      %v448 = vadd.f32 %v384, 0.07217
      %v449 = vadd.f32 %v385, 0.07217
      %v450 = vadd.f32 %v386, 0.07217
      %v451 = vadd.f32 %v387, 0.07217
      %v452 = vadd.f32 %v388, 0.07217
      %v453 = vadd.f32 %v389, 0.07217
      %v454 = vadd.f32 %v390, 0.07217
      %v455 = vadd.f32 %v391, 0.07217
      %v456 = vadd.f32 %v392, 0.07217
      %v457 = vadd.f32 %v393, 0.07217
      %v458 = vadd.f32 %v394, 0.07217
      %v459 = vmul.f32 %v395, 31.0
      %v460 = vmul.f32 %v396, 31.0
      %v461 = vmul.f32 %v397, 31.0
      %v462 = vmul.f32 %v398, 31.0
      %v463 = vmul.f32 %v399, 31.0
      %v464 = vmul.f32 %v400, 31.0
      %v465 = vmul.f32 %v401, 31.0
      %v466 = vmul.f32 %v402, 31.0
      %v467 = vmul.f32 %v403, 31.0
      %v468 = vmul.f32 %v404, 31.0
      %v469 = vmul.f32 %v405, 31.0
      %v470 = vmul.f32 %v406, 31.0
      %v471 = vmul.f32 %v407, 31.0
      %v472 = vmul.f32 %v408, 31.0
      %v473 = vmul.f32 %v409, 31.0
      %v474 = vmul.f32 %v410, 31.0
      %v475 = vmul.f32 %v411, 31.0
      %v476 = vmul.f32 %v412, 31.0
      %v477 = vmul.f32 %v413, 31.0
      %v478 = vmul.f32 %v414, 31.0
      %v479 = vmul.f32 %v415, 31.0
      %v480 = vmul.f32 %v416, 31.0
      %v481 = vmul.f32 %v417, 31.0
      %v482 = vmul.f32 %v418, 31.0
      %v483 = vmul.f32 %v419, 31.0
      %v484 = vmul.f32 %v420, 31.0
      %v485 = vmul.f32 %v421, 31.0
      %v486 = vmul.f32 %v422, 31.0
      %v487 = vmul.f32 %v423, 31.0
      %v488 = vmul.f32 %v424, 31.0
      %v489 = vmul.f32 %v425, 31.0
      %v490 = vmul.f32 %v426, 31.0
      %v491 = vmul.f32 %v427, 31.0
      %v492 = vmul.f32 %v428, 31.0
      %v493 = vmul.f32 %v429, 31.0
      %v494 = vmul.f32 %v430, 31.0
      %v495 = vmul.f32 %v431, 31.0
      %v496 = vmul.f32 %v432, 31.0
      %v497 = vmul.f32 %v433, 31.0
      %v498 = vmul.f32 %v434, 31.0
      %v499 = vmul.f32 %v435, 31.0
      %v500 = vmul.f32 %v436, 31.0
      %v501 = vmul.f32 %v437, 31.0
      %v502 = vmul.f32 %v438, 31.0
      %v503 = vmul.f32 %v439, 31.0
      %v504 = vmul.f32 %v440, 31.0
      %v505 = vmul.f32 %v441, 31.0
      %v506 = vmul.f32 %v442, 31.0
      %v507 = vmul.f32 %v443, 31.0
      %v508 = vmul.f32 %v444, 31.0
      %v509 = vmul.f32 %v445, 31.0
      %v510 = vmul.f32 %v446, 31.0
      %v511 = vmul.f32 %v447, 31.0
      %v512 = vmul.f32 %v448, 31.0
      %v513 = vmul.f32 %v449, 31.0
      %v514 = vmul.f32 %v450, 31.0
      %v515 = vmul.f32 %v451, 31.0
      %v516 = vmul.f32 %v452, 31.0
      %v517 = vmul.f32 %v453, 31.0
      %v518 = vmul.f32 %v454, 31.0
      %v519 = vmul.f32 %v455, 31.0
      %v520 = vmul.f32 %v456, 31.0
      %v521 = vmul.f32 %v457, 31.0
      %v522 = vmul.f32 %v458, 31.0
      %523 = vst [vmem:[%s199] sm:$0xff] 0.0
      %524 = vst [vmem:[%s199 + $0x8] sm:$0xff] 0.0
      %525 = vst [vmem:[%s199 + $0x10] sm:$0xff] 0.0
      %526 = vst [vmem:[%s199 + $0x18] sm:$0xff] 0.0
      %527 = vst [vmem:[%s199 + $0x20] sm:$0xff] 0.0
      %528 = vst [vmem:[%s199 + $0x28] sm:$0xff] 0.0
      %529 = vst [vmem:[%s199 + $0x30] sm:$0xff] 0.0
      %530 = vst [vmem:[%s199 + $0x38] sm:$0xff] 0.0
      %531 = vst [vmem:[%s199 + $0x40] sm:$0xff] 0.0
      %532 = vst [vmem:[%s199 + $0x48] sm:$0xff] 0.0
      %533 = vst [vmem:[%s199 + $0x50] sm:$0xff] 0.0
      %534 = vst [vmem:[%s199 + $0x58] sm:$0xff] 0.0
      %535 = vst [vmem:[%s199 + $0x60] sm:$0xff] 0.0
      %536 = vst [vmem:[%s199 + $0x68] sm:$0xff] 0.0
      %537 = vst [vmem:[%s199 + $0x70] sm:$0xff] 0.0
      %538 = vst [vmem:[%s199 + $0x78] sm:$0xff] 0.0
      %539 = vst [vmem:[%s199 + $0x80] sm:$0xff] 0.0
      %540 = vst [vmem:[%s199 + $0x88] sm:$0xff] 0.0
      %541 = vst [vmem:[%s199 + $0x90] sm:$0xff] 0.0
      %542 = vst [vmem:[%s199 + $0x98] sm:$0xff] 0.0
      %543 = vst [vmem:[%s199 + $0xa0] sm:$0xff] 0.0
      %544 = vst [vmem:[%s199 + $0xa8] sm:$0xff] 0.0
      %545 = vst [vmem:[%s199 + $0xb0] sm:$0xff] 0.0
      %546 = vst [vmem:[%s199 + $0xb8] sm:$0xff] 0.0
      %547 = vst [vmem:[%s199 + $0xc0] sm:$0xff] 0.0
      %548 = vst [vmem:[%s199 + $0xc8] sm:$0xff] 0.0
      %549 = vst [vmem:[%s199 + $0xd0] sm:$0xff] 0.0
      %550 = vst [vmem:[%s199 + $0xd8] sm:$0xff] 0.0
      %551 = vst [vmem:[%s199 + $0xe0] sm:$0xff] 0.0
      %552 = vst [vmem:[%s199 + $0xe8] sm:$0xff] 0.0
      %553 = vst [vmem:[%s199 + $0xf0] sm:$0xff] 0.0
      %554 = vst [vmem:[%s199 + $0xf8] sm:$0xff] 0.0
      %555 = vst [vmem:[%s199 + $0x100] sm:$0xff] 0.0
      %556 = vst [vmem:[%s199 + $0x108] sm:$0xff] 0.0
      %557 = vst [vmem:[%s199 + $0x110] sm:$0xff] 0.0
      %558 = vst [vmem:[%s199 + $0x118] sm:$0xff] 0.0
      %559 = vst [vmem:[%s199 + $0x120] sm:$0xff] 0.0
      %560 = vst [vmem:[%s199 + $0x128] sm:$0xff] 0.0
      %561 = vst [vmem:[%s199 + $0x130] sm:$0xff] 0.0
      %562 = vst [vmem:[%s199 + $0x138] sm:$0xff] 0.0
      %563 = vst [vmem:[%s199 + $0x140] sm:$0xff] 0.0
      %564 = vst [vmem:[%s199 + $0x148] sm:$0xff] 0.0
      %565 = vst [vmem:[%s199 + $0x150] sm:$0xff] 0.0
      %566 = vst [vmem:[%s199 + $0x158] sm:$0xff] 0.0
      %567 = vst [vmem:[%s199 + $0x160] sm:$0xff] 0.0
      %568 = vst [vmem:[%s199 + $0x168] sm:$0xff] 0.0
      %569 = vst [vmem:[%s199 + $0x170] sm:$0xff] 0.0
      %570 = vst [vmem:[%s199 + $0x178] sm:$0xff] 0.0
      %571 = vst [vmem:[%s199 + $0x180] sm:$0xff] 0.0
      %572 = vst [vmem:[%s199 + $0x188] sm:$0xff] 0.0
      %573 = vst [vmem:[%s199 + $0x190] sm:$0xff] 0.0
      %574 = vst [vmem:[%s199 + $0x198] sm:$0xff] 0.0
      %575 = vst [vmem:[%s199 + $0x1a0] sm:$0xff] 0.0
      %576 = vst [vmem:[%s199 + $0x1a8] sm:$0xff] 0.0
      %577 = vst [vmem:[%s199 + $0x1b0] sm:$0xff] 0.0
      %578 = vst [vmem:[%s199 + $0x1b8] sm:$0xff] 0.0
      %579 = vst [vmem:[%s199 + $0x1c0] sm:$0xff] 0.0
      %580 = vst [vmem:[%s199 + $0x1c8] sm:$0xff] 0.0
      %581 = vst [vmem:[%s199 + $0x1d0] sm:$0xff] 0.0
      %582 = vst [vmem:[%s199 + $0x1d8] sm:$0xff] 0.0
      %583 = vst [vmem:[%s199 + $0x1e0] sm:$0xff] 0.0
      %584 = vst [vmem:[%s199 + $0x1e8] sm:$0xff] 0.0
      %585 = vst [vmem:[%s199 + $0x1f0] sm:$0xff] 0.0
      %586 = vst [vmem:[%s199 + $0x1f8] sm:$0xff] 0.0
      loop: start=0, step=1, limit=4
      $region37: #{triplane_forward.1} parent=35 // loop_pre_header
        _
      $region38: #{triplane_forward.1} parent=35 // loop_header
        %s588 = sphi 0, %s592
        %p589 = scmp.ge.s32.totalorder %s588, 4
      $region39: #{triplane_forward.1} parent=35 // loop_header_branch
        %591 = sbr.rel (%p589) target = $region43
      $region40: #{triplane_forward.1} parent=35 // loop_body
        %s593 = smul.u32 %s588, 256
        %v594 = vlaneseq
        %v595 = vand.u32 %v594, 127
        %v596 = vadd.s32 %v595, 128
        %v597 = vstv %s593
        %v598 = vadd.s32 %v595, %v597
        %v599 = vadd.s32 %v596, %v597
        %v600 = vshra.s32 %v598, 5
        %v601 = vshra.s32 %v599, 5
        %v602 = vcvt.s32.f32 %v600
        %v603 = vcvt.s32.f32 %v601
        %v604 = vand.u32 %v598, 31
        %v605 = vand.u32 %v599, 31
        %v606 = vcvt.s32.f32 %v604
        %v607 = vcvt.s32.f32 %v605
        %609 = vset.pattern.permute.xlu0 0
        %610 = vperm.xlu0 %609, %v459
        %v611 = vpop.permute.xlu0 %610
        %614 = vset.pattern.permute.xlu0 0
        %615 = vperm.xlu0 %614, %v460
        %v616 = vpop.permute.xlu0 %615
        %619 = vset.pattern.permute.xlu0 0
        %620 = vperm.xlu0 %619, %v461
        %v621 = vpop.permute.xlu0 %620
        %624 = vset.pattern.permute.xlu0 0
        %625 = vperm.xlu0 %624, %v462
        %v626 = vpop.permute.xlu0 %625
        %629 = vset.pattern.permute.xlu0 0
        %630 = vperm.xlu0 %629, %v463
        %v631 = vpop.permute.xlu0 %630
        %634 = vset.pattern.permute.xlu0 0
        %635 = vperm.xlu0 %634, %v464
        %v636 = vpop.permute.xlu0 %635
        %639 = vset.pattern.permute.xlu0 0
        %640 = vperm.xlu0 %639, %v465
        %v641 = vpop.permute.xlu0 %640
        %644 = vset.pattern.permute.xlu0 0
        %645 = vperm.xlu0 %644, %v466
        %v646 = vpop.permute.xlu0 %645
        %649 = vset.pattern.permute.xlu0 0
        %650 = vperm.xlu0 %649, %v467
        %v651 = vpop.permute.xlu0 %650
        %654 = vset.pattern.permute.xlu0 0
        %655 = vperm.xlu0 %654, %v468
        %v656 = vpop.permute.xlu0 %655
        %659 = vset.pattern.permute.xlu0 0
        %660 = vperm.xlu0 %659, %v469
        %v661 = vpop.permute.xlu0 %660
        %664 = vset.pattern.permute.xlu0 0
        %665 = vperm.xlu0 %664, %v470
        %v666 = vpop.permute.xlu0 %665
        %669 = vset.pattern.permute.xlu0 0
        %670 = vperm.xlu0 %669, %v471
        %v671 = vpop.permute.xlu0 %670
        %674 = vset.pattern.permute.xlu0 0
        %675 = vperm.xlu0 %674, %v472
        %v676 = vpop.permute.xlu0 %675
        %679 = vset.pattern.permute.xlu0 0
        %680 = vperm.xlu0 %679, %v473
        %v681 = vpop.permute.xlu0 %680
        %684 = vset.pattern.permute.xlu0 0
        %685 = vperm.xlu0 %684, %v474
        %v686 = vpop.permute.xlu0 %685
        %689 = vset.pattern.permute.xlu0 0
        %690 = vperm.xlu0 %689, %v475
        %v691 = vpop.permute.xlu0 %690
        %694 = vset.pattern.permute.xlu0 0
        %695 = vperm.xlu0 %694, %v476
        %v696 = vpop.permute.xlu0 %695
        %699 = vset.pattern.permute.xlu0 0
        %700 = vperm.xlu0 %699, %v477
        %v701 = vpop.permute.xlu0 %700
        %704 = vset.pattern.permute.xlu0 0
        %705 = vperm.xlu0 %704, %v478
        %v706 = vpop.permute.xlu0 %705
        %709 = vset.pattern.permute.xlu0 0
        %710 = vperm.xlu0 %709, %v479
        %v711 = vpop.permute.xlu0 %710
        %714 = vset.pattern.permute.xlu0 0
        %715 = vperm.xlu0 %714, %v480
        %v716 = vpop.permute.xlu0 %715
        %719 = vset.pattern.permute.xlu0 0
        %720 = vperm.xlu0 %719, %v481
        %v721 = vpop.permute.xlu0 %720
        %724 = vset.pattern.permute.xlu0 0
        %725 = vperm.xlu0 %724, %v482
        %v726 = vpop.permute.xlu0 %725
        %729 = vset.pattern.permute.xlu0 0
        %730 = vperm.xlu0 %729, %v483
        %v731 = vpop.permute.xlu0 %730
        %734 = vset.pattern.permute.xlu0 0
        %735 = vperm.xlu0 %734, %v484
        %v736 = vpop.permute.xlu0 %735
        %739 = vset.pattern.permute.xlu0 0
        %740 = vperm.xlu0 %739, %v485
        %v741 = vpop.permute.xlu0 %740
        %744 = vset.pattern.permute.xlu0 0
        %745 = vperm.xlu0 %744, %v486
        %v746 = vpop.permute.xlu0 %745
        %749 = vset.pattern.permute.xlu0 0
        %750 = vperm.xlu0 %749, %v487
        %v751 = vpop.permute.xlu0 %750
        %754 = vset.pattern.permute.xlu0 0
        %755 = vperm.xlu0 %754, %v488
        %v756 = vpop.permute.xlu0 %755
        %759 = vset.pattern.permute.xlu0 0
        %760 = vperm.xlu0 %759, %v489
        %v761 = vpop.permute.xlu0 %760
        %764 = vset.pattern.permute.xlu0 0
        %765 = vperm.xlu0 %764, %v490
        %v766 = vpop.permute.xlu0 %765
        %769 = vset.pattern.permute.xlu0 0
        %770 = vperm.xlu0 %769, %v491
        %v771 = vpop.permute.xlu0 %770
        %774 = vset.pattern.permute.xlu0 0
        %775 = vperm.xlu0 %774, %v492
        %v776 = vpop.permute.xlu0 %775
        %779 = vset.pattern.permute.xlu0 0
        %780 = vperm.xlu0 %779, %v493
        %v781 = vpop.permute.xlu0 %780
        %784 = vset.pattern.permute.xlu0 0
        %785 = vperm.xlu0 %784, %v494
        %v786 = vpop.permute.xlu0 %785
        %789 = vset.pattern.permute.xlu0 0
        %790 = vperm.xlu0 %789, %v495
        %v791 = vpop.permute.xlu0 %790
        %794 = vset.pattern.permute.xlu0 0
        %795 = vperm.xlu0 %794, %v496
        %v796 = vpop.permute.xlu0 %795
        %799 = vset.pattern.permute.xlu0 0
        %800 = vperm.xlu0 %799, %v497
        %v801 = vpop.permute.xlu0 %800
        %804 = vset.pattern.permute.xlu0 0
        %805 = vperm.xlu0 %804, %v498
        %v806 = vpop.permute.xlu0 %805
        %809 = vset.pattern.permute.xlu0 0
        %810 = vperm.xlu0 %809, %v499
        %v811 = vpop.permute.xlu0 %810
        %814 = vset.pattern.permute.xlu0 0
        %815 = vperm.xlu0 %814, %v500
        %v816 = vpop.permute.xlu0 %815
        %819 = vset.pattern.permute.xlu0 0
        %820 = vperm.xlu0 %819, %v501
        %v821 = vpop.permute.xlu0 %820
        %824 = vset.pattern.permute.xlu0 0
        %825 = vperm.xlu0 %824, %v502
        %v826 = vpop.permute.xlu0 %825
        %829 = vset.pattern.permute.xlu0 0
        %830 = vperm.xlu0 %829, %v503
        %v831 = vpop.permute.xlu0 %830
        %834 = vset.pattern.permute.xlu0 0
        %835 = vperm.xlu0 %834, %v504
        %v836 = vpop.permute.xlu0 %835
        %839 = vset.pattern.permute.xlu0 0
        %840 = vperm.xlu0 %839, %v505
        %v841 = vpop.permute.xlu0 %840
        %844 = vset.pattern.permute.xlu0 0
        %845 = vperm.xlu0 %844, %v506
        %v846 = vpop.permute.xlu0 %845
        %849 = vset.pattern.permute.xlu0 0
        %850 = vperm.xlu0 %849, %v507
        %v851 = vpop.permute.xlu0 %850
        %854 = vset.pattern.permute.xlu0 0
        %855 = vperm.xlu0 %854, %v508
        %v856 = vpop.permute.xlu0 %855
        %859 = vset.pattern.permute.xlu0 0
        %860 = vperm.xlu0 %859, %v509
        %v861 = vpop.permute.xlu0 %860
        %864 = vset.pattern.permute.xlu0 0
        %865 = vperm.xlu0 %864, %v510
        %v866 = vpop.permute.xlu0 %865
        %869 = vset.pattern.permute.xlu0 0
        %870 = vperm.xlu0 %869, %v511
        %v871 = vpop.permute.xlu0 %870
        %874 = vset.pattern.permute.xlu0 0
        %875 = vperm.xlu0 %874, %v512
        %v876 = vpop.permute.xlu0 %875
        %879 = vset.pattern.permute.xlu0 0
        %880 = vperm.xlu0 %879, %v513
        %v881 = vpop.permute.xlu0 %880
        %884 = vset.pattern.permute.xlu0 0
        %885 = vperm.xlu0 %884, %v514
        %v886 = vpop.permute.xlu0 %885
        %889 = vset.pattern.permute.xlu0 0
        %890 = vperm.xlu0 %889, %v515
        %v891 = vpop.permute.xlu0 %890
        %894 = vset.pattern.permute.xlu0 0
        %895 = vperm.xlu0 %894, %v516
        %v896 = vpop.permute.xlu0 %895
        %899 = vset.pattern.permute.xlu0 0
        %900 = vperm.xlu0 %899, %v517
        %v901 = vpop.permute.xlu0 %900
        %904 = vset.pattern.permute.xlu0 0
        %905 = vperm.xlu0 %904, %v518
        %v906 = vpop.permute.xlu0 %905
        %909 = vset.pattern.permute.xlu0 0
        %910 = vperm.xlu0 %909, %v519
        %v911 = vpop.permute.xlu0 %910
        %914 = vset.pattern.permute.xlu0 0
        %915 = vperm.xlu0 %914, %v520
        %v916 = vpop.permute.xlu0 %915
        %919 = vset.pattern.permute.xlu0 0
        %920 = vperm.xlu0 %919, %v521
        %v921 = vpop.permute.xlu0 %920
        %924 = vset.pattern.permute.xlu0 0
        %925 = vperm.xlu0 %924, %v522
        %v926 = vpop.permute.xlu0 %925
        %v928 = vsub.f32 %v611, %v606
        %v929 = vsub.f32 %v611, %v607
        %v930 = vsub.f32 %v616, %v606
        %v931 = vsub.f32 %v616, %v607
        %v932 = vsub.f32 %v621, %v606
        %v933 = vsub.f32 %v621, %v607
        %v934 = vsub.f32 %v626, %v606
        %v935 = vsub.f32 %v626, %v607
        %v936 = vsub.f32 %v631, %v606
        %v937 = vsub.f32 %v631, %v607
        %v938 = vsub.f32 %v636, %v606
        %v939 = vsub.f32 %v636, %v607
        %v940 = vsub.f32 %v641, %v606
        %v941 = vsub.f32 %v641, %v607
        %v942 = vsub.f32 %v646, %v606
        %v943 = vsub.f32 %v646, %v607
        %v944 = vsub.f32 %v651, %v606
        %v945 = vsub.f32 %v651, %v607
        %v946 = vsub.f32 %v656, %v606
        %v947 = vsub.f32 %v656, %v607
        %v948 = vsub.f32 %v661, %v606
        %v949 = vsub.f32 %v661, %v607
        %v950 = vsub.f32 %v666, %v606
        %v951 = vsub.f32 %v666, %v607
        %v952 = vsub.f32 %v671, %v606
        %v953 = vsub.f32 %v671, %v607
        %v954 = vsub.f32 %v676, %v606
        %v955 = vsub.f32 %v676, %v607
        %v956 = vsub.f32 %v681, %v606
        %v957 = vsub.f32 %v681, %v607
        %v958 = vsub.f32 %v686, %v606
        %v959 = vsub.f32 %v686, %v607
        %v960 = vsub.f32 %v691, %v606
        %v961 = vsub.f32 %v691, %v607
        %v962 = vsub.f32 %v696, %v606
        %v963 = vsub.f32 %v696, %v607
        %v964 = vsub.f32 %v701, %v606
        %v965 = vsub.f32 %v701, %v607
        %v966 = vsub.f32 %v706, %v606
        %v967 = vsub.f32 %v706, %v607
        %v968 = vsub.f32 %v711, %v606
        %v969 = vsub.f32 %v711, %v607
        %v970 = vsub.f32 %v716, %v606
        %v971 = vsub.f32 %v716, %v607
        %v972 = vsub.f32 %v721, %v606
        %v973 = vsub.f32 %v721, %v607
        %v974 = vsub.f32 %v726, %v606
        %v975 = vsub.f32 %v726, %v607
        %v976 = vsub.f32 %v731, %v606
        %v977 = vsub.f32 %v731, %v607
        %v978 = vsub.f32 %v736, %v606
        %v979 = vsub.f32 %v736, %v607
        %v980 = vsub.f32 %v741, %v606
        %v981 = vsub.f32 %v741, %v607
        %v982 = vsub.f32 %v746, %v606
        %v983 = vsub.f32 %v746, %v607
        %v984 = vsub.f32 %v751, %v606
        %v985 = vsub.f32 %v751, %v607
        %v986 = vsub.f32 %v756, %v606
        %v987 = vsub.f32 %v756, %v607
        %v988 = vsub.f32 %v761, %v606
        %v989 = vsub.f32 %v761, %v607
        %v990 = vsub.f32 %v766, %v606
        %v991 = vsub.f32 %v766, %v607
        %v992 = vsub.f32 %v771, %v606
        %v993 = vsub.f32 %v771, %v607
        %v994 = vsub.f32 %v776, %v606
        %v995 = vsub.f32 %v776, %v607
        %v996 = vsub.f32 %v781, %v606
        %v997 = vsub.f32 %v781, %v607
        %v998 = vsub.f32 %v786, %v606
        %v999 = vsub.f32 %v786, %v607
        %v1000 = vsub.f32 %v791, %v606
        %v1001 = vsub.f32 %v791, %v607
        %v1002 = vsub.f32 %v796, %v606
        %v1003 = vsub.f32 %v796, %v607
        %v1004 = vsub.f32 %v801, %v606
        %v1005 = vsub.f32 %v801, %v607
        %v1006 = vsub.f32 %v806, %v606
        %v1007 = vsub.f32 %v806, %v607
        %v1008 = vsub.f32 %v811, %v606
        %v1009 = vsub.f32 %v811, %v607
        %v1010 = vsub.f32 %v816, %v606
        %v1011 = vsub.f32 %v816, %v607
        %v1012 = vsub.f32 %v821, %v606
        %v1013 = vsub.f32 %v821, %v607
        %v1014 = vsub.f32 %v826, %v606
        %v1015 = vsub.f32 %v826, %v607
        %v1016 = vsub.f32 %v831, %v606
        %v1017 = vsub.f32 %v831, %v607
        %v1018 = vsub.f32 %v836, %v606
        %v1019 = vsub.f32 %v836, %v607
        %v1020 = vsub.f32 %v841, %v606
        %v1021 = vsub.f32 %v841, %v607
        %v1022 = vsub.f32 %v846, %v606
        %v1023 = vsub.f32 %v846, %v607
        %v1024 = vsub.f32 %v851, %v606
        %v1025 = vsub.f32 %v851, %v607
        %v1026 = vsub.f32 %v856, %v606
        %v1027 = vsub.f32 %v856, %v607
        %v1028 = vsub.f32 %v861, %v606
        %v1029 = vsub.f32 %v861, %v607
        %v1030 = vsub.f32 %v866, %v606
        %v1031 = vsub.f32 %v866, %v607
        %v1032 = vsub.f32 %v871, %v606
        %v1033 = vsub.f32 %v871, %v607
        %v1034 = vsub.f32 %v876, %v606
        %v1035 = vsub.f32 %v876, %v607
        %v1036 = vsub.f32 %v881, %v606
        %v1037 = vsub.f32 %v881, %v607
        %v1038 = vsub.f32 %v886, %v606
        %v1039 = vsub.f32 %v886, %v607
        %v1040 = vsub.f32 %v891, %v606
        %v1041 = vsub.f32 %v891, %v607
        %v1042 = vsub.f32 %v896, %v606
        %v1043 = vsub.f32 %v896, %v607
        %v1044 = vsub.f32 %v901, %v606
        %v1045 = vsub.f32 %v901, %v607
        %v1046 = vsub.f32 %v906, %v606
        %v1047 = vsub.f32 %v906, %v607
        %v1048 = vsub.f32 %v911, %v606
        %v1049 = vsub.f32 %v911, %v607
        %v1050 = vsub.f32 %v916, %v606
        %v1051 = vsub.f32 %v916, %v607
        %v1052 = vsub.f32 %v921, %v606
        %v1053 = vsub.f32 %v921, %v607
        %v1054 = vsub.f32 %v926, %v606
        %v1055 = vsub.f32 %v926, %v607
        %v1056 = vand.u32 2147483647, %v928
        %v1057 = vand.u32 2147483647, %v929
        %v1058 = vand.u32 2147483647, %v930
        %v1059 = vand.u32 2147483647, %v931
        %v1060 = vand.u32 2147483647, %v932
        %v1061 = vand.u32 2147483647, %v933
        %v1062 = vand.u32 2147483647, %v934
        %v1063 = vand.u32 2147483647, %v935
        %v1064 = vand.u32 2147483647, %v936
        %v1065 = vand.u32 2147483647, %v937
        %v1066 = vand.u32 2147483647, %v938
        %v1067 = vand.u32 2147483647, %v939
        %v1068 = vand.u32 2147483647, %v940
        %v1069 = vand.u32 2147483647, %v941
        %v1070 = vand.u32 2147483647, %v942
        %v1071 = vand.u32 2147483647, %v943
        %v1072 = vand.u32 2147483647, %v944
        %v1073 = vand.u32 2147483647, %v945
        %v1074 = vand.u32 2147483647, %v946
        %v1075 = vand.u32 2147483647, %v947
        %v1076 = vand.u32 2147483647, %v948
        %v1077 = vand.u32 2147483647, %v949
        %v1078 = vand.u32 2147483647, %v950
        %v1079 = vand.u32 2147483647, %v951
        %v1080 = vand.u32 2147483647, %v952
        %v1081 = vand.u32 2147483647, %v953
        %v1082 = vand.u32 2147483647, %v954
        %v1083 = vand.u32 2147483647, %v955
        %v1084 = vand.u32 2147483647, %v956
        %v1085 = vand.u32 2147483647, %v957
        %v1086 = vand.u32 2147483647, %v958
        %v1087 = vand.u32 2147483647, %v959
        %v1088 = vand.u32 2147483647, %v960
        %v1089 = vand.u32 2147483647, %v961
        %v1090 = vand.u32 2147483647, %v962
        %v1091 = vand.u32 2147483647, %v963
        %v1092 = vand.u32 2147483647, %v964
        %v1093 = vand.u32 2147483647, %v965
        %v1094 = vand.u32 2147483647, %v966
        %v1095 = vand.u32 2147483647, %v967
        %v1096 = vand.u32 2147483647, %v968
        %v1097 = vand.u32 2147483647, %v969
        %v1098 = vand.u32 2147483647, %v970
        %v1099 = vand.u32 2147483647, %v971
        %v1100 = vand.u32 2147483647, %v972
        %v1101 = vand.u32 2147483647, %v973
        %v1102 = vand.u32 2147483647, %v974
        %v1103 = vand.u32 2147483647, %v975
        %v1104 = vand.u32 2147483647, %v976
        %v1105 = vand.u32 2147483647, %v977
        %v1106 = vand.u32 2147483647, %v978
        %v1107 = vand.u32 2147483647, %v979
        %v1108 = vand.u32 2147483647, %v980
        %v1109 = vand.u32 2147483647, %v981
        %v1110 = vand.u32 2147483647, %v982
        %v1111 = vand.u32 2147483647, %v983
        %v1112 = vand.u32 2147483647, %v984
        %v1113 = vand.u32 2147483647, %v985
        %v1114 = vand.u32 2147483647, %v986
        %v1115 = vand.u32 2147483647, %v987
        %v1116 = vand.u32 2147483647, %v988
        %v1117 = vand.u32 2147483647, %v989
        %v1118 = vand.u32 2147483647, %v990
        %v1119 = vand.u32 2147483647, %v991
        %v1120 = vand.u32 2147483647, %v992
        %v1121 = vand.u32 2147483647, %v993
        %v1122 = vand.u32 2147483647, %v994
        %v1123 = vand.u32 2147483647, %v995
        %v1124 = vand.u32 2147483647, %v996
        %v1125 = vand.u32 2147483647, %v997
        %v1126 = vand.u32 2147483647, %v998
        %v1127 = vand.u32 2147483647, %v999
        %v1128 = vand.u32 2147483647, %v1000
        %v1129 = vand.u32 2147483647, %v1001
        %v1130 = vand.u32 2147483647, %v1002
        %v1131 = vand.u32 2147483647, %v1003
        %v1132 = vand.u32 2147483647, %v1004
        %v1133 = vand.u32 2147483647, %v1005
        %v1134 = vand.u32 2147483647, %v1006
        %v1135 = vand.u32 2147483647, %v1007
        %v1136 = vand.u32 2147483647, %v1008
        %v1137 = vand.u32 2147483647, %v1009
        %v1138 = vand.u32 2147483647, %v1010
        %v1139 = vand.u32 2147483647, %v1011
        %v1140 = vand.u32 2147483647, %v1012
        %v1141 = vand.u32 2147483647, %v1013
        %v1142 = vand.u32 2147483647, %v1014
        %v1143 = vand.u32 2147483647, %v1015
        %v1144 = vand.u32 2147483647, %v1016
        %v1145 = vand.u32 2147483647, %v1017
        %v1146 = vand.u32 2147483647, %v1018
        %v1147 = vand.u32 2147483647, %v1019
        %v1148 = vand.u32 2147483647, %v1020
        %v1149 = vand.u32 2147483647, %v1021
        %v1150 = vand.u32 2147483647, %v1022
        %v1151 = vand.u32 2147483647, %v1023
        %v1152 = vand.u32 2147483647, %v1024
        %v1153 = vand.u32 2147483647, %v1025
        %v1154 = vand.u32 2147483647, %v1026
        %v1155 = vand.u32 2147483647, %v1027
        %v1156 = vand.u32 2147483647, %v1028
        %v1157 = vand.u32 2147483647, %v1029
        %v1158 = vand.u32 2147483647, %v1030
        %v1159 = vand.u32 2147483647, %v1031
        %v1160 = vand.u32 2147483647, %v1032
        %v1161 = vand.u32 2147483647, %v1033
        %v1162 = vand.u32 2147483647, %v1034
        %v1163 = vand.u32 2147483647, %v1035
        %v1164 = vand.u32 2147483647, %v1036
        %v1165 = vand.u32 2147483647, %v1037
        %v1166 = vand.u32 2147483647, %v1038
        %v1167 = vand.u32 2147483647, %v1039
        %v1168 = vand.u32 2147483647, %v1040
        %v1169 = vand.u32 2147483647, %v1041
        %v1170 = vand.u32 2147483647, %v1042
        %v1171 = vand.u32 2147483647, %v1043
        %v1172 = vand.u32 2147483647, %v1044
        %v1173 = vand.u32 2147483647, %v1045
        %v1174 = vand.u32 2147483647, %v1046
        %v1175 = vand.u32 2147483647, %v1047
        %v1176 = vand.u32 2147483647, %v1048
        %v1177 = vand.u32 2147483647, %v1049
        %v1178 = vand.u32 2147483647, %v1050
        %v1179 = vand.u32 2147483647, %v1051
        %v1180 = vand.u32 2147483647, %v1052
        %v1181 = vand.u32 2147483647, %v1053
        %v1182 = vand.u32 2147483647, %v1054
        %v1183 = vand.u32 2147483647, %v1055
        %v1184 = vsub.f32 1.0, %v1056
        %v1185 = vsub.f32 1.0, %v1057
        %v1186 = vsub.f32 1.0, %v1058
        %v1187 = vsub.f32 1.0, %v1059
        %v1188 = vsub.f32 1.0, %v1060
        %v1189 = vsub.f32 1.0, %v1061
        %v1190 = vsub.f32 1.0, %v1062
        %v1191 = vsub.f32 1.0, %v1063
        %v1192 = vsub.f32 1.0, %v1064
        %v1193 = vsub.f32 1.0, %v1065
        %v1194 = vsub.f32 1.0, %v1066
        %v1195 = vsub.f32 1.0, %v1067
        %v1196 = vsub.f32 1.0, %v1068
        %v1197 = vsub.f32 1.0, %v1069
        %v1198 = vsub.f32 1.0, %v1070
        %v1199 = vsub.f32 1.0, %v1071
        %v1200 = vsub.f32 1.0, %v1072
        %v1201 = vsub.f32 1.0, %v1073
        %v1202 = vsub.f32 1.0, %v1074
        %v1203 = vsub.f32 1.0, %v1075
        %v1204 = vsub.f32 1.0, %v1076
        %v1205 = vsub.f32 1.0, %v1077
        %v1206 = vsub.f32 1.0, %v1078
        %v1207 = vsub.f32 1.0, %v1079
        %v1208 = vsub.f32 1.0, %v1080
        %v1209 = vsub.f32 1.0, %v1081
        %v1210 = vsub.f32 1.0, %v1082
        %v1211 = vsub.f32 1.0, %v1083
        %v1212 = vsub.f32 1.0, %v1084
        %v1213 = vsub.f32 1.0, %v1085
        %v1214 = vsub.f32 1.0, %v1086
        %v1215 = vsub.f32 1.0, %v1087
        %v1216 = vsub.f32 1.0, %v1088
        %v1217 = vsub.f32 1.0, %v1089
        %v1218 = vsub.f32 1.0, %v1090
        %v1219 = vsub.f32 1.0, %v1091
        %v1220 = vsub.f32 1.0, %v1092
        %v1221 = vsub.f32 1.0, %v1093
        %v1222 = vsub.f32 1.0, %v1094
        %v1223 = vsub.f32 1.0, %v1095
        %v1224 = vsub.f32 1.0, %v1096
        %v1225 = vsub.f32 1.0, %v1097
        %v1226 = vsub.f32 1.0, %v1098
        %v1227 = vsub.f32 1.0, %v1099
        %v1228 = vsub.f32 1.0, %v1100
        %v1229 = vsub.f32 1.0, %v1101
        %v1230 = vsub.f32 1.0, %v1102
        %v1231 = vsub.f32 1.0, %v1103
        %v1232 = vsub.f32 1.0, %v1104
        %v1233 = vsub.f32 1.0, %v1105
        %v1234 = vsub.f32 1.0, %v1106
        %v1235 = vsub.f32 1.0, %v1107
        %v1236 = vsub.f32 1.0, %v1108
        %v1237 = vsub.f32 1.0, %v1109
        %v1238 = vsub.f32 1.0, %v1110
        %v1239 = vsub.f32 1.0, %v1111
        %v1240 = vsub.f32 1.0, %v1112
        %v1241 = vsub.f32 1.0, %v1113
        %v1242 = vsub.f32 1.0, %v1114
        %v1243 = vsub.f32 1.0, %v1115
        %v1244 = vsub.f32 1.0, %v1116
        %v1245 = vsub.f32 1.0, %v1117
        %v1246 = vsub.f32 1.0, %v1118
        %v1247 = vsub.f32 1.0, %v1119
        %v1248 = vsub.f32 1.0, %v1120
        %v1249 = vsub.f32 1.0, %v1121
        %v1250 = vsub.f32 1.0, %v1122
        %v1251 = vsub.f32 1.0, %v1123
        %v1252 = vsub.f32 1.0, %v1124
        %v1253 = vsub.f32 1.0, %v1125
        %v1254 = vsub.f32 1.0, %v1126
        %v1255 = vsub.f32 1.0, %v1127
        %v1256 = vsub.f32 1.0, %v1128
        %v1257 = vsub.f32 1.0, %v1129
        %v1258 = vsub.f32 1.0, %v1130
        %v1259 = vsub.f32 1.0, %v1131
        %v1260 = vsub.f32 1.0, %v1132
        %v1261 = vsub.f32 1.0, %v1133
        %v1262 = vsub.f32 1.0, %v1134
        %v1263 = vsub.f32 1.0, %v1135
        %v1264 = vsub.f32 1.0, %v1136
        %v1265 = vsub.f32 1.0, %v1137
        %v1266 = vsub.f32 1.0, %v1138
        %v1267 = vsub.f32 1.0, %v1139
        %v1268 = vsub.f32 1.0, %v1140
        %v1269 = vsub.f32 1.0, %v1141
        %v1270 = vsub.f32 1.0, %v1142
        %v1271 = vsub.f32 1.0, %v1143
        %v1272 = vsub.f32 1.0, %v1144
        %v1273 = vsub.f32 1.0, %v1145
        %v1274 = vsub.f32 1.0, %v1146
        %v1275 = vsub.f32 1.0, %v1147
        %v1276 = vsub.f32 1.0, %v1148
        %v1277 = vsub.f32 1.0, %v1149
        %v1278 = vsub.f32 1.0, %v1150
        %v1279 = vsub.f32 1.0, %v1151
        %v1280 = vsub.f32 1.0, %v1152
        %v1281 = vsub.f32 1.0, %v1153
        %v1282 = vsub.f32 1.0, %v1154
        %v1283 = vsub.f32 1.0, %v1155
        %v1284 = vsub.f32 1.0, %v1156
        %v1285 = vsub.f32 1.0, %v1157
        %v1286 = vsub.f32 1.0, %v1158
        %v1287 = vsub.f32 1.0, %v1159
        %v1288 = vsub.f32 1.0, %v1160
        %v1289 = vsub.f32 1.0, %v1161
        %v1290 = vsub.f32 1.0, %v1162
        %v1291 = vsub.f32 1.0, %v1163
        %v1292 = vsub.f32 1.0, %v1164
        %v1293 = vsub.f32 1.0, %v1165
        %v1294 = vsub.f32 1.0, %v1166
        %v1295 = vsub.f32 1.0, %v1167
        %v1296 = vsub.f32 1.0, %v1168
        %v1297 = vsub.f32 1.0, %v1169
        %v1298 = vsub.f32 1.0, %v1170
        %v1299 = vsub.f32 1.0, %v1171
        %v1300 = vsub.f32 1.0, %v1172
        %v1301 = vsub.f32 1.0, %v1173
        %v1302 = vsub.f32 1.0, %v1174
        %v1303 = vsub.f32 1.0, %v1175
        %v1304 = vsub.f32 1.0, %v1176
        %v1305 = vsub.f32 1.0, %v1177
        %v1306 = vsub.f32 1.0, %v1178
        %v1307 = vsub.f32 1.0, %v1179
        %v1308 = vsub.f32 1.0, %v1180
        %v1309 = vsub.f32 1.0, %v1181
        %v1310 = vsub.f32 1.0, %v1182
        %v1311 = vsub.f32 1.0, %v1183
        %v1312 = vmax.f32 %v1184, 0.0
        %v1313 = vmax.f32 %v1185, 0.0
        %v1314 = vmax.f32 %v1186, 0.0
        %v1315 = vmax.f32 %v1187, 0.0
        %v1316 = vmax.f32 %v1188, 0.0
        %v1317 = vmax.f32 %v1189, 0.0
        %v1318 = vmax.f32 %v1190, 0.0
        %v1319 = vmax.f32 %v1191, 0.0
        %v1320 = vmax.f32 %v1192, 0.0
        %v1321 = vmax.f32 %v1193, 0.0
        %v1322 = vmax.f32 %v1194, 0.0
        %v1323 = vmax.f32 %v1195, 0.0
        %v1324 = vmax.f32 %v1196, 0.0
        %v1325 = vmax.f32 %v1197, 0.0
        %v1326 = vmax.f32 %v1198, 0.0
        %v1327 = vmax.f32 %v1199, 0.0
        %v1328 = vmax.f32 %v1200, 0.0
        %v1329 = vmax.f32 %v1201, 0.0
        %v1330 = vmax.f32 %v1202, 0.0
        %v1331 = vmax.f32 %v1203, 0.0
        %v1332 = vmax.f32 %v1204, 0.0
        %v1333 = vmax.f32 %v1205, 0.0
        %v1334 = vmax.f32 %v1206, 0.0
        %v1335 = vmax.f32 %v1207, 0.0
        %v1336 = vmax.f32 %v1208, 0.0
        %v1337 = vmax.f32 %v1209, 0.0
        %v1338 = vmax.f32 %v1210, 0.0
        %v1339 = vmax.f32 %v1211, 0.0
        %v1340 = vmax.f32 %v1212, 0.0
        %v1341 = vmax.f32 %v1213, 0.0
        %v1342 = vmax.f32 %v1214, 0.0
        %v1343 = vmax.f32 %v1215, 0.0
        %v1344 = vmax.f32 %v1216, 0.0
        %v1345 = vmax.f32 %v1217, 0.0
        %v1346 = vmax.f32 %v1218, 0.0
        %v1347 = vmax.f32 %v1219, 0.0
        %v1348 = vmax.f32 %v1220, 0.0
        %v1349 = vmax.f32 %v1221, 0.0
        %v1350 = vmax.f32 %v1222, 0.0
        %v1351 = vmax.f32 %v1223, 0.0
        %v1352 = vmax.f32 %v1224, 0.0
        %v1353 = vmax.f32 %v1225, 0.0
        %v1354 = vmax.f32 %v1226, 0.0
        %v1355 = vmax.f32 %v1227, 0.0
        %v1356 = vmax.f32 %v1228, 0.0
        %v1357 = vmax.f32 %v1229, 0.0
        %v1358 = vmax.f32 %v1230, 0.0
        %v1359 = vmax.f32 %v1231, 0.0
        %v1360 = vmax.f32 %v1232, 0.0
        %v1361 = vmax.f32 %v1233, 0.0
        %v1362 = vmax.f32 %v1234, 0.0
        %v1363 = vmax.f32 %v1235, 0.0
        %v1364 = vmax.f32 %v1236, 0.0
        %v1365 = vmax.f32 %v1237, 0.0
        %v1366 = vmax.f32 %v1238, 0.0
        %v1367 = vmax.f32 %v1239, 0.0
        %v1368 = vmax.f32 %v1240, 0.0
        %v1369 = vmax.f32 %v1241, 0.0
        %v1370 = vmax.f32 %v1242, 0.0
        %v1371 = vmax.f32 %v1243, 0.0
        %v1372 = vmax.f32 %v1244, 0.0
        %v1373 = vmax.f32 %v1245, 0.0
        %v1374 = vmax.f32 %v1246, 0.0
        %v1375 = vmax.f32 %v1247, 0.0
        %v1376 = vmax.f32 %v1248, 0.0
        %v1377 = vmax.f32 %v1249, 0.0
        %v1378 = vmax.f32 %v1250, 0.0
        %v1379 = vmax.f32 %v1251, 0.0
        %v1380 = vmax.f32 %v1252, 0.0
        %v1381 = vmax.f32 %v1253, 0.0
        %v1382 = vmax.f32 %v1254, 0.0
        %v1383 = vmax.f32 %v1255, 0.0
        %v1384 = vmax.f32 %v1256, 0.0
        %v1385 = vmax.f32 %v1257, 0.0
        %v1386 = vmax.f32 %v1258, 0.0
        %v1387 = vmax.f32 %v1259, 0.0
        %v1388 = vmax.f32 %v1260, 0.0
        %v1389 = vmax.f32 %v1261, 0.0
        %v1390 = vmax.f32 %v1262, 0.0
        %v1391 = vmax.f32 %v1263, 0.0
        %v1392 = vmax.f32 %v1264, 0.0
        %v1393 = vmax.f32 %v1265, 0.0
        %v1394 = vmax.f32 %v1266, 0.0
        %v1395 = vmax.f32 %v1267, 0.0
        %v1396 = vmax.f32 %v1268, 0.0
        %v1397 = vmax.f32 %v1269, 0.0
        %v1398 = vmax.f32 %v1270, 0.0
        %v1399 = vmax.f32 %v1271, 0.0
        %v1400 = vmax.f32 %v1272, 0.0
        %v1401 = vmax.f32 %v1273, 0.0
        %v1402 = vmax.f32 %v1274, 0.0
        %v1403 = vmax.f32 %v1275, 0.0
        %v1404 = vmax.f32 %v1276, 0.0
        %v1405 = vmax.f32 %v1277, 0.0
        %v1406 = vmax.f32 %v1278, 0.0
        %v1407 = vmax.f32 %v1279, 0.0
        %v1408 = vmax.f32 %v1280, 0.0
        %v1409 = vmax.f32 %v1281, 0.0
        %v1410 = vmax.f32 %v1282, 0.0
        %v1411 = vmax.f32 %v1283, 0.0
        %v1412 = vmax.f32 %v1284, 0.0
        %v1413 = vmax.f32 %v1285, 0.0
        %v1414 = vmax.f32 %v1286, 0.0
        %v1415 = vmax.f32 %v1287, 0.0
        %v1416 = vmax.f32 %v1288, 0.0
        %v1417 = vmax.f32 %v1289, 0.0
        %v1418 = vmax.f32 %v1290, 0.0
        %v1419 = vmax.f32 %v1291, 0.0
        %v1420 = vmax.f32 %v1292, 0.0
        %v1421 = vmax.f32 %v1293, 0.0
        %v1422 = vmax.f32 %v1294, 0.0
        %v1423 = vmax.f32 %v1295, 0.0
        %v1424 = vmax.f32 %v1296, 0.0
        %v1425 = vmax.f32 %v1297, 0.0
        %v1426 = vmax.f32 %v1298, 0.0
        %v1427 = vmax.f32 %v1299, 0.0
        %v1428 = vmax.f32 %v1300, 0.0
        %v1429 = vmax.f32 %v1301, 0.0
        %v1430 = vmax.f32 %v1302, 0.0
        %v1431 = vmax.f32 %v1303, 0.0
        %v1432 = vmax.f32 %v1304, 0.0
        %v1433 = vmax.f32 %v1305, 0.0
        %v1434 = vmax.f32 %v1306, 0.0
        %v1435 = vmax.f32 %v1307, 0.0
        %v1436 = vmax.f32 %v1308, 0.0
        %v1437 = vmax.f32 %v1309, 0.0
        %v1438 = vmax.f32 %v1310, 0.0
        %v1439 = vmax.f32 %v1311, 0.0
        %1440 = vset.pattern.permute.xlu0 2
        %1441 = vperm.xlu0 %1440, %v459
        %v1442 = vpop.permute.xlu0 %1441
        %1444 = vset.pattern.permute.xlu0 2
        %1445 = vperm.xlu0 %1444, %v460
        %v1446 = vpop.permute.xlu0 %1445
        %1448 = vset.pattern.permute.xlu0 2
        %1449 = vperm.xlu0 %1448, %v461
        %v1450 = vpop.permute.xlu0 %1449
        %1452 = vset.pattern.permute.xlu0 2
        %1453 = vperm.xlu0 %1452, %v462
        %v1454 = vpop.permute.xlu0 %1453
        %1456 = vset.pattern.permute.xlu0 2
        %1457 = vperm.xlu0 %1456, %v463
        %v1458 = vpop.permute.xlu0 %1457
        %1460 = vset.pattern.permute.xlu0 2
        %1461 = vperm.xlu0 %1460, %v464
        %v1462 = vpop.permute.xlu0 %1461
        %1464 = vset.pattern.permute.xlu0 2
        %1465 = vperm.xlu0 %1464, %v465
        %v1466 = vpop.permute.xlu0 %1465
        %1468 = vset.pattern.permute.xlu0 2
        %1469 = vperm.xlu0 %1468, %v466
        %v1470 = vpop.permute.xlu0 %1469
        %1472 = vset.pattern.permute.xlu0 2
        %1473 = vperm.xlu0 %1472, %v467
        %v1474 = vpop.permute.xlu0 %1473
        %1476 = vset.pattern.permute.xlu0 2
        %1477 = vperm.xlu0 %1476, %v468
        %v1478 = vpop.permute.xlu0 %1477
        %1480 = vset.pattern.permute.xlu0 2
        %1481 = vperm.xlu0 %1480, %v469
        %v1482 = vpop.permute.xlu0 %1481
        %1484 = vset.pattern.permute.xlu0 2
        %1485 = vperm.xlu0 %1484, %v470
        %v1486 = vpop.permute.xlu0 %1485
        %1488 = vset.pattern.permute.xlu0 2
        %1489 = vperm.xlu0 %1488, %v471
        %v1490 = vpop.permute.xlu0 %1489
        %1492 = vset.pattern.permute.xlu0 2
        %1493 = vperm.xlu0 %1492, %v472
        %v1494 = vpop.permute.xlu0 %1493
        %1496 = vset.pattern.permute.xlu0 2
        %1497 = vperm.xlu0 %1496, %v473
        %v1498 = vpop.permute.xlu0 %1497
        %1500 = vset.pattern.permute.xlu0 2
        %1501 = vperm.xlu0 %1500, %v474
        %v1502 = vpop.permute.xlu0 %1501
        %1504 = vset.pattern.permute.xlu0 2
        %1505 = vperm.xlu0 %1504, %v475
        %v1506 = vpop.permute.xlu0 %1505
        %1508 = vset.pattern.permute.xlu0 2
        %1509 = vperm.xlu0 %1508, %v476
        %v1510 = vpop.permute.xlu0 %1509
        %1512 = vset.pattern.permute.xlu0 2
        %1513 = vperm.xlu0 %1512, %v477
        %v1514 = vpop.permute.xlu0 %1513
        %1516 = vset.pattern.permute.xlu0 2
        %1517 = vperm.xlu0 %1516, %v478
        %v1518 = vpop.permute.xlu0 %1517
        %1520 = vset.pattern.permute.xlu0 2
        %1521 = vperm.xlu0 %1520, %v479
        %v1522 = vpop.permute.xlu0 %1521
        %1524 = vset.pattern.permute.xlu0 2
        %1525 = vperm.xlu0 %1524, %v480
        %v1526 = vpop.permute.xlu0 %1525
        %1528 = vset.pattern.permute.xlu0 2
        %1529 = vperm.xlu0 %1528, %v481
        %v1530 = vpop.permute.xlu0 %1529
        %1532 = vset.pattern.permute.xlu0 2
        %1533 = vperm.xlu0 %1532, %v482
        %v1534 = vpop.permute.xlu0 %1533
        %1536 = vset.pattern.permute.xlu0 2
        %1537 = vperm.xlu0 %1536, %v483
        %v1538 = vpop.permute.xlu0 %1537
        %1540 = vset.pattern.permute.xlu0 2
        %1541 = vperm.xlu0 %1540, %v484
        %v1542 = vpop.permute.xlu0 %1541
        %1544 = vset.pattern.permute.xlu0 2
        %1545 = vperm.xlu0 %1544, %v485
        %v1546 = vpop.permute.xlu0 %1545
        %1548 = vset.pattern.permute.xlu0 2
        %1549 = vperm.xlu0 %1548, %v486
        %v1550 = vpop.permute.xlu0 %1549
        %1552 = vset.pattern.permute.xlu0 2
        %1553 = vperm.xlu0 %1552, %v487
        %v1554 = vpop.permute.xlu0 %1553
        %1556 = vset.pattern.permute.xlu0 2
        %1557 = vperm.xlu0 %1556, %v488
        %v1558 = vpop.permute.xlu0 %1557
        %1560 = vset.pattern.permute.xlu0 2
        %1561 = vperm.xlu0 %1560, %v489
        %v1562 = vpop.permute.xlu0 %1561
        %1564 = vset.pattern.permute.xlu0 2
        %1565 = vperm.xlu0 %1564, %v490
        %v1566 = vpop.permute.xlu0 %1565
        %1568 = vset.pattern.permute.xlu0 2
        %1569 = vperm.xlu0 %1568, %v491
        %v1570 = vpop.permute.xlu0 %1569
        %1572 = vset.pattern.permute.xlu0 2
        %1573 = vperm.xlu0 %1572, %v492
        %v1574 = vpop.permute.xlu0 %1573
        %1576 = vset.pattern.permute.xlu0 2
        %1577 = vperm.xlu0 %1576, %v493
        %v1578 = vpop.permute.xlu0 %1577
        %1580 = vset.pattern.permute.xlu0 2
        %1581 = vperm.xlu0 %1580, %v494
        %v1582 = vpop.permute.xlu0 %1581
        %1584 = vset.pattern.permute.xlu0 2
        %1585 = vperm.xlu0 %1584, %v495
        %v1586 = vpop.permute.xlu0 %1585
        %1588 = vset.pattern.permute.xlu0 2
        %1589 = vperm.xlu0 %1588, %v496
        %v1590 = vpop.permute.xlu0 %1589
        %1592 = vset.pattern.permute.xlu0 2
        %1593 = vperm.xlu0 %1592, %v497
        %v1594 = vpop.permute.xlu0 %1593
        %1596 = vset.pattern.permute.xlu0 2
        %1597 = vperm.xlu0 %1596, %v498
        %v1598 = vpop.permute.xlu0 %1597
        %1600 = vset.pattern.permute.xlu0 2
        %1601 = vperm.xlu0 %1600, %v499
        %v1602 = vpop.permute.xlu0 %1601
        %1604 = vset.pattern.permute.xlu0 2
        %1605 = vperm.xlu0 %1604, %v500
        %v1606 = vpop.permute.xlu0 %1605
        %1608 = vset.pattern.permute.xlu0 2
        %1609 = vperm.xlu0 %1608, %v501
        %v1610 = vpop.permute.xlu0 %1609
        %1612 = vset.pattern.permute.xlu0 2
        %1613 = vperm.xlu0 %1612, %v502
        %v1614 = vpop.permute.xlu0 %1613
        %1616 = vset.pattern.permute.xlu0 2
        %1617 = vperm.xlu0 %1616, %v503
        %v1618 = vpop.permute.xlu0 %1617
        %1620 = vset.pattern.permute.xlu0 2
        %1621 = vperm.xlu0 %1620, %v504
        %v1622 = vpop.permute.xlu0 %1621
        %1624 = vset.pattern.permute.xlu0 2
        %1625 = vperm.xlu0 %1624, %v505
        %v1626 = vpop.permute.xlu0 %1625
        %1628 = vset.pattern.permute.xlu0 2
        %1629 = vperm.xlu0 %1628, %v506
        %v1630 = vpop.permute.xlu0 %1629
        %1632 = vset.pattern.permute.xlu0 2
        %1633 = vperm.xlu0 %1632, %v507
        %v1634 = vpop.permute.xlu0 %1633
        %1636 = vset.pattern.permute.xlu0 2
        %1637 = vperm.xlu0 %1636, %v508
        %v1638 = vpop.permute.xlu0 %1637
        %1640 = vset.pattern.permute.xlu0 2
        %1641 = vperm.xlu0 %1640, %v509
        %v1642 = vpop.permute.xlu0 %1641
        %1644 = vset.pattern.permute.xlu0 2
        %1645 = vperm.xlu0 %1644, %v510
        %v1646 = vpop.permute.xlu0 %1645
        %1648 = vset.pattern.permute.xlu0 2
        %1649 = vperm.xlu0 %1648, %v511
        %v1650 = vpop.permute.xlu0 %1649
        %1652 = vset.pattern.permute.xlu0 2
        %1653 = vperm.xlu0 %1652, %v512
        %v1654 = vpop.permute.xlu0 %1653
        %1656 = vset.pattern.permute.xlu0 2
        %1657 = vperm.xlu0 %1656, %v513
        %v1658 = vpop.permute.xlu0 %1657
        %1660 = vset.pattern.permute.xlu0 2
        %1661 = vperm.xlu0 %1660, %v514
        %v1662 = vpop.permute.xlu0 %1661
        %1664 = vset.pattern.permute.xlu0 2
        %1665 = vperm.xlu0 %1664, %v515
        %v1666 = vpop.permute.xlu0 %1665
        %1668 = vset.pattern.permute.xlu0 2
        %1669 = vperm.xlu0 %1668, %v516
        %v1670 = vpop.permute.xlu0 %1669
        %1672 = vset.pattern.permute.xlu0 2
        %1673 = vperm.xlu0 %1672, %v517
        %v1674 = vpop.permute.xlu0 %1673
        %1676 = vset.pattern.permute.xlu0 2
        %1677 = vperm.xlu0 %1676, %v518
        %v1678 = vpop.permute.xlu0 %1677
        %1680 = vset.pattern.permute.xlu0 2
        %1681 = vperm.xlu0 %1680, %v519
        %v1682 = vpop.permute.xlu0 %1681
        %1684 = vset.pattern.permute.xlu0 2
        %1685 = vperm.xlu0 %1684, %v520
        %v1686 = vpop.permute.xlu0 %1685
        %1688 = vset.pattern.permute.xlu0 2
        %1689 = vperm.xlu0 %1688, %v521
        %v1690 = vpop.permute.xlu0 %1689
        %1692 = vset.pattern.permute.xlu0 2
        %1693 = vperm.xlu0 %1692, %v522
        %v1694 = vpop.permute.xlu0 %1693
        %v1696 = vsub.f32 %v1442, %v602
        %v1697 = vsub.f32 %v1442, %v603
        %v1698 = vsub.f32 %v1446, %v602
        %v1699 = vsub.f32 %v1446, %v603
        %v1700 = vsub.f32 %v1450, %v602
        %v1701 = vsub.f32 %v1450, %v603
        %v1702 = vsub.f32 %v1454, %v602
        %v1703 = vsub.f32 %v1454, %v603
        %v1704 = vsub.f32 %v1458, %v602
        %v1705 = vsub.f32 %v1458, %v603
        %v1706 = vsub.f32 %v1462, %v602
        %v1707 = vsub.f32 %v1462, %v603
        %v1708 = vsub.f32 %v1466, %v602
        %v1709 = vsub.f32 %v1466, %v603
        %v1710 = vsub.f32 %v1470, %v602
        %v1711 = vsub.f32 %v1470, %v603
        %v1712 = vsub.f32 %v1474, %v602
        %v1713 = vsub.f32 %v1474, %v603
        %v1714 = vsub.f32 %v1478, %v602
        %v1715 = vsub.f32 %v1478, %v603
        %v1716 = vsub.f32 %v1482, %v602
        %v1717 = vsub.f32 %v1482, %v603
        %v1718 = vsub.f32 %v1486, %v602
        %v1719 = vsub.f32 %v1486, %v603
        %v1720 = vsub.f32 %v1490, %v602
        %v1721 = vsub.f32 %v1490, %v603
        %v1722 = vsub.f32 %v1494, %v602
        %v1723 = vsub.f32 %v1494, %v603
        %v1724 = vsub.f32 %v1498, %v602
        %v1725 = vsub.f32 %v1498, %v603
        %v1726 = vsub.f32 %v1502, %v602
        %v1727 = vsub.f32 %v1502, %v603
        %v1728 = vsub.f32 %v1506, %v602
        %v1729 = vsub.f32 %v1506, %v603
        %v1730 = vsub.f32 %v1510, %v602
        %v1731 = vsub.f32 %v1510, %v603
        %v1732 = vsub.f32 %v1514, %v602
        %v1733 = vsub.f32 %v1514, %v603
        %v1734 = vsub.f32 %v1518, %v602
        %v1735 = vsub.f32 %v1518, %v603
        %v1736 = vsub.f32 %v1522, %v602
        %v1737 = vsub.f32 %v1522, %v603
        %v1738 = vsub.f32 %v1526, %v602
        %v1739 = vsub.f32 %v1526, %v603
        %v1740 = vsub.f32 %v1530, %v602
        %v1741 = vsub.f32 %v1530, %v603
        %v1742 = vsub.f32 %v1534, %v602
        %v1743 = vsub.f32 %v1534, %v603
        %v1744 = vsub.f32 %v1538, %v602
        %v1745 = vsub.f32 %v1538, %v603
        %v1746 = vsub.f32 %v1542, %v602
        %v1747 = vsub.f32 %v1542, %v603
        %v1748 = vsub.f32 %v1546, %v602
        %v1749 = vsub.f32 %v1546, %v603
        %v1750 = vsub.f32 %v1550, %v602
        %v1751 = vsub.f32 %v1550, %v603
        %v1752 = vsub.f32 %v1554, %v602
        %v1753 = vsub.f32 %v1554, %v603
        %v1754 = vsub.f32 %v1558, %v602
        %v1755 = vsub.f32 %v1558, %v603
        %v1756 = vsub.f32 %v1562, %v602
        %v1757 = vsub.f32 %v1562, %v603
        %v1758 = vsub.f32 %v1566, %v602
        %v1759 = vsub.f32 %v1566, %v603
        %v1760 = vsub.f32 %v1570, %v602
        %v1761 = vsub.f32 %v1570, %v603
        %v1762 = vsub.f32 %v1574, %v602
        %v1763 = vsub.f32 %v1574, %v603
        %v1764 = vsub.f32 %v1578, %v602
        %v1765 = vsub.f32 %v1578, %v603
        %v1766 = vsub.f32 %v1582, %v602
        %v1767 = vsub.f32 %v1582, %v603
        %v1768 = vsub.f32 %v1586, %v602
        %v1769 = vsub.f32 %v1586, %v603
        %v1770 = vsub.f32 %v1590, %v602
        %v1771 = vsub.f32 %v1590, %v603
        %v1772 = vsub.f32 %v1594, %v602
        %v1773 = vsub.f32 %v1594, %v603
        %v1774 = vsub.f32 %v1598, %v602
        %v1775 = vsub.f32 %v1598, %v603
        %v1776 = vsub.f32 %v1602, %v602
        %v1777 = vsub.f32 %v1602, %v603
        %v1778 = vsub.f32 %v1606, %v602
        %v1779 = vsub.f32 %v1606, %v603
        %v1780 = vsub.f32 %v1610, %v602
        %v1781 = vsub.f32 %v1610, %v603
        %v1782 = vsub.f32 %v1614, %v602
        %v1783 = vsub.f32 %v1614, %v603
        %v1784 = vsub.f32 %v1618, %v602
        %v1785 = vsub.f32 %v1618, %v603
        %v1786 = vsub.f32 %v1622, %v602
        %v1787 = vsub.f32 %v1622, %v603
        %v1788 = vsub.f32 %v1626, %v602
        %v1789 = vsub.f32 %v1626, %v603
        %v1790 = vsub.f32 %v1630, %v602
        %v1791 = vsub.f32 %v1630, %v603
        %v1792 = vsub.f32 %v1634, %v602
        %v1793 = vsub.f32 %v1634, %v603
        %v1794 = vsub.f32 %v1638, %v602
        %v1795 = vsub.f32 %v1638, %v603
        %v1796 = vsub.f32 %v1642, %v602
        %v1797 = vsub.f32 %v1642, %v603
        %v1798 = vsub.f32 %v1646, %v602
        %v1799 = vsub.f32 %v1646, %v603
        %v1800 = vsub.f32 %v1650, %v602
        %v1801 = vsub.f32 %v1650, %v603
        %v1802 = vsub.f32 %v1654, %v602
        %v1803 = vsub.f32 %v1654, %v603
        %v1804 = vsub.f32 %v1658, %v602
        %v1805 = vsub.f32 %v1658, %v603
        %v1806 = vsub.f32 %v1662, %v602
        %v1807 = vsub.f32 %v1662, %v603
        %v1808 = vsub.f32 %v1666, %v602
        %v1809 = vsub.f32 %v1666, %v603
        %v1810 = vsub.f32 %v1670, %v602
        %v1811 = vsub.f32 %v1670, %v603
        %v1812 = vsub.f32 %v1674, %v602
        %v1813 = vsub.f32 %v1674, %v603
        %v1814 = vsub.f32 %v1678, %v602
        %v1815 = vsub.f32 %v1678, %v603
        %v1816 = vsub.f32 %v1682, %v602
        %v1817 = vsub.f32 %v1682, %v603
        %v1818 = vsub.f32 %v1686, %v602
        %v1819 = vsub.f32 %v1686, %v603
        %v1820 = vsub.f32 %v1690, %v602
        %v1821 = vsub.f32 %v1690, %v603
        %v1822 = vsub.f32 %v1694, %v602
        %v1823 = vsub.f32 %v1694, %v603
        %v1824 = vand.u32 2147483647, %v1696
        %v1825 = vand.u32 2147483647, %v1697
        %v1826 = vand.u32 2147483647, %v1698
        %v1827 = vand.u32 2147483647, %v1699
        %v1828 = vand.u32 2147483647, %v1700
        %v1829 = vand.u32 2147483647, %v1701
        %v1830 = vand.u32 2147483647, %v1702
        %v1831 = vand.u32 2147483647, %v1703
        %v1832 = vand.u32 2147483647, %v1704
        %v1833 = vand.u32 2147483647, %v1705
        %v1834 = vand.u32 2147483647, %v1706
        %v1835 = vand.u32 2147483647, %v1707
        %v1836 = vand.u32 2147483647, %v1708
        %v1837 = vand.u32 2147483647, %v1709
        %v1838 = vand.u32 2147483647, %v1710
        %v1839 = vand.u32 2147483647, %v1711
        %v1840 = vand.u32 2147483647, %v1712
        %v1841 = vand.u32 2147483647, %v1713
        %v1842 = vand.u32 2147483647, %v1714
        %v1843 = vand.u32 2147483647, %v1715
        %v1844 = vand.u32 2147483647, %v1716
        %v1845 = vand.u32 2147483647, %v1717
        %v1846 = vand.u32 2147483647, %v1718
        %v1847 = vand.u32 2147483647, %v1719
        %v1848 = vand.u32 2147483647, %v1720
        %v1849 = vand.u32 2147483647, %v1721
        %v1850 = vand.u32 2147483647, %v1722
        %v1851 = vand.u32 2147483647, %v1723
        %v1852 = vand.u32 2147483647, %v1724
        %v1853 = vand.u32 2147483647, %v1725
        %v1854 = vand.u32 2147483647, %v1726
        %v1855 = vand.u32 2147483647, %v1727
        %v1856 = vand.u32 2147483647, %v1728
        %v1857 = vand.u32 2147483647, %v1729
        %v1858 = vand.u32 2147483647, %v1730
        %v1859 = vand.u32 2147483647, %v1731
        %v1860 = vand.u32 2147483647, %v1732
        %v1861 = vand.u32 2147483647, %v1733
        %v1862 = vand.u32 2147483647, %v1734
        %v1863 = vand.u32 2147483647, %v1735
        %v1864 = vand.u32 2147483647, %v1736
        %v1865 = vand.u32 2147483647, %v1737
        %v1866 = vand.u32 2147483647, %v1738
        %v1867 = vand.u32 2147483647, %v1739
        %v1868 = vand.u32 2147483647, %v1740
        %v1869 = vand.u32 2147483647, %v1741
        %v1870 = vand.u32 2147483647, %v1742
        %v1871 = vand.u32 2147483647, %v1743
        %v1872 = vand.u32 2147483647, %v1744
        %v1873 = vand.u32 2147483647, %v1745
        %v1874 = vand.u32 2147483647, %v1746
        %v1875 = vand.u32 2147483647, %v1747
        %v1876 = vand.u32 2147483647, %v1748
        %v1877 = vand.u32 2147483647, %v1749
        %v1878 = vand.u32 2147483647, %v1750
        %v1879 = vand.u32 2147483647, %v1751
        %v1880 = vand.u32 2147483647, %v1752
        %v1881 = vand.u32 2147483647, %v1753
        %v1882 = vand.u32 2147483647, %v1754
        %v1883 = vand.u32 2147483647, %v1755
        %v1884 = vand.u32 2147483647, %v1756
        %v1885 = vand.u32 2147483647, %v1757
        %v1886 = vand.u32 2147483647, %v1758
        %v1887 = vand.u32 2147483647, %v1759
        %v1888 = vand.u32 2147483647, %v1760
        %v1889 = vand.u32 2147483647, %v1761
        %v1890 = vand.u32 2147483647, %v1762
        %v1891 = vand.u32 2147483647, %v1763
        %v1892 = vand.u32 2147483647, %v1764
        %v1893 = vand.u32 2147483647, %v1765
        %v1894 = vand.u32 2147483647, %v1766
        %v1895 = vand.u32 2147483647, %v1767
        %v1896 = vand.u32 2147483647, %v1768
        %v1897 = vand.u32 2147483647, %v1769
        %v1898 = vand.u32 2147483647, %v1770
        %v1899 = vand.u32 2147483647, %v1771
        %v1900 = vand.u32 2147483647, %v1772
        %v1901 = vand.u32 2147483647, %v1773
        %v1902 = vand.u32 2147483647, %v1774
        %v1903 = vand.u32 2147483647, %v1775
        %v1904 = vand.u32 2147483647, %v1776
        %v1905 = vand.u32 2147483647, %v1777
        %v1906 = vand.u32 2147483647, %v1778
        %v1907 = vand.u32 2147483647, %v1779
        %v1908 = vand.u32 2147483647, %v1780
        %v1909 = vand.u32 2147483647, %v1781
        %v1910 = vand.u32 2147483647, %v1782
        %v1911 = vand.u32 2147483647, %v1783
        %v1912 = vand.u32 2147483647, %v1784
        %v1913 = vand.u32 2147483647, %v1785
        %v1914 = vand.u32 2147483647, %v1786
        %v1915 = vand.u32 2147483647, %v1787
        %v1916 = vand.u32 2147483647, %v1788
        %v1917 = vand.u32 2147483647, %v1789
        %v1918 = vand.u32 2147483647, %v1790
        %v1919 = vand.u32 2147483647, %v1791
        %v1920 = vand.u32 2147483647, %v1792
        %v1921 = vand.u32 2147483647, %v1793
        %v1922 = vand.u32 2147483647, %v1794
        %v1923 = vand.u32 2147483647, %v1795
        %v1924 = vand.u32 2147483647, %v1796
        %v1925 = vand.u32 2147483647, %v1797
        %v1926 = vand.u32 2147483647, %v1798
        %v1927 = vand.u32 2147483647, %v1799
        %v1928 = vand.u32 2147483647, %v1800
        %v1929 = vand.u32 2147483647, %v1801
        %v1930 = vand.u32 2147483647, %v1802
        %v1931 = vand.u32 2147483647, %v1803
        %v1932 = vand.u32 2147483647, %v1804
        %v1933 = vand.u32 2147483647, %v1805
        %v1934 = vand.u32 2147483647, %v1806
        %v1935 = vand.u32 2147483647, %v1807
        %v1936 = vand.u32 2147483647, %v1808
        %v1937 = vand.u32 2147483647, %v1809
        %v1938 = vand.u32 2147483647, %v1810
        %v1939 = vand.u32 2147483647, %v1811
        %v1940 = vand.u32 2147483647, %v1812
        %v1941 = vand.u32 2147483647, %v1813
        %v1942 = vand.u32 2147483647, %v1814
        %v1943 = vand.u32 2147483647, %v1815
        %v1944 = vand.u32 2147483647, %v1816
        %v1945 = vand.u32 2147483647, %v1817
        %v1946 = vand.u32 2147483647, %v1818
        %v1947 = vand.u32 2147483647, %v1819
        %v1948 = vand.u32 2147483647, %v1820
        %v1949 = vand.u32 2147483647, %v1821
        %v1950 = vand.u32 2147483647, %v1822
        %v1951 = vand.u32 2147483647, %v1823
        %v1952 = vsub.f32 1.0, %v1824
        %v1953 = vsub.f32 1.0, %v1825
        %v1954 = vsub.f32 1.0, %v1826
        %v1955 = vsub.f32 1.0, %v1827
        %v1956 = vsub.f32 1.0, %v1828
        %v1957 = vsub.f32 1.0, %v1829
        %v1958 = vsub.f32 1.0, %v1830
        %v1959 = vsub.f32 1.0, %v1831
        %v1960 = vsub.f32 1.0, %v1832
        %v1961 = vsub.f32 1.0, %v1833
        %v1962 = vsub.f32 1.0, %v1834
        %v1963 = vsub.f32 1.0, %v1835
        %v1964 = vsub.f32 1.0, %v1836
        %v1965 = vsub.f32 1.0, %v1837
        %v1966 = vsub.f32 1.0, %v1838
        %v1967 = vsub.f32 1.0, %v1839
        %v1968 = vsub.f32 1.0, %v1840
        %v1969 = vsub.f32 1.0, %v1841
        %v1970 = vsub.f32 1.0, %v1842
        %v1971 = vsub.f32 1.0, %v1843
        %v1972 = vsub.f32 1.0, %v1844
        %v1973 = vsub.f32 1.0, %v1845
        %v1974 = vsub.f32 1.0, %v1846
        %v1975 = vsub.f32 1.0, %v1847
        %v1976 = vsub.f32 1.0, %v1848
        %v1977 = vsub.f32 1.0, %v1849
        %v1978 = vsub.f32 1.0, %v1850
        %v1979 = vsub.f32 1.0, %v1851
        %v1980 = vsub.f32 1.0, %v1852
        %v1981 = vsub.f32 1.0, %v1853
        %v1982 = vsub.f32 1.0, %v1854
        %v1983 = vsub.f32 1.0, %v1855
        %v1984 = vsub.f32 1.0, %v1856
        %v1985 = vsub.f32 1.0, %v1857
        %v1986 = vsub.f32 1.0, %v1858
        %v1987 = vsub.f32 1.0, %v1859
        %v1988 = vsub.f32 1.0, %v1860
        %v1989 = vsub.f32 1.0, %v1861
        %v1990 = vsub.f32 1.0, %v1862
        %v1991 = vsub.f32 1.0, %v1863
        %v1992 = vsub.f32 1.0, %v1864
        %v1993 = vsub.f32 1.0, %v1865
        %v1994 = vsub.f32 1.0, %v1866
        %v1995 = vsub.f32 1.0, %v1867
        %v1996 = vsub.f32 1.0, %v1868
        %v1997 = vsub.f32 1.0, %v1869
        %v1998 = vsub.f32 1.0, %v1870
        %v1999 = vsub.f32 1.0, %v1871
        %v2000 = vsub.f32 1.0, %v1872
        %v2001 = vsub.f32 1.0, %v1873
        %v2002 = vsub.f32 1.0, %v1874
        %v2003 = vsub.f32 1.0, %v1875
        %v2004 = vsub.f32 1.0, %v1876
        %v2005 = vsub.f32 1.0, %v1877
        %v2006 = vsub.f32 1.0, %v1878
        %v2007 = vsub.f32 1.0, %v1879
        %v2008 = vsub.f32 1.0, %v1880
        %v2009 = vsub.f32 1.0, %v1881
        %v2010 = vsub.f32 1.0, %v1882
        %v2011 = vsub.f32 1.0, %v1883
        %v2012 = vsub.f32 1.0, %v1884
        %v2013 = vsub.f32 1.0, %v1885
        %v2014 = vsub.f32 1.0, %v1886
        %v2015 = vsub.f32 1.0, %v1887
        %v2016 = vsub.f32 1.0, %v1888
        %v2017 = vsub.f32 1.0, %v1889
        %v2018 = vsub.f32 1.0, %v1890
        %v2019 = vsub.f32 1.0, %v1891
        %v2020 = vsub.f32 1.0, %v1892
        %v2021 = vsub.f32 1.0, %v1893
        %v2022 = vsub.f32 1.0, %v1894
        %v2023 = vsub.f32 1.0, %v1895
        %v2024 = vsub.f32 1.0, %v1896
        %v2025 = vsub.f32 1.0, %v1897
        %v2026 = vsub.f32 1.0, %v1898
        %v2027 = vsub.f32 1.0, %v1899
        %v2028 = vsub.f32 1.0, %v1900
        %v2029 = vsub.f32 1.0, %v1901
        %v2030 = vsub.f32 1.0, %v1902
        %v2031 = vsub.f32 1.0, %v1903
        %v2032 = vsub.f32 1.0, %v1904
        %v2033 = vsub.f32 1.0, %v1905
        %v2034 = vsub.f32 1.0, %v1906
        %v2035 = vsub.f32 1.0, %v1907
        %v2036 = vsub.f32 1.0, %v1908
        %v2037 = vsub.f32 1.0, %v1909
        %v2038 = vsub.f32 1.0, %v1910
        %v2039 = vsub.f32 1.0, %v1911
        %v2040 = vsub.f32 1.0, %v1912
        %v2041 = vsub.f32 1.0, %v1913
        %v2042 = vsub.f32 1.0, %v1914
        %v2043 = vsub.f32 1.0, %v1915
        %v2044 = vsub.f32 1.0, %v1916
        %v2045 = vsub.f32 1.0, %v1917
        %v2046 = vsub.f32 1.0, %v1918
        %v2047 = vsub.f32 1.0, %v1919
        %v2048 = vsub.f32 1.0, %v1920
        %v2049 = vsub.f32 1.0, %v1921
        %v2050 = vsub.f32 1.0, %v1922
        %v2051 = vsub.f32 1.0, %v1923
        %v2052 = vsub.f32 1.0, %v1924
        %v2053 = vsub.f32 1.0, %v1925
        %v2054 = vsub.f32 1.0, %v1926
        %v2055 = vsub.f32 1.0, %v1927
        %v2056 = vsub.f32 1.0, %v1928
        %v2057 = vsub.f32 1.0, %v1929
        %v2058 = vsub.f32 1.0, %v1930
        %v2059 = vsub.f32 1.0, %v1931
        %v2060 = vsub.f32 1.0, %v1932
        %v2061 = vsub.f32 1.0, %v1933
        %v2062 = vsub.f32 1.0, %v1934
        %v2063 = vsub.f32 1.0, %v1935
        %v2064 = vsub.f32 1.0, %v1936
        %v2065 = vsub.f32 1.0, %v1937
        %v2066 = vsub.f32 1.0, %v1938
        %v2067 = vsub.f32 1.0, %v1939
        %v2068 = vsub.f32 1.0, %v1940
        %v2069 = vsub.f32 1.0, %v1941
        %v2070 = vsub.f32 1.0, %v1942
        %v2071 = vsub.f32 1.0, %v1943
        %v2072 = vsub.f32 1.0, %v1944
        %v2073 = vsub.f32 1.0, %v1945
        %v2074 = vsub.f32 1.0, %v1946
        %v2075 = vsub.f32 1.0, %v1947
        %v2076 = vsub.f32 1.0, %v1948
        %v2077 = vsub.f32 1.0, %v1949
        %v2078 = vsub.f32 1.0, %v1950
        %v2079 = vsub.f32 1.0, %v1951
        %v2080 = vmax.f32 %v1952, 0.0
        %v2081 = vmax.f32 %v1953, 0.0
        %v2082 = vmax.f32 %v1954, 0.0
        %v2083 = vmax.f32 %v1955, 0.0
        %v2084 = vmax.f32 %v1956, 0.0
        %v2085 = vmax.f32 %v1957, 0.0
        %v2086 = vmax.f32 %v1958, 0.0
        %v2087 = vmax.f32 %v1959, 0.0
        %v2088 = vmax.f32 %v1960, 0.0
        %v2089 = vmax.f32 %v1961, 0.0
        %v2090 = vmax.f32 %v1962, 0.0
        %v2091 = vmax.f32 %v1963, 0.0
        %v2092 = vmax.f32 %v1964, 0.0
        %v2093 = vmax.f32 %v1965, 0.0
        %v2094 = vmax.f32 %v1966, 0.0
        %v2095 = vmax.f32 %v1967, 0.0
        %v2096 = vmax.f32 %v1968, 0.0
        %v2097 = vmax.f32 %v1969, 0.0
        %v2098 = vmax.f32 %v1970, 0.0
        %v2099 = vmax.f32 %v1971, 0.0
        %v2100 = vmax.f32 %v1972, 0.0
        %v2101 = vmax.f32 %v1973, 0.0
        %v2102 = vmax.f32 %v1974, 0.0
        %v2103 = vmax.f32 %v1975, 0.0
        %v2104 = vmax.f32 %v1976, 0.0
        %v2105 = vmax.f32 %v1977, 0.0
        %v2106 = vmax.f32 %v1978, 0.0
        %v2107 = vmax.f32 %v1979, 0.0
        %v2108 = vmax.f32 %v1980, 0.0
        %v2109 = vmax.f32 %v1981, 0.0
        %v2110 = vmax.f32 %v1982, 0.0
        %v2111 = vmax.f32 %v1983, 0.0
        %v2112 = vmax.f32 %v1984, 0.0
        %v2113 = vmax.f32 %v1985, 0.0
        %v2114 = vmax.f32 %v1986, 0.0
        %v2115 = vmax.f32 %v1987, 0.0
        %v2116 = vmax.f32 %v1988, 0.0
        %v2117 = vmax.f32 %v1989, 0.0
        %v2118 = vmax.f32 %v1990, 0.0
        %v2119 = vmax.f32 %v1991, 0.0
        %v2120 = vmax.f32 %v1992, 0.0
        %v2121 = vmax.f32 %v1993, 0.0
        %v2122 = vmax.f32 %v1994, 0.0
        %v2123 = vmax.f32 %v1995, 0.0
        %v2124 = vmax.f32 %v1996, 0.0
        %v2125 = vmax.f32 %v1997, 0.0
        %v2126 = vmax.f32 %v1998, 0.0
        %v2127 = vmax.f32 %v1999, 0.0
        %v2128 = vmax.f32 %v2000, 0.0
        %v2129 = vmax.f32 %v2001, 0.0
        %v2130 = vmax.f32 %v2002, 0.0
        %v2131 = vmax.f32 %v2003, 0.0
        %v2132 = vmax.f32 %v2004, 0.0
        %v2133 = vmax.f32 %v2005, 0.0
        %v2134 = vmax.f32 %v2006, 0.0
        %v2135 = vmax.f32 %v2007, 0.0
        %v2136 = vmax.f32 %v2008, 0.0
        %v2137 = vmax.f32 %v2009, 0.0
        %v2138 = vmax.f32 %v2010, 0.0
        %v2139 = vmax.f32 %v2011, 0.0
        %v2140 = vmax.f32 %v2012, 0.0
        %v2141 = vmax.f32 %v2013, 0.0
        %v2142 = vmax.f32 %v2014, 0.0
        %v2143 = vmax.f32 %v2015, 0.0
        %v2144 = vmax.f32 %v2016, 0.0
        %v2145 = vmax.f32 %v2017, 0.0
        %v2146 = vmax.f32 %v2018, 0.0
        %v2147 = vmax.f32 %v2019, 0.0
        %v2148 = vmax.f32 %v2020, 0.0
        %v2149 = vmax.f32 %v2021, 0.0
        %v2150 = vmax.f32 %v2022, 0.0
        %v2151 = vmax.f32 %v2023, 0.0
        %v2152 = vmax.f32 %v2024, 0.0
        %v2153 = vmax.f32 %v2025, 0.0
        %v2154 = vmax.f32 %v2026, 0.0
        %v2155 = vmax.f32 %v2027, 0.0
        %v2156 = vmax.f32 %v2028, 0.0
        %v2157 = vmax.f32 %v2029, 0.0
        %v2158 = vmax.f32 %v2030, 0.0
        %v2159 = vmax.f32 %v2031, 0.0
        %v2160 = vmax.f32 %v2032, 0.0
        %v2161 = vmax.f32 %v2033, 0.0
        %v2162 = vmax.f32 %v2034, 0.0
        %v2163 = vmax.f32 %v2035, 0.0
        %v2164 = vmax.f32 %v2036, 0.0
        %v2165 = vmax.f32 %v2037, 0.0
        %v2166 = vmax.f32 %v2038, 0.0
        %v2167 = vmax.f32 %v2039, 0.0
        %v2168 = vmax.f32 %v2040, 0.0
        %v2169 = vmax.f32 %v2041, 0.0
        %v2170 = vmax.f32 %v2042, 0.0
        %v2171 = vmax.f32 %v2043, 0.0
        %v2172 = vmax.f32 %v2044, 0.0
        %v2173 = vmax.f32 %v2045, 0.0
        %v2174 = vmax.f32 %v2046, 0.0
        %v2175 = vmax.f32 %v2047, 0.0
        %v2176 = vmax.f32 %v2048, 0.0
        %v2177 = vmax.f32 %v2049, 0.0
        %v2178 = vmax.f32 %v2050, 0.0
        %v2179 = vmax.f32 %v2051, 0.0
        %v2180 = vmax.f32 %v2052, 0.0
        %v2181 = vmax.f32 %v2053, 0.0
        %v2182 = vmax.f32 %v2054, 0.0
        %v2183 = vmax.f32 %v2055, 0.0
        %v2184 = vmax.f32 %v2056, 0.0
        %v2185 = vmax.f32 %v2057, 0.0
        %v2186 = vmax.f32 %v2058, 0.0
        %v2187 = vmax.f32 %v2059, 0.0
        %v2188 = vmax.f32 %v2060, 0.0
        %v2189 = vmax.f32 %v2061, 0.0
        %v2190 = vmax.f32 %v2062, 0.0
        %v2191 = vmax.f32 %v2063, 0.0
        %v2192 = vmax.f32 %v2064, 0.0
        %v2193 = vmax.f32 %v2065, 0.0
        %v2194 = vmax.f32 %v2066, 0.0
        %v2195 = vmax.f32 %v2067, 0.0
        %v2196 = vmax.f32 %v2068, 0.0
        %v2197 = vmax.f32 %v2069, 0.0
        %v2198 = vmax.f32 %v2070, 0.0
        %v2199 = vmax.f32 %v2071, 0.0
        %v2200 = vmax.f32 %v2072, 0.0
        %v2201 = vmax.f32 %v2073, 0.0
        %v2202 = vmax.f32 %v2074, 0.0
        %v2203 = vmax.f32 %v2075, 0.0
        %v2204 = vmax.f32 %v2076, 0.0
        %v2205 = vmax.f32 %v2077, 0.0
        %v2206 = vmax.f32 %v2078, 0.0
        %v2207 = vmax.f32 %v2079, 0.0
        %2208 = vset.pattern.permute.xlu0 1
        %2209 = vperm.xlu0 %2208, %v459
        %v2210 = vpop.permute.xlu0 %2209
        %2212 = vset.pattern.permute.xlu0 1
        %2213 = vperm.xlu0 %2212, %v460
        %v2214 = vpop.permute.xlu0 %2213
        %2216 = vset.pattern.permute.xlu0 1
        %2217 = vperm.xlu0 %2216, %v461
        %v2218 = vpop.permute.xlu0 %2217
        %2220 = vset.pattern.permute.xlu0 1
        %2221 = vperm.xlu0 %2220, %v462
        %v2222 = vpop.permute.xlu0 %2221
        %2224 = vset.pattern.permute.xlu0 1
        %2225 = vperm.xlu0 %2224, %v463
        %v2226 = vpop.permute.xlu0 %2225
        %2228 = vset.pattern.permute.xlu0 1
        %2229 = vperm.xlu0 %2228, %v464
        %v2230 = vpop.permute.xlu0 %2229
        %2232 = vset.pattern.permute.xlu0 1
        %2233 = vperm.xlu0 %2232, %v465
        %v2234 = vpop.permute.xlu0 %2233
        %2236 = vset.pattern.permute.xlu0 1
        %2237 = vperm.xlu0 %2236, %v466
        %v2238 = vpop.permute.xlu0 %2237
        %2240 = vset.pattern.permute.xlu0 1
        %2241 = vperm.xlu0 %2240, %v467
        %v2242 = vpop.permute.xlu0 %2241
        %2244 = vset.pattern.permute.xlu0 1
        %2245 = vperm.xlu0 %2244, %v468
        %v2246 = vpop.permute.xlu0 %2245
        %2248 = vset.pattern.permute.xlu0 1
        %2249 = vperm.xlu0 %2248, %v469
        %v2250 = vpop.permute.xlu0 %2249
        %2252 = vset.pattern.permute.xlu0 1
        %2253 = vperm.xlu0 %2252, %v470
        %v2254 = vpop.permute.xlu0 %2253
        %2256 = vset.pattern.permute.xlu0 1
        %2257 = vperm.xlu0 %2256, %v471
        %v2258 = vpop.permute.xlu0 %2257
        %2260 = vset.pattern.permute.xlu0 1
        %2261 = vperm.xlu0 %2260, %v472
        %v2262 = vpop.permute.xlu0 %2261
        %2264 = vset.pattern.permute.xlu0 1
        %2265 = vperm.xlu0 %2264, %v473
        %v2266 = vpop.permute.xlu0 %2265
        %2268 = vset.pattern.permute.xlu0 1
        %2269 = vperm.xlu0 %2268, %v474
        %v2270 = vpop.permute.xlu0 %2269
        %2272 = vset.pattern.permute.xlu0 1
        %2273 = vperm.xlu0 %2272, %v475
        %v2274 = vpop.permute.xlu0 %2273
        %2276 = vset.pattern.permute.xlu0 1
        %2277 = vperm.xlu0 %2276, %v476
        %v2278 = vpop.permute.xlu0 %2277
        %2280 = vset.pattern.permute.xlu0 1
        %2281 = vperm.xlu0 %2280, %v477
        %v2282 = vpop.permute.xlu0 %2281
        %2284 = vset.pattern.permute.xlu0 1
        %2285 = vperm.xlu0 %2284, %v478
        %v2286 = vpop.permute.xlu0 %2285
        %2288 = vset.pattern.permute.xlu0 1
        %2289 = vperm.xlu0 %2288, %v479
        %v2290 = vpop.permute.xlu0 %2289
        %2292 = vset.pattern.permute.xlu0 1
        %2293 = vperm.xlu0 %2292, %v480
        %v2294 = vpop.permute.xlu0 %2293
        %2296 = vset.pattern.permute.xlu0 1
        %2297 = vperm.xlu0 %2296, %v481
        %v2298 = vpop.permute.xlu0 %2297
        %2300 = vset.pattern.permute.xlu0 1
        %2301 = vperm.xlu0 %2300, %v482
        %v2302 = vpop.permute.xlu0 %2301
        %2304 = vset.pattern.permute.xlu0 1
        %2305 = vperm.xlu0 %2304, %v483
        %v2306 = vpop.permute.xlu0 %2305
        %2308 = vset.pattern.permute.xlu0 1
        %2309 = vperm.xlu0 %2308, %v484
        %v2310 = vpop.permute.xlu0 %2309
        %2312 = vset.pattern.permute.xlu0 1
        %2313 = vperm.xlu0 %2312, %v485
        %v2314 = vpop.permute.xlu0 %2313
        %2316 = vset.pattern.permute.xlu0 1
        %2317 = vperm.xlu0 %2316, %v486
        %v2318 = vpop.permute.xlu0 %2317
        %2320 = vset.pattern.permute.xlu0 1
        %2321 = vperm.xlu0 %2320, %v487
        %v2322 = vpop.permute.xlu0 %2321
        %2324 = vset.pattern.permute.xlu0 1
        %2325 = vperm.xlu0 %2324, %v488
        %v2326 = vpop.permute.xlu0 %2325
        %2328 = vset.pattern.permute.xlu0 1
        %2329 = vperm.xlu0 %2328, %v489
        %v2330 = vpop.permute.xlu0 %2329
        %2332 = vset.pattern.permute.xlu0 1
        %2333 = vperm.xlu0 %2332, %v490
        %v2334 = vpop.permute.xlu0 %2333
        %2336 = vset.pattern.permute.xlu0 1
        %2337 = vperm.xlu0 %2336, %v491
        %v2338 = vpop.permute.xlu0 %2337
        %2340 = vset.pattern.permute.xlu0 1
        %2341 = vperm.xlu0 %2340, %v492
        %v2342 = vpop.permute.xlu0 %2341
        %2344 = vset.pattern.permute.xlu0 1
        %2345 = vperm.xlu0 %2344, %v493
        %v2346 = vpop.permute.xlu0 %2345
        %2348 = vset.pattern.permute.xlu0 1
        %2349 = vperm.xlu0 %2348, %v494
        %v2350 = vpop.permute.xlu0 %2349
        %2352 = vset.pattern.permute.xlu0 1
        %2353 = vperm.xlu0 %2352, %v495
        %v2354 = vpop.permute.xlu0 %2353
        %2356 = vset.pattern.permute.xlu0 1
        %2357 = vperm.xlu0 %2356, %v496
        %v2358 = vpop.permute.xlu0 %2357
        %2360 = vset.pattern.permute.xlu0 1
        %2361 = vperm.xlu0 %2360, %v497
        %v2362 = vpop.permute.xlu0 %2361
        %2364 = vset.pattern.permute.xlu0 1
        %2365 = vperm.xlu0 %2364, %v498
        %v2366 = vpop.permute.xlu0 %2365
        %2368 = vset.pattern.permute.xlu0 1
        %2369 = vperm.xlu0 %2368, %v499
        %v2370 = vpop.permute.xlu0 %2369
        %2372 = vset.pattern.permute.xlu0 1
        %2373 = vperm.xlu0 %2372, %v500
        %v2374 = vpop.permute.xlu0 %2373
        %2376 = vset.pattern.permute.xlu0 1
        %2377 = vperm.xlu0 %2376, %v501
        %v2378 = vpop.permute.xlu0 %2377
        %2380 = vset.pattern.permute.xlu0 1
        %2381 = vperm.xlu0 %2380, %v502
        %v2382 = vpop.permute.xlu0 %2381
        %2384 = vset.pattern.permute.xlu0 1
        %2385 = vperm.xlu0 %2384, %v503
        %v2386 = vpop.permute.xlu0 %2385
        %2388 = vset.pattern.permute.xlu0 1
        %2389 = vperm.xlu0 %2388, %v504
        %v2390 = vpop.permute.xlu0 %2389
        %2392 = vset.pattern.permute.xlu0 1
        %2393 = vperm.xlu0 %2392, %v505
        %v2394 = vpop.permute.xlu0 %2393
        %2396 = vset.pattern.permute.xlu0 1
        %2397 = vperm.xlu0 %2396, %v506
        %v2398 = vpop.permute.xlu0 %2397
        %2400 = vset.pattern.permute.xlu0 1
        %2401 = vperm.xlu0 %2400, %v507
        %v2402 = vpop.permute.xlu0 %2401
        %2404 = vset.pattern.permute.xlu0 1
        %2405 = vperm.xlu0 %2404, %v508
        %v2406 = vpop.permute.xlu0 %2405
        %2408 = vset.pattern.permute.xlu0 1
        %2409 = vperm.xlu0 %2408, %v509
        %v2410 = vpop.permute.xlu0 %2409
        %2412 = vset.pattern.permute.xlu0 1
        %2413 = vperm.xlu0 %2412, %v510
        %v2414 = vpop.permute.xlu0 %2413
        %2416 = vset.pattern.permute.xlu0 1
        %2417 = vperm.xlu0 %2416, %v511
        %v2418 = vpop.permute.xlu0 %2417
        %2420 = vset.pattern.permute.xlu0 1
        %2421 = vperm.xlu0 %2420, %v512
        %v2422 = vpop.permute.xlu0 %2421
        %2424 = vset.pattern.permute.xlu0 1
        %2425 = vperm.xlu0 %2424, %v513
        %v2426 = vpop.permute.xlu0 %2425
        %2428 = vset.pattern.permute.xlu0 1
        %2429 = vperm.xlu0 %2428, %v514
        %v2430 = vpop.permute.xlu0 %2429
        %2432 = vset.pattern.permute.xlu0 1
        %2433 = vperm.xlu0 %2432, %v515
        %v2434 = vpop.permute.xlu0 %2433
        %2436 = vset.pattern.permute.xlu0 1
        %2437 = vperm.xlu0 %2436, %v516
        %v2438 = vpop.permute.xlu0 %2437
        %2440 = vset.pattern.permute.xlu0 1
        %2441 = vperm.xlu0 %2440, %v517
        %v2442 = vpop.permute.xlu0 %2441
        %2444 = vset.pattern.permute.xlu0 1
        %2445 = vperm.xlu0 %2444, %v518
        %v2446 = vpop.permute.xlu0 %2445
        %2448 = vset.pattern.permute.xlu0 1
        %2449 = vperm.xlu0 %2448, %v519
        %v2450 = vpop.permute.xlu0 %2449
        %2452 = vset.pattern.permute.xlu0 1
        %2453 = vperm.xlu0 %2452, %v520
        %v2454 = vpop.permute.xlu0 %2453
        %2456 = vset.pattern.permute.xlu0 1
        %2457 = vperm.xlu0 %2456, %v521
        %v2458 = vpop.permute.xlu0 %2457
        %2460 = vset.pattern.permute.xlu0 1
        %2461 = vperm.xlu0 %2460, %v522
        %v2462 = vpop.permute.xlu0 %2461
        %v2464 = vsub.f32 %v2210, %v602
        %v2465 = vsub.f32 %v2210, %v603
        %v2466 = vsub.f32 %v2214, %v602
        %v2467 = vsub.f32 %v2214, %v603
        %v2468 = vsub.f32 %v2218, %v602
        %v2469 = vsub.f32 %v2218, %v603
        %v2470 = vsub.f32 %v2222, %v602
        %v2471 = vsub.f32 %v2222, %v603
        %v2472 = vsub.f32 %v2226, %v602
        %v2473 = vsub.f32 %v2226, %v603
        %v2474 = vsub.f32 %v2230, %v602
        %v2475 = vsub.f32 %v2230, %v603
        %v2476 = vsub.f32 %v2234, %v602
        %v2477 = vsub.f32 %v2234, %v603
        %v2478 = vsub.f32 %v2238, %v602
        %v2479 = vsub.f32 %v2238, %v603
        %v2480 = vsub.f32 %v2242, %v602
        %v2481 = vsub.f32 %v2242, %v603
        %v2482 = vsub.f32 %v2246, %v602
        %v2483 = vsub.f32 %v2246, %v603
        %v2484 = vsub.f32 %v2250, %v602
        %v2485 = vsub.f32 %v2250, %v603
        %v2486 = vsub.f32 %v2254, %v602
        %v2487 = vsub.f32 %v2254, %v603
        %v2488 = vsub.f32 %v2258, %v602
        %v2489 = vsub.f32 %v2258, %v603
        %v2490 = vsub.f32 %v2262, %v602
        %v2491 = vsub.f32 %v2262, %v603
        %v2492 = vsub.f32 %v2266, %v602
        %v2493 = vsub.f32 %v2266, %v603
        %v2494 = vsub.f32 %v2270, %v602
        %v2495 = vsub.f32 %v2270, %v603
        %v2496 = vsub.f32 %v2274, %v602
        %v2497 = vsub.f32 %v2274, %v603
        %v2498 = vsub.f32 %v2278, %v602
        %v2499 = vsub.f32 %v2278, %v603
        %v2500 = vsub.f32 %v2282, %v602
        %v2501 = vsub.f32 %v2282, %v603
        %v2502 = vsub.f32 %v2286, %v602
        %v2503 = vsub.f32 %v2286, %v603
        %v2504 = vsub.f32 %v2290, %v602
        %v2505 = vsub.f32 %v2290, %v603
        %v2506 = vsub.f32 %v2294, %v602
        %v2507 = vsub.f32 %v2294, %v603
        %v2508 = vsub.f32 %v2298, %v602
        %v2509 = vsub.f32 %v2298, %v603
        %v2510 = vsub.f32 %v2302, %v602
        %v2511 = vsub.f32 %v2302, %v603
        %v2512 = vsub.f32 %v2306, %v602
        %v2513 = vsub.f32 %v2306, %v603
        %v2514 = vsub.f32 %v2310, %v602
        %v2515 = vsub.f32 %v2310, %v603
        %v2516 = vsub.f32 %v2314, %v602
        %v2517 = vsub.f32 %v2314, %v603
        %v2518 = vsub.f32 %v2318, %v602
        %v2519 = vsub.f32 %v2318, %v603
        %v2520 = vsub.f32 %v2322, %v602
        %v2521 = vsub.f32 %v2322, %v603
        %v2522 = vsub.f32 %v2326, %v602
        %v2523 = vsub.f32 %v2326, %v603
        %v2524 = vsub.f32 %v2330, %v602
        %v2525 = vsub.f32 %v2330, %v603
        %v2526 = vsub.f32 %v2334, %v602
        %v2527 = vsub.f32 %v2334, %v603
        %v2528 = vsub.f32 %v2338, %v602
        %v2529 = vsub.f32 %v2338, %v603
        %v2530 = vsub.f32 %v2342, %v602
        %v2531 = vsub.f32 %v2342, %v603
        %v2532 = vsub.f32 %v2346, %v602
        %v2533 = vsub.f32 %v2346, %v603
        %v2534 = vsub.f32 %v2350, %v602
        %v2535 = vsub.f32 %v2350, %v603
        %v2536 = vsub.f32 %v2354, %v602
        %v2537 = vsub.f32 %v2354, %v603
        %v2538 = vsub.f32 %v2358, %v602
        %v2539 = vsub.f32 %v2358, %v603
        %v2540 = vsub.f32 %v2362, %v602
        %v2541 = vsub.f32 %v2362, %v603
        %v2542 = vsub.f32 %v2366, %v602
        %v2543 = vsub.f32 %v2366, %v603
        %v2544 = vsub.f32 %v2370, %v602
        %v2545 = vsub.f32 %v2370, %v603
        %v2546 = vsub.f32 %v2374, %v602
        %v2547 = vsub.f32 %v2374, %v603
        %v2548 = vsub.f32 %v2378, %v602
        %v2549 = vsub.f32 %v2378, %v603
        %v2550 = vsub.f32 %v2382, %v602
        %v2551 = vsub.f32 %v2382, %v603
        %v2552 = vsub.f32 %v2386, %v602
        %v2553 = vsub.f32 %v2386, %v603
        %v2554 = vsub.f32 %v2390, %v602
        %v2555 = vsub.f32 %v2390, %v603
        %v2556 = vsub.f32 %v2394, %v602
        %v2557 = vsub.f32 %v2394, %v603
        %v2558 = vsub.f32 %v2398, %v602
        %v2559 = vsub.f32 %v2398, %v603
        %v2560 = vsub.f32 %v2402, %v602
        %v2561 = vsub.f32 %v2402, %v603
        %v2562 = vsub.f32 %v2406, %v602
        %v2563 = vsub.f32 %v2406, %v603
        %v2564 = vsub.f32 %v2410, %v602
        %v2565 = vsub.f32 %v2410, %v603
        %v2566 = vsub.f32 %v2414, %v602
        %v2567 = vsub.f32 %v2414, %v603
        %v2568 = vsub.f32 %v2418, %v602
        %v2569 = vsub.f32 %v2418, %v603
        %v2570 = vsub.f32 %v2422, %v602
        %v2571 = vsub.f32 %v2422, %v603
        %v2572 = vsub.f32 %v2426, %v602
        %v2573 = vsub.f32 %v2426, %v603
        %v2574 = vsub.f32 %v2430, %v602
        %v2575 = vsub.f32 %v2430, %v603
        %v2576 = vsub.f32 %v2434, %v602
        %v2577 = vsub.f32 %v2434, %v603
        %v2578 = vsub.f32 %v2438, %v602
        %v2579 = vsub.f32 %v2438, %v603
        %v2580 = vsub.f32 %v2442, %v602
        %v2581 = vsub.f32 %v2442, %v603
        %v2582 = vsub.f32 %v2446, %v602
        %v2583 = vsub.f32 %v2446, %v603
        %v2584 = vsub.f32 %v2450, %v602
        %v2585 = vsub.f32 %v2450, %v603
        %v2586 = vsub.f32 %v2454, %v602
        %v2587 = vsub.f32 %v2454, %v603
        %v2588 = vsub.f32 %v2458, %v602
        %v2589 = vsub.f32 %v2458, %v603
        %v2590 = vsub.f32 %v2462, %v602
        %v2591 = vsub.f32 %v2462, %v603
        %v2592 = vand.u32 2147483647, %v2464
        %v2593 = vand.u32 2147483647, %v2465
        %v2594 = vand.u32 2147483647, %v2466
        %v2595 = vand.u32 2147483647, %v2467
        %v2596 = vand.u32 2147483647, %v2468
        %v2597 = vand.u32 2147483647, %v2469
        %v2598 = vand.u32 2147483647, %v2470
        %v2599 = vand.u32 2147483647, %v2471
        %v2600 = vand.u32 2147483647, %v2472
        %v2601 = vand.u32 2147483647, %v2473
        %v2602 = vand.u32 2147483647, %v2474
        %v2603 = vand.u32 2147483647, %v2475
        %v2604 = vand.u32 2147483647, %v2476
        %v2605 = vand.u32 2147483647, %v2477
        %v2606 = vand.u32 2147483647, %v2478
        %v2607 = vand.u32 2147483647, %v2479
        %v2608 = vand.u32 2147483647, %v2480
        %v2609 = vand.u32 2147483647, %v2481
        %v2610 = vand.u32 2147483647, %v2482
        %v2611 = vand.u32 2147483647, %v2483
        %v2612 = vand.u32 2147483647, %v2484
        %v2613 = vand.u32 2147483647, %v2485
        %v2614 = vand.u32 2147483647, %v2486
        %v2615 = vand.u32 2147483647, %v2487
        %v2616 = vand.u32 2147483647, %v2488
        %v2617 = vand.u32 2147483647, %v2489
        %v2618 = vand.u32 2147483647, %v2490
        %v2619 = vand.u32 2147483647, %v2491
        %v2620 = vand.u32 2147483647, %v2492
        %v2621 = vand.u32 2147483647, %v2493
        %v2622 = vand.u32 2147483647, %v2494
        %v2623 = vand.u32 2147483647, %v2495
        %v2624 = vand.u32 2147483647, %v2496
        %v2625 = vand.u32 2147483647, %v2497
        %v2626 = vand.u32 2147483647, %v2498
        %v2627 = vand.u32 2147483647, %v2499
        %v2628 = vand.u32 2147483647, %v2500
        %v2629 = vand.u32 2147483647, %v2501
        %v2630 = vand.u32 2147483647, %v2502
        %v2631 = vand.u32 2147483647, %v2503
        %v2632 = vand.u32 2147483647, %v2504
        %v2633 = vand.u32 2147483647, %v2505
        %v2634 = vand.u32 2147483647, %v2506
        %v2635 = vand.u32 2147483647, %v2507
        %v2636 = vand.u32 2147483647, %v2508
        %v2637 = vand.u32 2147483647, %v2509
        %v2638 = vand.u32 2147483647, %v2510
        %v2639 = vand.u32 2147483647, %v2511
        %v2640 = vand.u32 2147483647, %v2512
        %v2641 = vand.u32 2147483647, %v2513
        %v2642 = vand.u32 2147483647, %v2514
        %v2643 = vand.u32 2147483647, %v2515
        %v2644 = vand.u32 2147483647, %v2516
        %v2645 = vand.u32 2147483647, %v2517
        %v2646 = vand.u32 2147483647, %v2518
        %v2647 = vand.u32 2147483647, %v2519
        %v2648 = vand.u32 2147483647, %v2520
        %v2649 = vand.u32 2147483647, %v2521
        %v2650 = vand.u32 2147483647, %v2522
        %v2651 = vand.u32 2147483647, %v2523
        %v2652 = vand.u32 2147483647, %v2524
        %v2653 = vand.u32 2147483647, %v2525
        %v2654 = vand.u32 2147483647, %v2526
        %v2655 = vand.u32 2147483647, %v2527
        %v2656 = vand.u32 2147483647, %v2528
        %v2657 = vand.u32 2147483647, %v2529
        %v2658 = vand.u32 2147483647, %v2530
        %v2659 = vand.u32 2147483647, %v2531
        %v2660 = vand.u32 2147483647, %v2532
        %v2661 = vand.u32 2147483647, %v2533
        %v2662 = vand.u32 2147483647, %v2534
        %v2663 = vand.u32 2147483647, %v2535
        %v2664 = vand.u32 2147483647, %v2536
        %v2665 = vand.u32 2147483647, %v2537
        %v2666 = vand.u32 2147483647, %v2538
        %v2667 = vand.u32 2147483647, %v2539
        %v2668 = vand.u32 2147483647, %v2540
        %v2669 = vand.u32 2147483647, %v2541
        %v2670 = vand.u32 2147483647, %v2542
        %v2671 = vand.u32 2147483647, %v2543
        %v2672 = vand.u32 2147483647, %v2544
        %v2673 = vand.u32 2147483647, %v2545
        %v2674 = vand.u32 2147483647, %v2546
        %v2675 = vand.u32 2147483647, %v2547
        %v2676 = vand.u32 2147483647, %v2548
        %v2677 = vand.u32 2147483647, %v2549
        %v2678 = vand.u32 2147483647, %v2550
        %v2679 = vand.u32 2147483647, %v2551
        %v2680 = vand.u32 2147483647, %v2552
        %v2681 = vand.u32 2147483647, %v2553
        %v2682 = vand.u32 2147483647, %v2554
        %v2683 = vand.u32 2147483647, %v2555
        %v2684 = vand.u32 2147483647, %v2556
        %v2685 = vand.u32 2147483647, %v2557
        %v2686 = vand.u32 2147483647, %v2558
        %v2687 = vand.u32 2147483647, %v2559
        %v2688 = vand.u32 2147483647, %v2560
        %v2689 = vand.u32 2147483647, %v2561
        %v2690 = vand.u32 2147483647, %v2562
        %v2691 = vand.u32 2147483647, %v2563
        %v2692 = vand.u32 2147483647, %v2564
        %v2693 = vand.u32 2147483647, %v2565
        %v2694 = vand.u32 2147483647, %v2566
        %v2695 = vand.u32 2147483647, %v2567
        %v2696 = vand.u32 2147483647, %v2568
        %v2697 = vand.u32 2147483647, %v2569
        %v2698 = vand.u32 2147483647, %v2570
        %v2699 = vand.u32 2147483647, %v2571
        %v2700 = vand.u32 2147483647, %v2572
        %v2701 = vand.u32 2147483647, %v2573
        %v2702 = vand.u32 2147483647, %v2574
        %v2703 = vand.u32 2147483647, %v2575
        %v2704 = vand.u32 2147483647, %v2576
        %v2705 = vand.u32 2147483647, %v2577
        %v2706 = vand.u32 2147483647, %v2578
        %v2707 = vand.u32 2147483647, %v2579
        %v2708 = vand.u32 2147483647, %v2580
        %v2709 = vand.u32 2147483647, %v2581
        %v2710 = vand.u32 2147483647, %v2582
        %v2711 = vand.u32 2147483647, %v2583
        %v2712 = vand.u32 2147483647, %v2584
        %v2713 = vand.u32 2147483647, %v2585
        %v2714 = vand.u32 2147483647, %v2586
        %v2715 = vand.u32 2147483647, %v2587
        %v2716 = vand.u32 2147483647, %v2588
        %v2717 = vand.u32 2147483647, %v2589
        %v2718 = vand.u32 2147483647, %v2590
        %v2719 = vand.u32 2147483647, %v2591
        %v2720 = vsub.f32 1.0, %v2592
        %v2721 = vsub.f32 1.0, %v2593
        %v2722 = vsub.f32 1.0, %v2594
        %v2723 = vsub.f32 1.0, %v2595
        %v2724 = vsub.f32 1.0, %v2596
        %v2725 = vsub.f32 1.0, %v2597
        %v2726 = vsub.f32 1.0, %v2598
        %v2727 = vsub.f32 1.0, %v2599
        %v2728 = vsub.f32 1.0, %v2600
        %v2729 = vsub.f32 1.0, %v2601
        %v2730 = vsub.f32 1.0, %v2602
        %v2731 = vsub.f32 1.0, %v2603
        %v2732 = vsub.f32 1.0, %v2604
        %v2733 = vsub.f32 1.0, %v2605
        %v2734 = vsub.f32 1.0, %v2606
        %v2735 = vsub.f32 1.0, %v2607
        %v2736 = vsub.f32 1.0, %v2608
        %v2737 = vsub.f32 1.0, %v2609
        %v2738 = vsub.f32 1.0, %v2610
        %v2739 = vsub.f32 1.0, %v2611
        %v2740 = vsub.f32 1.0, %v2612
        %v2741 = vsub.f32 1.0, %v2613
        %v2742 = vsub.f32 1.0, %v2614
        %v2743 = vsub.f32 1.0, %v2615
        %v2744 = vsub.f32 1.0, %v2616
        %v2745 = vsub.f32 1.0, %v2617
        %v2746 = vsub.f32 1.0, %v2618
        %v2747 = vsub.f32 1.0, %v2619
        %v2748 = vsub.f32 1.0, %v2620
        %v2749 = vsub.f32 1.0, %v2621
        %v2750 = vsub.f32 1.0, %v2622
        %v2751 = vsub.f32 1.0, %v2623
        %v2752 = vsub.f32 1.0, %v2624
        %v2753 = vsub.f32 1.0, %v2625
        %v2754 = vsub.f32 1.0, %v2626
        %v2755 = vsub.f32 1.0, %v2627
        %v2756 = vsub.f32 1.0, %v2628
        %v2757 = vsub.f32 1.0, %v2629
        %v2758 = vsub.f32 1.0, %v2630
        %v2759 = vsub.f32 1.0, %v2631
        %v2760 = vsub.f32 1.0, %v2632
        %v2761 = vsub.f32 1.0, %v2633
        %v2762 = vsub.f32 1.0, %v2634
        %v2763 = vsub.f32 1.0, %v2635
        %v2764 = vsub.f32 1.0, %v2636
        %v2765 = vsub.f32 1.0, %v2637
        %v2766 = vsub.f32 1.0, %v2638
        %v2767 = vsub.f32 1.0, %v2639
        %v2768 = vsub.f32 1.0, %v2640
        %v2769 = vsub.f32 1.0, %v2641
        %v2770 = vsub.f32 1.0, %v2642
        %v2771 = vsub.f32 1.0, %v2643
        %v2772 = vsub.f32 1.0, %v2644
        %v2773 = vsub.f32 1.0, %v2645
        %v2774 = vsub.f32 1.0, %v2646
        %v2775 = vsub.f32 1.0, %v2647
        %v2776 = vsub.f32 1.0, %v2648
        %v2777 = vsub.f32 1.0, %v2649
        %v2778 = vsub.f32 1.0, %v2650
        %v2779 = vsub.f32 1.0, %v2651
        %v2780 = vsub.f32 1.0, %v2652
        %v2781 = vsub.f32 1.0, %v2653
        %v2782 = vsub.f32 1.0, %v2654
        %v2783 = vsub.f32 1.0, %v2655
        %v2784 = vsub.f32 1.0, %v2656
        %v2785 = vsub.f32 1.0, %v2657
        %v2786 = vsub.f32 1.0, %v2658
        %v2787 = vsub.f32 1.0, %v2659
        %v2788 = vsub.f32 1.0, %v2660
        %v2789 = vsub.f32 1.0, %v2661
        %v2790 = vsub.f32 1.0, %v2662
        %v2791 = vsub.f32 1.0, %v2663
        %v2792 = vsub.f32 1.0, %v2664
        %v2793 = vsub.f32 1.0, %v2665
        %v2794 = vsub.f32 1.0, %v2666
        %v2795 = vsub.f32 1.0, %v2667
        %v2796 = vsub.f32 1.0, %v2668
        %v2797 = vsub.f32 1.0, %v2669
        %v2798 = vsub.f32 1.0, %v2670
        %v2799 = vsub.f32 1.0, %v2671
        %v2800 = vsub.f32 1.0, %v2672
        %v2801 = vsub.f32 1.0, %v2673
        %v2802 = vsub.f32 1.0, %v2674
        %v2803 = vsub.f32 1.0, %v2675
        %v2804 = vsub.f32 1.0, %v2676
        %v2805 = vsub.f32 1.0, %v2677
        %v2806 = vsub.f32 1.0, %v2678
        %v2807 = vsub.f32 1.0, %v2679
        %v2808 = vsub.f32 1.0, %v2680
        %v2809 = vsub.f32 1.0, %v2681
        %v2810 = vsub.f32 1.0, %v2682
        %v2811 = vsub.f32 1.0, %v2683
        %v2812 = vsub.f32 1.0, %v2684
        %v2813 = vsub.f32 1.0, %v2685
        %v2814 = vsub.f32 1.0, %v2686
        %v2815 = vsub.f32 1.0, %v2687
        %v2816 = vsub.f32 1.0, %v2688
        %v2817 = vsub.f32 1.0, %v2689
        %v2818 = vsub.f32 1.0, %v2690
        %v2819 = vsub.f32 1.0, %v2691
        %v2820 = vsub.f32 1.0, %v2692
        %v2821 = vsub.f32 1.0, %v2693
        %v2822 = vsub.f32 1.0, %v2694
        %v2823 = vsub.f32 1.0, %v2695
        %v2824 = vsub.f32 1.0, %v2696
        %v2825 = vsub.f32 1.0, %v2697
        %v2826 = vsub.f32 1.0, %v2698
        %v2827 = vsub.f32 1.0, %v2699
        %v2828 = vsub.f32 1.0, %v2700
        %v2829 = vsub.f32 1.0, %v2701
        %v2830 = vsub.f32 1.0, %v2702
        %v2831 = vsub.f32 1.0, %v2703
        %v2832 = vsub.f32 1.0, %v2704
        %v2833 = vsub.f32 1.0, %v2705
        %v2834 = vsub.f32 1.0, %v2706
        %v2835 = vsub.f32 1.0, %v2707
        %v2836 = vsub.f32 1.0, %v2708
        %v2837 = vsub.f32 1.0, %v2709
        %v2838 = vsub.f32 1.0, %v2710
        %v2839 = vsub.f32 1.0, %v2711
        %v2840 = vsub.f32 1.0, %v2712
        %v2841 = vsub.f32 1.0, %v2713
        %v2842 = vsub.f32 1.0, %v2714
        %v2843 = vsub.f32 1.0, %v2715
        %v2844 = vsub.f32 1.0, %v2716
        %v2845 = vsub.f32 1.0, %v2717
        %v2846 = vsub.f32 1.0, %v2718
        %v2847 = vsub.f32 1.0, %v2719
        %v2848 = vmax.f32 %v2720, 0.0
        %v2849 = vmax.f32 %v2721, 0.0
        %v2850 = vmax.f32 %v2722, 0.0
        %v2851 = vmax.f32 %v2723, 0.0
        %v2852 = vmax.f32 %v2724, 0.0
        %v2853 = vmax.f32 %v2725, 0.0
        %v2854 = vmax.f32 %v2726, 0.0
        %v2855 = vmax.f32 %v2727, 0.0
        %v2856 = vmax.f32 %v2728, 0.0
        %v2857 = vmax.f32 %v2729, 0.0
        %v2858 = vmax.f32 %v2730, 0.0
        %v2859 = vmax.f32 %v2731, 0.0
        %v2860 = vmax.f32 %v2732, 0.0
        %v2861 = vmax.f32 %v2733, 0.0
        %v2862 = vmax.f32 %v2734, 0.0
        %v2863 = vmax.f32 %v2735, 0.0
        %v2864 = vmax.f32 %v2736, 0.0
        %v2865 = vmax.f32 %v2737, 0.0
        %v2866 = vmax.f32 %v2738, 0.0
        %v2867 = vmax.f32 %v2739, 0.0
        %v2868 = vmax.f32 %v2740, 0.0
        %v2869 = vmax.f32 %v2741, 0.0
        %v2870 = vmax.f32 %v2742, 0.0
        %v2871 = vmax.f32 %v2743, 0.0
        %v2872 = vmax.f32 %v2744, 0.0
        %v2873 = vmax.f32 %v2745, 0.0
        %v2874 = vmax.f32 %v2746, 0.0
        %v2875 = vmax.f32 %v2747, 0.0
        %v2876 = vmax.f32 %v2748, 0.0
        %v2877 = vmax.f32 %v2749, 0.0
        %v2878 = vmax.f32 %v2750, 0.0
        %v2879 = vmax.f32 %v2751, 0.0
        %v2880 = vmax.f32 %v2752, 0.0
        %v2881 = vmax.f32 %v2753, 0.0
        %v2882 = vmax.f32 %v2754, 0.0
        %v2883 = vmax.f32 %v2755, 0.0
        %v2884 = vmax.f32 %v2756, 0.0
        %v2885 = vmax.f32 %v2757, 0.0
        %v2886 = vmax.f32 %v2758, 0.0
        %v2887 = vmax.f32 %v2759, 0.0
        %v2888 = vmax.f32 %v2760, 0.0
        %v2889 = vmax.f32 %v2761, 0.0
        %v2890 = vmax.f32 %v2762, 0.0
        %v2891 = vmax.f32 %v2763, 0.0
        %v2892 = vmax.f32 %v2764, 0.0
        %v2893 = vmax.f32 %v2765, 0.0
        %v2894 = vmax.f32 %v2766, 0.0
        %v2895 = vmax.f32 %v2767, 0.0
        %v2896 = vmax.f32 %v2768, 0.0
        %v2897 = vmax.f32 %v2769, 0.0
        %v2898 = vmax.f32 %v2770, 0.0
        %v2899 = vmax.f32 %v2771, 0.0
        %v2900 = vmax.f32 %v2772, 0.0
        %v2901 = vmax.f32 %v2773, 0.0
        %v2902 = vmax.f32 %v2774, 0.0
        %v2903 = vmax.f32 %v2775, 0.0
        %v2904 = vmax.f32 %v2776, 0.0
        %v2905 = vmax.f32 %v2777, 0.0
        %v2906 = vmax.f32 %v2778, 0.0
        %v2907 = vmax.f32 %v2779, 0.0
        %v2908 = vmax.f32 %v2780, 0.0
        %v2909 = vmax.f32 %v2781, 0.0
        %v2910 = vmax.f32 %v2782, 0.0
        %v2911 = vmax.f32 %v2783, 0.0
        %v2912 = vmax.f32 %v2784, 0.0
        %v2913 = vmax.f32 %v2785, 0.0
        %v2914 = vmax.f32 %v2786, 0.0
        %v2915 = vmax.f32 %v2787, 0.0
        %v2916 = vmax.f32 %v2788, 0.0
        %v2917 = vmax.f32 %v2789, 0.0
        %v2918 = vmax.f32 %v2790, 0.0
        %v2919 = vmax.f32 %v2791, 0.0
        %v2920 = vmax.f32 %v2792, 0.0
        %v2921 = vmax.f32 %v2793, 0.0
        %v2922 = vmax.f32 %v2794, 0.0
        %v2923 = vmax.f32 %v2795, 0.0
        %v2924 = vmax.f32 %v2796, 0.0
        %v2925 = vmax.f32 %v2797, 0.0
        %v2926 = vmax.f32 %v2798, 0.0
        %v2927 = vmax.f32 %v2799, 0.0
        %v2928 = vmax.f32 %v2800, 0.0
        %v2929 = vmax.f32 %v2801, 0.0
        %v2930 = vmax.f32 %v2802, 0.0
        %v2931 = vmax.f32 %v2803, 0.0
        %v2932 = vmax.f32 %v2804, 0.0
        %v2933 = vmax.f32 %v2805, 0.0
        %v2934 = vmax.f32 %v2806, 0.0
        %v2935 = vmax.f32 %v2807, 0.0
        %v2936 = vmax.f32 %v2808, 0.0
        %v2937 = vmax.f32 %v2809, 0.0
        %v2938 = vmax.f32 %v2810, 0.0
        %v2939 = vmax.f32 %v2811, 0.0
        %v2940 = vmax.f32 %v2812, 0.0
        %v2941 = vmax.f32 %v2813, 0.0
        %v2942 = vmax.f32 %v2814, 0.0
        %v2943 = vmax.f32 %v2815, 0.0
        %v2944 = vmax.f32 %v2816, 0.0
        %v2945 = vmax.f32 %v2817, 0.0
        %v2946 = vmax.f32 %v2818, 0.0
        %v2947 = vmax.f32 %v2819, 0.0
        %v2948 = vmax.f32 %v2820, 0.0
        %v2949 = vmax.f32 %v2821, 0.0
        %v2950 = vmax.f32 %v2822, 0.0
        %v2951 = vmax.f32 %v2823, 0.0
        %v2952 = vmax.f32 %v2824, 0.0
        %v2953 = vmax.f32 %v2825, 0.0
        %v2954 = vmax.f32 %v2826, 0.0
        %v2955 = vmax.f32 %v2827, 0.0
        %v2956 = vmax.f32 %v2828, 0.0
        %v2957 = vmax.f32 %v2829, 0.0
        %v2958 = vmax.f32 %v2830, 0.0
        %v2959 = vmax.f32 %v2831, 0.0
        %v2960 = vmax.f32 %v2832, 0.0
        %v2961 = vmax.f32 %v2833, 0.0
        %v2962 = vmax.f32 %v2834, 0.0
        %v2963 = vmax.f32 %v2835, 0.0
        %v2964 = vmax.f32 %v2836, 0.0
        %v2965 = vmax.f32 %v2837, 0.0
        %v2966 = vmax.f32 %v2838, 0.0
        %v2967 = vmax.f32 %v2839, 0.0
        %v2968 = vmax.f32 %v2840, 0.0
        %v2969 = vmax.f32 %v2841, 0.0
        %v2970 = vmax.f32 %v2842, 0.0
        %v2971 = vmax.f32 %v2843, 0.0
        %v2972 = vmax.f32 %v2844, 0.0
        %v2973 = vmax.f32 %v2845, 0.0
        %v2974 = vmax.f32 %v2846, 0.0
        %v2975 = vmax.f32 %v2847, 0.0
        %v2976 = vmul.f32 %v2848, %v1312
        %v2977 = vmul.f32 %v2849, %v1313
        %v2978 = vmul.f32 %v2850, %v1314
        %v2979 = vmul.f32 %v2851, %v1315
        %v2980 = vmul.f32 %v2852, %v1316
        %v2981 = vmul.f32 %v2853, %v1317
        %v2982 = vmul.f32 %v2854, %v1318
        %v2983 = vmul.f32 %v2855, %v1319
        %v2984 = vmul.f32 %v2856, %v1320
        %v2985 = vmul.f32 %v2857, %v1321
        %v2986 = vmul.f32 %v2858, %v1322
        %v2987 = vmul.f32 %v2859, %v1323
        %v2988 = vmul.f32 %v2860, %v1324
        %v2989 = vmul.f32 %v2861, %v1325
        %v2990 = vmul.f32 %v2862, %v1326
        %v2991 = vmul.f32 %v2863, %v1327
        %v2992 = vmul.f32 %v2864, %v1328
        %v2993 = vmul.f32 %v2865, %v1329
        %v2994 = vmul.f32 %v2866, %v1330
        %v2995 = vmul.f32 %v2867, %v1331
        %v2996 = vmul.f32 %v2868, %v1332
        %v2997 = vmul.f32 %v2869, %v1333
        %v2998 = vmul.f32 %v2870, %v1334
        %v2999 = vmul.f32 %v2871, %v1335
        %v3000 = vmul.f32 %v2872, %v1336
        %v3001 = vmul.f32 %v2873, %v1337
        %v3002 = vmul.f32 %v2874, %v1338
        %v3003 = vmul.f32 %v2875, %v1339
        %v3004 = vmul.f32 %v2876, %v1340
        %v3005 = vmul.f32 %v2877, %v1341
        %v3006 = vmul.f32 %v2878, %v1342
        %v3007 = vmul.f32 %v2879, %v1343
        %v3008 = vmul.f32 %v2880, %v1344
        %v3009 = vmul.f32 %v2881, %v1345
        %v3010 = vmul.f32 %v2882, %v1346
        %v3011 = vmul.f32 %v2883, %v1347
        %v3012 = vmul.f32 %v2884, %v1348
        %v3013 = vmul.f32 %v2885, %v1349
        %v3014 = vmul.f32 %v2886, %v1350
        %v3015 = vmul.f32 %v2887, %v1351
        %v3016 = vmul.f32 %v2888, %v1352
        %v3017 = vmul.f32 %v2889, %v1353
        %v3018 = vmul.f32 %v2890, %v1354
        %v3019 = vmul.f32 %v2891, %v1355
        %v3020 = vmul.f32 %v2892, %v1356
        %v3021 = vmul.f32 %v2893, %v1357
        %v3022 = vmul.f32 %v2894, %v1358
        %v3023 = vmul.f32 %v2895, %v1359
        %v3024 = vmul.f32 %v2896, %v1360
        %v3025 = vmul.f32 %v2897, %v1361
        %v3026 = vmul.f32 %v2898, %v1362
        %v3027 = vmul.f32 %v2899, %v1363
        %v3028 = vmul.f32 %v2900, %v1364
        %v3029 = vmul.f32 %v2901, %v1365
        %v3030 = vmul.f32 %v2902, %v1366
        %v3031 = vmul.f32 %v2903, %v1367
        %v3032 = vmul.f32 %v2904, %v1368
        %v3033 = vmul.f32 %v2905, %v1369
        %v3034 = vmul.f32 %v2906, %v1370
        %v3035 = vmul.f32 %v2907, %v1371
        %v3036 = vmul.f32 %v2908, %v1372
        %v3037 = vmul.f32 %v2909, %v1373
        %v3038 = vmul.f32 %v2910, %v1374
        %v3039 = vmul.f32 %v2911, %v1375
        %v3040 = vmul.f32 %v2912, %v1376
        %v3041 = vmul.f32 %v2913, %v1377
        %v3042 = vmul.f32 %v2914, %v1378
        %v3043 = vmul.f32 %v2915, %v1379
        %v3044 = vmul.f32 %v2916, %v1380
        %v3045 = vmul.f32 %v2917, %v1381
        %v3046 = vmul.f32 %v2918, %v1382
        %v3047 = vmul.f32 %v2919, %v1383
        %v3048 = vmul.f32 %v2920, %v1384
        %v3049 = vmul.f32 %v2921, %v1385
        %v3050 = vmul.f32 %v2922, %v1386
        %v3051 = vmul.f32 %v2923, %v1387
        %v3052 = vmul.f32 %v2924, %v1388
        %v3053 = vmul.f32 %v2925, %v1389
        %v3054 = vmul.f32 %v2926, %v1390
        %v3055 = vmul.f32 %v2927, %v1391
        %v3056 = vmul.f32 %v2928, %v1392
        %v3057 = vmul.f32 %v2929, %v1393
        %v3058 = vmul.f32 %v2930, %v1394
        %v3059 = vmul.f32 %v2931, %v1395
        %v3060 = vmul.f32 %v2932, %v1396
        %v3061 = vmul.f32 %v2933, %v1397
        %v3062 = vmul.f32 %v2934, %v1398
        %v3063 = vmul.f32 %v2935, %v1399
        %v3064 = vmul.f32 %v2936, %v1400
        %v3065 = vmul.f32 %v2937, %v1401
        %v3066 = vmul.f32 %v2938, %v1402
        %v3067 = vmul.f32 %v2939, %v1403
        %v3068 = vmul.f32 %v2940, %v1404
        %v3069 = vmul.f32 %v2941, %v1405
        %v3070 = vmul.f32 %v2942, %v1406
        %v3071 = vmul.f32 %v2943, %v1407
        %v3072 = vmul.f32 %v2944, %v1408
        %v3073 = vmul.f32 %v2945, %v1409
        %v3074 = vmul.f32 %v2946, %v1410
        %v3075 = vmul.f32 %v2947, %v1411
        %v3076 = vmul.f32 %v2948, %v1412
        %v3077 = vmul.f32 %v2949, %v1413
        %v3078 = vmul.f32 %v2950, %v1414
        %v3079 = vmul.f32 %v2951, %v1415
        %v3080 = vmul.f32 %v2952, %v1416
        %v3081 = vmul.f32 %v2953, %v1417
        %v3082 = vmul.f32 %v2954, %v1418
        %v3083 = vmul.f32 %v2955, %v1419
        %v3084 = vmul.f32 %v2956, %v1420
        %v3085 = vmul.f32 %v2957, %v1421
        %v3086 = vmul.f32 %v2958, %v1422
        %v3087 = vmul.f32 %v2959, %v1423
        %v3088 = vmul.f32 %v2960, %v1424
        %v3089 = vmul.f32 %v2961, %v1425
        %v3090 = vmul.f32 %v2962, %v1426
        %v3091 = vmul.f32 %v2963, %v1427
        %v3092 = vmul.f32 %v2964, %v1428
        %v3093 = vmul.f32 %v2965, %v1429
        %v3094 = vmul.f32 %v2966, %v1430
        %v3095 = vmul.f32 %v2967, %v1431
        %v3096 = vmul.f32 %v2968, %v1432
        %v3097 = vmul.f32 %v2969, %v1433
        %v3098 = vmul.f32 %v2970, %v1434
        %v3099 = vmul.f32 %v2971, %v1435
        %v3100 = vmul.f32 %v2972, %v1436
        %v3101 = vmul.f32 %v2973, %v1437
        %v3102 = vmul.f32 %v2974, %v1438
        %v3103 = vmul.f32 %v2975, %v1439
        %v3104 = vpack.c.bf16 %v2978, %v2976
        %v3105 = vpack.c.bf16 %v2979, %v2977
        %v3106 = vpack.c.bf16 %v2982, %v2980
        %v3107 = vpack.c.bf16 %v2983, %v2981
        %v3108 = vpack.c.bf16 %v2986, %v2984
        %v3109 = vpack.c.bf16 %v2987, %v2985
        %v3110 = vpack.c.bf16 %v2990, %v2988
        %v3111 = vpack.c.bf16 %v2991, %v2989
        %v3112 = vpack.c.bf16 %v2994, %v2992
        %v3113 = vpack.c.bf16 %v2995, %v2993
        %v3114 = vpack.c.bf16 %v2998, %v2996
        %v3115 = vpack.c.bf16 %v2999, %v2997
        %v3116 = vpack.c.bf16 %v3002, %v3000
        %v3117 = vpack.c.bf16 %v3003, %v3001
        %v3118 = vpack.c.bf16 %v3006, %v3004
        %v3119 = vpack.c.bf16 %v3007, %v3005
        %v3120 = vpack.c.bf16 %v3010, %v3008
        %v3121 = vpack.c.bf16 %v3011, %v3009
        %v3122 = vpack.c.bf16 %v3014, %v3012
        %v3123 = vpack.c.bf16 %v3015, %v3013
        %v3124 = vpack.c.bf16 %v3018, %v3016
        %v3125 = vpack.c.bf16 %v3019, %v3017
        %v3126 = vpack.c.bf16 %v3022, %v3020
        %v3127 = vpack.c.bf16 %v3023, %v3021
        %v3128 = vpack.c.bf16 %v3026, %v3024
        %v3129 = vpack.c.bf16 %v3027, %v3025
        %v3130 = vpack.c.bf16 %v3030, %v3028
        %v3131 = vpack.c.bf16 %v3031, %v3029
        %v3132 = vpack.c.bf16 %v3034, %v3032
        %v3133 = vpack.c.bf16 %v3035, %v3033
        %v3134 = vpack.c.bf16 %v3038, %v3036
        %v3135 = vpack.c.bf16 %v3039, %v3037
        %v3136 = vpack.c.bf16 %v3042, %v3040
        %v3137 = vpack.c.bf16 %v3043, %v3041
        %v3138 = vpack.c.bf16 %v3046, %v3044
        %v3139 = vpack.c.bf16 %v3047, %v3045
        %v3140 = vpack.c.bf16 %v3050, %v3048
        %v3141 = vpack.c.bf16 %v3051, %v3049
        %v3142 = vpack.c.bf16 %v3054, %v3052
        %v3143 = vpack.c.bf16 %v3055, %v3053
        %v3144 = vpack.c.bf16 %v3058, %v3056
        %v3145 = vpack.c.bf16 %v3059, %v3057
        %v3146 = vpack.c.bf16 %v3062, %v3060
        %v3147 = vpack.c.bf16 %v3063, %v3061
        %v3148 = vpack.c.bf16 %v3066, %v3064
        %v3149 = vpack.c.bf16 %v3067, %v3065
        %v3150 = vpack.c.bf16 %v3070, %v3068
        %v3151 = vpack.c.bf16 %v3071, %v3069
        %v3152 = vpack.c.bf16 %v3074, %v3072
        %v3153 = vpack.c.bf16 %v3075, %v3073
        %v3154 = vpack.c.bf16 %v3078, %v3076
        %v3155 = vpack.c.bf16 %v3079, %v3077
        %v3156 = vpack.c.bf16 %v3082, %v3080
        %v3157 = vpack.c.bf16 %v3083, %v3081
        %v3158 = vpack.c.bf16 %v3086, %v3084
        %v3159 = vpack.c.bf16 %v3087, %v3085
        %v3160 = vpack.c.bf16 %v3090, %v3088
        %v3161 = vpack.c.bf16 %v3091, %v3089
        %v3162 = vpack.c.bf16 %v3094, %v3092
        %v3163 = vpack.c.bf16 %v3095, %v3093
        %v3164 = vpack.c.bf16 %v3098, %v3096
        %v3165 = vpack.c.bf16 %v3099, %v3097
        %v3166 = vpack.c.bf16 %v3102, %v3100
        %v3167 = vpack.c.bf16 %v3103, %v3101
        %v3168 = vmul.f32 %v2080, %v1312
        %v3169 = vmul.f32 %v2081, %v1313
        %v3170 = vmul.f32 %v2082, %v1314
        %v3171 = vmul.f32 %v2083, %v1315
        %v3172 = vmul.f32 %v2084, %v1316
        %v3173 = vmul.f32 %v2085, %v1317
        %v3174 = vmul.f32 %v2086, %v1318
        %v3175 = vmul.f32 %v2087, %v1319
        %v3176 = vmul.f32 %v2088, %v1320
        %v3177 = vmul.f32 %v2089, %v1321
        %v3178 = vmul.f32 %v2090, %v1322
        %v3179 = vmul.f32 %v2091, %v1323
        %v3180 = vmul.f32 %v2092, %v1324
        %v3181 = vmul.f32 %v2093, %v1325
        %v3182 = vmul.f32 %v2094, %v1326
        %v3183 = vmul.f32 %v2095, %v1327
        %v3184 = vmul.f32 %v2096, %v1328
        %v3185 = vmul.f32 %v2097, %v1329
        %v3186 = vmul.f32 %v2098, %v1330
        %v3187 = vmul.f32 %v2099, %v1331
        %v3188 = vmul.f32 %v2100, %v1332
        %v3189 = vmul.f32 %v2101, %v1333
        %v3190 = vmul.f32 %v2102, %v1334
        %v3191 = vmul.f32 %v2103, %v1335
        %v3192 = vmul.f32 %v2104, %v1336
        %v3193 = vmul.f32 %v2105, %v1337
        %v3194 = vmul.f32 %v2106, %v1338
        %v3195 = vmul.f32 %v2107, %v1339
        %v3196 = vmul.f32 %v2108, %v1340
        %v3197 = vmul.f32 %v2109, %v1341
        %v3198 = vmul.f32 %v2110, %v1342
        %v3199 = vmul.f32 %v2111, %v1343
        %v3200 = vmul.f32 %v2112, %v1344
        %v3201 = vmul.f32 %v2113, %v1345
        %v3202 = vmul.f32 %v2114, %v1346
        %v3203 = vmul.f32 %v2115, %v1347
        %v3204 = vmul.f32 %v2116, %v1348
        %v3205 = vmul.f32 %v2117, %v1349
        %v3206 = vmul.f32 %v2118, %v1350
        %v3207 = vmul.f32 %v2119, %v1351
        %v3208 = vmul.f32 %v2120, %v1352
        %v3209 = vmul.f32 %v2121, %v1353
        %v3210 = vmul.f32 %v2122, %v1354
        %v3211 = vmul.f32 %v2123, %v1355
        %v3212 = vmul.f32 %v2124, %v1356
        %v3213 = vmul.f32 %v2125, %v1357
        %v3214 = vmul.f32 %v2126, %v1358
        %v3215 = vmul.f32 %v2127, %v1359
        %v3216 = vmul.f32 %v2128, %v1360
        %v3217 = vmul.f32 %v2129, %v1361
        %v3218 = vmul.f32 %v2130, %v1362
        %v3219 = vmul.f32 %v2131, %v1363
        %v3220 = vmul.f32 %v2132, %v1364
        %v3221 = vmul.f32 %v2133, %v1365
        %v3222 = vmul.f32 %v2134, %v1366
        %v3223 = vmul.f32 %v2135, %v1367
        %v3224 = vmul.f32 %v2136, %v1368
        %v3225 = vmul.f32 %v2137, %v1369
        %v3226 = vmul.f32 %v2138, %v1370
        %v3227 = vmul.f32 %v2139, %v1371
        %v3228 = vmul.f32 %v2140, %v1372
        %v3229 = vmul.f32 %v2141, %v1373
        %v3230 = vmul.f32 %v2142, %v1374
        %v3231 = vmul.f32 %v2143, %v1375
        %v3232 = vmul.f32 %v2144, %v1376
        %v3233 = vmul.f32 %v2145, %v1377
        %v3234 = vmul.f32 %v2146, %v1378
        %v3235 = vmul.f32 %v2147, %v1379
        %v3236 = vmul.f32 %v2148, %v1380
        %v3237 = vmul.f32 %v2149, %v1381
        %v3238 = vmul.f32 %v2150, %v1382
        %v3239 = vmul.f32 %v2151, %v1383
        %v3240 = vmul.f32 %v2152, %v1384
        %v3241 = vmul.f32 %v2153, %v1385
        %v3242 = vmul.f32 %v2154, %v1386
        %v3243 = vmul.f32 %v2155, %v1387
        %v3244 = vmul.f32 %v2156, %v1388
        %v3245 = vmul.f32 %v2157, %v1389
        %v3246 = vmul.f32 %v2158, %v1390
        %v3247 = vmul.f32 %v2159, %v1391
        %v3248 = vmul.f32 %v2160, %v1392
        %v3249 = vmul.f32 %v2161, %v1393
        %v3250 = vmul.f32 %v2162, %v1394
        %v3251 = vmul.f32 %v2163, %v1395
        %v3252 = vmul.f32 %v2164, %v1396
        %v3253 = vmul.f32 %v2165, %v1397
        %v3254 = vmul.f32 %v2166, %v1398
        %v3255 = vmul.f32 %v2167, %v1399
        %v3256 = vmul.f32 %v2168, %v1400
        %v3257 = vmul.f32 %v2169, %v1401
        %v3258 = vmul.f32 %v2170, %v1402
        %v3259 = vmul.f32 %v2171, %v1403
        %v3260 = vmul.f32 %v2172, %v1404
        %v3261 = vmul.f32 %v2173, %v1405
        %v3262 = vmul.f32 %v2174, %v1406
        %v3263 = vmul.f32 %v2175, %v1407
        %v3264 = vmul.f32 %v2176, %v1408
        %v3265 = vmul.f32 %v2177, %v1409
        %v3266 = vmul.f32 %v2178, %v1410
        %v3267 = vmul.f32 %v2179, %v1411
        %v3268 = vmul.f32 %v2180, %v1412
        %v3269 = vmul.f32 %v2181, %v1413
        %v3270 = vmul.f32 %v2182, %v1414
        %v3271 = vmul.f32 %v2183, %v1415
        %v3272 = vmul.f32 %v2184, %v1416
        %v3273 = vmul.f32 %v2185, %v1417
        %v3274 = vmul.f32 %v2186, %v1418
        %v3275 = vmul.f32 %v2187, %v1419
        %v3276 = vmul.f32 %v2188, %v1420
        %v3277 = vmul.f32 %v2189, %v1421
        %v3278 = vmul.f32 %v2190, %v1422
        %v3279 = vmul.f32 %v2191, %v1423
        %v3280 = vmul.f32 %v2192, %v1424
        %v3281 = vmul.f32 %v2193, %v1425
        %v3282 = vmul.f32 %v2194, %v1426
        %v3283 = vmul.f32 %v2195, %v1427
        %v3284 = vmul.f32 %v2196, %v1428
        %v3285 = vmul.f32 %v2197, %v1429
        %v3286 = vmul.f32 %v2198, %v1430
        %v3287 = vmul.f32 %v2199, %v1431
        %v3288 = vmul.f32 %v2200, %v1432
        %v3289 = vmul.f32 %v2201, %v1433
        %v3290 = vmul.f32 %v2202, %v1434
        %v3291 = vmul.f32 %v2203, %v1435
        %v3292 = vmul.f32 %v2204, %v1436
        %v3293 = vmul.f32 %v2205, %v1437
        %v3294 = vmul.f32 %v2206, %v1438
        %v3295 = vmul.f32 %v2207, %v1439
        %v3296 = vpack.c.bf16 %v3170, %v3168
        %v3297 = vpack.c.bf16 %v3171, %v3169
        %v3298 = vpack.c.bf16 %v3174, %v3172
        %v3299 = vpack.c.bf16 %v3175, %v3173
        %v3300 = vpack.c.bf16 %v3178, %v3176
        %v3301 = vpack.c.bf16 %v3179, %v3177
        %v3302 = vpack.c.bf16 %v3182, %v3180
        %v3303 = vpack.c.bf16 %v3183, %v3181
        %v3304 = vpack.c.bf16 %v3186, %v3184
        %v3305 = vpack.c.bf16 %v3187, %v3185
        %v3306 = vpack.c.bf16 %v3190, %v3188
        %v3307 = vpack.c.bf16 %v3191, %v3189
        %v3308 = vpack.c.bf16 %v3194, %v3192
        %v3309 = vpack.c.bf16 %v3195, %v3193
        %v3310 = vpack.c.bf16 %v3198, %v3196
        %v3311 = vpack.c.bf16 %v3199, %v3197
        %v3312 = vpack.c.bf16 %v3202, %v3200
        %v3313 = vpack.c.bf16 %v3203, %v3201
        %v3314 = vpack.c.bf16 %v3206, %v3204
        %v3315 = vpack.c.bf16 %v3207, %v3205
        %v3316 = vpack.c.bf16 %v3210, %v3208
        %v3317 = vpack.c.bf16 %v3211, %v3209
        %v3318 = vpack.c.bf16 %v3214, %v3212
        %v3319 = vpack.c.bf16 %v3215, %v3213
        %v3320 = vpack.c.bf16 %v3218, %v3216
        %v3321 = vpack.c.bf16 %v3219, %v3217
        %v3322 = vpack.c.bf16 %v3222, %v3220
        %v3323 = vpack.c.bf16 %v3223, %v3221
        %v3324 = vpack.c.bf16 %v3226, %v3224
        %v3325 = vpack.c.bf16 %v3227, %v3225
        %v3326 = vpack.c.bf16 %v3230, %v3228
        %v3327 = vpack.c.bf16 %v3231, %v3229
        %v3328 = vpack.c.bf16 %v3234, %v3232
        %v3329 = vpack.c.bf16 %v3235, %v3233
        %v3330 = vpack.c.bf16 %v3238, %v3236
        %v3331 = vpack.c.bf16 %v3239, %v3237
        %v3332 = vpack.c.bf16 %v3242, %v3240
        %v3333 = vpack.c.bf16 %v3243, %v3241
        %v3334 = vpack.c.bf16 %v3246, %v3244
        %v3335 = vpack.c.bf16 %v3247, %v3245
        %v3336 = vpack.c.bf16 %v3250, %v3248
        %v3337 = vpack.c.bf16 %v3251, %v3249
        %v3338 = vpack.c.bf16 %v3254, %v3252
        %v3339 = vpack.c.bf16 %v3255, %v3253
        %v3340 = vpack.c.bf16 %v3258, %v3256
        %v3341 = vpack.c.bf16 %v3259, %v3257
        %v3342 = vpack.c.bf16 %v3262, %v3260
        %v3343 = vpack.c.bf16 %v3263, %v3261
        %v3344 = vpack.c.bf16 %v3266, %v3264
        %v3345 = vpack.c.bf16 %v3267, %v3265
        %v3346 = vpack.c.bf16 %v3270, %v3268
        %v3347 = vpack.c.bf16 %v3271, %v3269
        %v3348 = vpack.c.bf16 %v3274, %v3272
        %v3349 = vpack.c.bf16 %v3275, %v3273
        %v3350 = vpack.c.bf16 %v3278, %v3276
        %v3351 = vpack.c.bf16 %v3279, %v3277
        %v3352 = vpack.c.bf16 %v3282, %v3280
        %v3353 = vpack.c.bf16 %v3283, %v3281
        %v3354 = vpack.c.bf16 %v3286, %v3284
        %v3355 = vpack.c.bf16 %v3287, %v3285
        %v3356 = vpack.c.bf16 %v3290, %v3288
        %v3357 = vpack.c.bf16 %v3291, %v3289
        %v3358 = vpack.c.bf16 %v3294, %v3292
        %v3359 = vpack.c.bf16 %v3295, %v3293
        %v3360 = vsub.f32 %v2210, %v606
        %v3361 = vsub.f32 %v2210, %v607
        %v3362 = vsub.f32 %v2214, %v606
        %v3363 = vsub.f32 %v2214, %v607
        %v3364 = vsub.f32 %v2218, %v606
        %v3365 = vsub.f32 %v2218, %v607
        %v3366 = vsub.f32 %v2222, %v606
        %v3367 = vsub.f32 %v2222, %v607
        %v3368 = vsub.f32 %v2226, %v606
        %v3369 = vsub.f32 %v2226, %v607
        %v3370 = vsub.f32 %v2230, %v606
        %v3371 = vsub.f32 %v2230, %v607
        %v3372 = vsub.f32 %v2234, %v606
        %v3373 = vsub.f32 %v2234, %v607
        %v3374 = vsub.f32 %v2238, %v606
        %v3375 = vsub.f32 %v2238, %v607
        %v3376 = vsub.f32 %v2242, %v606
        %v3377 = vsub.f32 %v2242, %v607
        %v3378 = vsub.f32 %v2246, %v606
        %v3379 = vsub.f32 %v2246, %v607
        %v3380 = vsub.f32 %v2250, %v606
        %v3381 = vsub.f32 %v2250, %v607
        %v3382 = vsub.f32 %v2254, %v606
        %v3383 = vsub.f32 %v2254, %v607
        %v3384 = vsub.f32 %v2258, %v606
        %v3385 = vsub.f32 %v2258, %v607
        %v3386 = vsub.f32 %v2262, %v606
        %v3387 = vsub.f32 %v2262, %v607
        %v3388 = vsub.f32 %v2266, %v606
        %v3389 = vsub.f32 %v2266, %v607
        %v3390 = vsub.f32 %v2270, %v606
        %v3391 = vsub.f32 %v2270, %v607
        %v3392 = vsub.f32 %v2274, %v606
        %v3393 = vsub.f32 %v2274, %v607
        %v3394 = vsub.f32 %v2278, %v606
        %v3395 = vsub.f32 %v2278, %v607
        %v3396 = vsub.f32 %v2282, %v606
        %v3397 = vsub.f32 %v2282, %v607
        %v3398 = vsub.f32 %v2286, %v606
        %v3399 = vsub.f32 %v2286, %v607
        %v3400 = vsub.f32 %v2290, %v606
        %v3401 = vsub.f32 %v2290, %v607
        %v3402 = vsub.f32 %v2294, %v606
        %v3403 = vsub.f32 %v2294, %v607
        %v3404 = vsub.f32 %v2298, %v606
        %v3405 = vsub.f32 %v2298, %v607
        %v3406 = vsub.f32 %v2302, %v606
        %v3407 = vsub.f32 %v2302, %v607
        %v3408 = vsub.f32 %v2306, %v606
        %v3409 = vsub.f32 %v2306, %v607
        %v3410 = vsub.f32 %v2310, %v606
        %v3411 = vsub.f32 %v2310, %v607
        %v3412 = vsub.f32 %v2314, %v606
        %v3413 = vsub.f32 %v2314, %v607
        %v3414 = vsub.f32 %v2318, %v606
        %v3415 = vsub.f32 %v2318, %v607
        %v3416 = vsub.f32 %v2322, %v606
        %v3417 = vsub.f32 %v2322, %v607
        %v3418 = vsub.f32 %v2326, %v606
        %v3419 = vsub.f32 %v2326, %v607
        %v3420 = vsub.f32 %v2330, %v606
        %v3421 = vsub.f32 %v2330, %v607
        %v3422 = vsub.f32 %v2334, %v606
        %v3423 = vsub.f32 %v2334, %v607
        %v3424 = vsub.f32 %v2338, %v606
        %v3425 = vsub.f32 %v2338, %v607
        %v3426 = vsub.f32 %v2342, %v606
        %v3427 = vsub.f32 %v2342, %v607
        %v3428 = vsub.f32 %v2346, %v606
        %v3429 = vsub.f32 %v2346, %v607
        %v3430 = vsub.f32 %v2350, %v606
        %v3431 = vsub.f32 %v2350, %v607
        %v3432 = vsub.f32 %v2354, %v606
        %v3433 = vsub.f32 %v2354, %v607
        %v3434 = vsub.f32 %v2358, %v606
        %v3435 = vsub.f32 %v2358, %v607
        %v3436 = vsub.f32 %v2362, %v606
        %v3437 = vsub.f32 %v2362, %v607
        %v3438 = vsub.f32 %v2366, %v606
        %v3439 = vsub.f32 %v2366, %v607
        %v3440 = vsub.f32 %v2370, %v606
        %v3441 = vsub.f32 %v2370, %v607
        %v3442 = vsub.f32 %v2374, %v606
        %v3443 = vsub.f32 %v2374, %v607
        %v3444 = vsub.f32 %v2378, %v606
        %v3445 = vsub.f32 %v2378, %v607
        %v3446 = vsub.f32 %v2382, %v606
        %v3447 = vsub.f32 %v2382, %v607
        %v3448 = vsub.f32 %v2386, %v606
        %v3449 = vsub.f32 %v2386, %v607
        %v3450 = vsub.f32 %v2390, %v606
        %v3451 = vsub.f32 %v2390, %v607
        %v3452 = vsub.f32 %v2394, %v606
        %v3453 = vsub.f32 %v2394, %v607
        %v3454 = vsub.f32 %v2398, %v606
        %v3455 = vsub.f32 %v2398, %v607
        %v3456 = vsub.f32 %v2402, %v606
        %v3457 = vsub.f32 %v2402, %v607
        %v3458 = vsub.f32 %v2406, %v606
        %v3459 = vsub.f32 %v2406, %v607
        %v3460 = vsub.f32 %v2410, %v606
        %v3461 = vsub.f32 %v2410, %v607
        %v3462 = vsub.f32 %v2414, %v606
        %v3463 = vsub.f32 %v2414, %v607
        %v3464 = vsub.f32 %v2418, %v606
        %v3465 = vsub.f32 %v2418, %v607
        %v3466 = vsub.f32 %v2422, %v606
        %v3467 = vsub.f32 %v2422, %v607
        %v3468 = vsub.f32 %v2426, %v606
        %v3469 = vsub.f32 %v2426, %v607
        %v3470 = vsub.f32 %v2430, %v606
        %v3471 = vsub.f32 %v2430, %v607
        %v3472 = vsub.f32 %v2434, %v606
        %v3473 = vsub.f32 %v2434, %v607
        %v3474 = vsub.f32 %v2438, %v606
        %v3475 = vsub.f32 %v2438, %v607
        %v3476 = vsub.f32 %v2442, %v606
        %v3477 = vsub.f32 %v2442, %v607
        %v3478 = vsub.f32 %v2446, %v606
        %v3479 = vsub.f32 %v2446, %v607
        %v3480 = vsub.f32 %v2450, %v606
        %v3481 = vsub.f32 %v2450, %v607
        %v3482 = vsub.f32 %v2454, %v606
        %v3483 = vsub.f32 %v2454, %v607
        %v3484 = vsub.f32 %v2458, %v606
        %v3485 = vsub.f32 %v2458, %v607
        %v3486 = vsub.f32 %v2462, %v606
        %v3487 = vsub.f32 %v2462, %v607
        %v3488 = vand.u32 2147483647, %v3360
        %v3489 = vand.u32 2147483647, %v3361
        %v3490 = vand.u32 2147483647, %v3362
        %v3491 = vand.u32 2147483647, %v3363
        %v3492 = vand.u32 2147483647, %v3364
        %v3493 = vand.u32 2147483647, %v3365
        %v3494 = vand.u32 2147483647, %v3366
        %v3495 = vand.u32 2147483647, %v3367
        %v3496 = vand.u32 2147483647, %v3368
        %v3497 = vand.u32 2147483647, %v3369
        %v3498 = vand.u32 2147483647, %v3370
        %v3499 = vand.u32 2147483647, %v3371
        %v3500 = vand.u32 2147483647, %v3372
        %v3501 = vand.u32 2147483647, %v3373
        %v3502 = vand.u32 2147483647, %v3374
        %v3503 = vand.u32 2147483647, %v3375
        %v3504 = vand.u32 2147483647, %v3376
        %v3505 = vand.u32 2147483647, %v3377
        %v3506 = vand.u32 2147483647, %v3378
        %v3507 = vand.u32 2147483647, %v3379
        %v3508 = vand.u32 2147483647, %v3380
        %v3509 = vand.u32 2147483647, %v3381
        %v3510 = vand.u32 2147483647, %v3382
        %v3511 = vand.u32 2147483647, %v3383
        %v3512 = vand.u32 2147483647, %v3384
        %v3513 = vand.u32 2147483647, %v3385
        %v3514 = vand.u32 2147483647, %v3386
        %v3515 = vand.u32 2147483647, %v3387
        %v3516 = vand.u32 2147483647, %v3388
        %v3517 = vand.u32 2147483647, %v3389
        %v3518 = vand.u32 2147483647, %v3390
        %v3519 = vand.u32 2147483647, %v3391
        %v3520 = vand.u32 2147483647, %v3392
        %v3521 = vand.u32 2147483647, %v3393
        %v3522 = vand.u32 2147483647, %v3394
        %v3523 = vand.u32 2147483647, %v3395
        %v3524 = vand.u32 2147483647, %v3396
        %v3525 = vand.u32 2147483647, %v3397
        %v3526 = vand.u32 2147483647, %v3398
        %v3527 = vand.u32 2147483647, %v3399
        %v3528 = vand.u32 2147483647, %v3400
        %v3529 = vand.u32 2147483647, %v3401
        %v3530 = vand.u32 2147483647, %v3402
        %v3531 = vand.u32 2147483647, %v3403
        %v3532 = vand.u32 2147483647, %v3404
        %v3533 = vand.u32 2147483647, %v3405
        %v3534 = vand.u32 2147483647, %v3406
        %v3535 = vand.u32 2147483647, %v3407
        %v3536 = vand.u32 2147483647, %v3408
        %v3537 = vand.u32 2147483647, %v3409
        %v3538 = vand.u32 2147483647, %v3410
        %v3539 = vand.u32 2147483647, %v3411
        %v3540 = vand.u32 2147483647, %v3412
        %v3541 = vand.u32 2147483647, %v3413
        %v3542 = vand.u32 2147483647, %v3414
        %v3543 = vand.u32 2147483647, %v3415
        %v3544 = vand.u32 2147483647, %v3416
        %v3545 = vand.u32 2147483647, %v3417
        %v3546 = vand.u32 2147483647, %v3418
        %v3547 = vand.u32 2147483647, %v3419
        %v3548 = vand.u32 2147483647, %v3420
        %v3549 = vand.u32 2147483647, %v3421
        %v3550 = vand.u32 2147483647, %v3422
        %v3551 = vand.u32 2147483647, %v3423
        %v3552 = vand.u32 2147483647, %v3424
        %v3553 = vand.u32 2147483647, %v3425
        %v3554 = vand.u32 2147483647, %v3426
        %v3555 = vand.u32 2147483647, %v3427
        %v3556 = vand.u32 2147483647, %v3428
        %v3557 = vand.u32 2147483647, %v3429
        %v3558 = vand.u32 2147483647, %v3430
        %v3559 = vand.u32 2147483647, %v3431
        %v3560 = vand.u32 2147483647, %v3432
        %v3561 = vand.u32 2147483647, %v3433
        %v3562 = vand.u32 2147483647, %v3434
        %v3563 = vand.u32 2147483647, %v3435
        %v3564 = vand.u32 2147483647, %v3436
        %v3565 = vand.u32 2147483647, %v3437
        %v3566 = vand.u32 2147483647, %v3438
        %v3567 = vand.u32 2147483647, %v3439
        %v3568 = vand.u32 2147483647, %v3440
        %v3569 = vand.u32 2147483647, %v3441
        %v3570 = vand.u32 2147483647, %v3442
        %v3571 = vand.u32 2147483647, %v3443
        %v3572 = vand.u32 2147483647, %v3444
        %v3573 = vand.u32 2147483647, %v3445
        %v3574 = vand.u32 2147483647, %v3446
        %v3575 = vand.u32 2147483647, %v3447
        %v3576 = vand.u32 2147483647, %v3448
        %v3577 = vand.u32 2147483647, %v3449
        %v3578 = vand.u32 2147483647, %v3450
        %v3579 = vand.u32 2147483647, %v3451
        %v3580 = vand.u32 2147483647, %v3452
        %v3581 = vand.u32 2147483647, %v3453
        %v3582 = vand.u32 2147483647, %v3454
        %v3583 = vand.u32 2147483647, %v3455
        %v3584 = vand.u32 2147483647, %v3456
        %v3585 = vand.u32 2147483647, %v3457
        %v3586 = vand.u32 2147483647, %v3458
        %v3587 = vand.u32 2147483647, %v3459
        %v3588 = vand.u32 2147483647, %v3460
        %v3589 = vand.u32 2147483647, %v3461
        %v3590 = vand.u32 2147483647, %v3462
        %v3591 = vand.u32 2147483647, %v3463
        %v3592 = vand.u32 2147483647, %v3464
        %v3593 = vand.u32 2147483647, %v3465
        %v3594 = vand.u32 2147483647, %v3466
        %v3595 = vand.u32 2147483647, %v3467
        %v3596 = vand.u32 2147483647, %v3468
        %v3597 = vand.u32 2147483647, %v3469
        %v3598 = vand.u32 2147483647, %v3470
        %v3599 = vand.u32 2147483647, %v3471
        %v3600 = vand.u32 2147483647, %v3472
        %v3601 = vand.u32 2147483647, %v3473
        %v3602 = vand.u32 2147483647, %v3474
        %v3603 = vand.u32 2147483647, %v3475
        %v3604 = vand.u32 2147483647, %v3476
        %v3605 = vand.u32 2147483647, %v3477
        %v3606 = vand.u32 2147483647, %v3478
        %v3607 = vand.u32 2147483647, %v3479
        %v3608 = vand.u32 2147483647, %v3480
        %v3609 = vand.u32 2147483647, %v3481
        %v3610 = vand.u32 2147483647, %v3482
        %v3611 = vand.u32 2147483647, %v3483
        %v3612 = vand.u32 2147483647, %v3484
        %v3613 = vand.u32 2147483647, %v3485
        %v3614 = vand.u32 2147483647, %v3486
        %v3615 = vand.u32 2147483647, %v3487
        %v3616 = vsub.f32 1.0, %v3488
        %v3617 = vsub.f32 1.0, %v3489
        %v3618 = vsub.f32 1.0, %v3490
        %v3619 = vsub.f32 1.0, %v3491
        %v3620 = vsub.f32 1.0, %v3492
        %v3621 = vsub.f32 1.0, %v3493
        %v3622 = vsub.f32 1.0, %v3494
        %v3623 = vsub.f32 1.0, %v3495
        %v3624 = vsub.f32 1.0, %v3496
        %v3625 = vsub.f32 1.0, %v3497
        %v3626 = vsub.f32 1.0, %v3498
        %v3627 = vsub.f32 1.0, %v3499
        %v3628 = vsub.f32 1.0, %v3500
        %v3629 = vsub.f32 1.0, %v3501
        %v3630 = vsub.f32 1.0, %v3502
        %v3631 = vsub.f32 1.0, %v3503
        %v3632 = vsub.f32 1.0, %v3504
        %v3633 = vsub.f32 1.0, %v3505
        %v3634 = vsub.f32 1.0, %v3506
        %v3635 = vsub.f32 1.0, %v3507
        %v3636 = vsub.f32 1.0, %v3508
        %v3637 = vsub.f32 1.0, %v3509
        %v3638 = vsub.f32 1.0, %v3510
        %v3639 = vsub.f32 1.0, %v3511
        %v3640 = vsub.f32 1.0, %v3512
        %v3641 = vsub.f32 1.0, %v3513
        %v3642 = vsub.f32 1.0, %v3514
        %v3643 = vsub.f32 1.0, %v3515
        %v3644 = vsub.f32 1.0, %v3516
        %v3645 = vsub.f32 1.0, %v3517
        %v3646 = vsub.f32 1.0, %v3518
        %v3647 = vsub.f32 1.0, %v3519
        %v3648 = vsub.f32 1.0, %v3520
        %v3649 = vsub.f32 1.0, %v3521
        %v3650 = vsub.f32 1.0, %v3522
        %v3651 = vsub.f32 1.0, %v3523
        %v3652 = vsub.f32 1.0, %v3524
        %v3653 = vsub.f32 1.0, %v3525
        %v3654 = vsub.f32 1.0, %v3526
        %v3655 = vsub.f32 1.0, %v3527
        %v3656 = vsub.f32 1.0, %v3528
        %v3657 = vsub.f32 1.0, %v3529
        %v3658 = vsub.f32 1.0, %v3530
        %v3659 = vsub.f32 1.0, %v3531
        %v3660 = vsub.f32 1.0, %v3532
        %v3661 = vsub.f32 1.0, %v3533
        %v3662 = vsub.f32 1.0, %v3534
        %v3663 = vsub.f32 1.0, %v3535
        %v3664 = vsub.f32 1.0, %v3536
        %v3665 = vsub.f32 1.0, %v3537
        %v3666 = vsub.f32 1.0, %v3538
        %v3667 = vsub.f32 1.0, %v3539
        %v3668 = vsub.f32 1.0, %v3540
        %v3669 = vsub.f32 1.0, %v3541
        %v3670 = vsub.f32 1.0, %v3542
        %v3671 = vsub.f32 1.0, %v3543
        %v3672 = vsub.f32 1.0, %v3544
        %v3673 = vsub.f32 1.0, %v3545
        %v3674 = vsub.f32 1.0, %v3546
        %v3675 = vsub.f32 1.0, %v3547
        %v3676 = vsub.f32 1.0, %v3548
        %v3677 = vsub.f32 1.0, %v3549
        %v3678 = vsub.f32 1.0, %v3550
        %v3679 = vsub.f32 1.0, %v3551
        %v3680 = vsub.f32 1.0, %v3552
        %v3681 = vsub.f32 1.0, %v3553
        %v3682 = vsub.f32 1.0, %v3554
        %v3683 = vsub.f32 1.0, %v3555
        %v3684 = vsub.f32 1.0, %v3556
        %v3685 = vsub.f32 1.0, %v3557
        %v3686 = vsub.f32 1.0, %v3558
        %v3687 = vsub.f32 1.0, %v3559
        %v3688 = vsub.f32 1.0, %v3560
        %v3689 = vsub.f32 1.0, %v3561
        %v3690 = vsub.f32 1.0, %v3562
        %v3691 = vsub.f32 1.0, %v3563
        %v3692 = vsub.f32 1.0, %v3564
        %v3693 = vsub.f32 1.0, %v3565
        %v3694 = vsub.f32 1.0, %v3566
        %v3695 = vsub.f32 1.0, %v3567
        %v3696 = vsub.f32 1.0, %v3568
        %v3697 = vsub.f32 1.0, %v3569
        %v3698 = vsub.f32 1.0, %v3570
        %v3699 = vsub.f32 1.0, %v3571
        %v3700 = vsub.f32 1.0, %v3572
        %v3701 = vsub.f32 1.0, %v3573
        %v3702 = vsub.f32 1.0, %v3574
        %v3703 = vsub.f32 1.0, %v3575
        %v3704 = vsub.f32 1.0, %v3576
        %v3705 = vsub.f32 1.0, %v3577
        %v3706 = vsub.f32 1.0, %v3578
        %v3707 = vsub.f32 1.0, %v3579
        %v3708 = vsub.f32 1.0, %v3580
        %v3709 = vsub.f32 1.0, %v3581
        %v3710 = vsub.f32 1.0, %v3582
        %v3711 = vsub.f32 1.0, %v3583
        %v3712 = vsub.f32 1.0, %v3584
        %v3713 = vsub.f32 1.0, %v3585
        %v3714 = vsub.f32 1.0, %v3586
        %v3715 = vsub.f32 1.0, %v3587
        %v3716 = vsub.f32 1.0, %v3588
        %v3717 = vsub.f32 1.0, %v3589
        %v3718 = vsub.f32 1.0, %v3590
        %v3719 = vsub.f32 1.0, %v3591
        %v3720 = vsub.f32 1.0, %v3592
        %v3721 = vsub.f32 1.0, %v3593
        %v3722 = vsub.f32 1.0, %v3594
        %v3723 = vsub.f32 1.0, %v3595
        %v3724 = vsub.f32 1.0, %v3596
        %v3725 = vsub.f32 1.0, %v3597
        %v3726 = vsub.f32 1.0, %v3598
        %v3727 = vsub.f32 1.0, %v3599
        %v3728 = vsub.f32 1.0, %v3600
        %v3729 = vsub.f32 1.0, %v3601
        %v3730 = vsub.f32 1.0, %v3602
        %v3731 = vsub.f32 1.0, %v3603
        %v3732 = vsub.f32 1.0, %v3604
        %v3733 = vsub.f32 1.0, %v3605
        %v3734 = vsub.f32 1.0, %v3606
        %v3735 = vsub.f32 1.0, %v3607
        %v3736 = vsub.f32 1.0, %v3608
        %v3737 = vsub.f32 1.0, %v3609
        %v3738 = vsub.f32 1.0, %v3610
        %v3739 = vsub.f32 1.0, %v3611
        %v3740 = vsub.f32 1.0, %v3612
        %v3741 = vsub.f32 1.0, %v3613
        %v3742 = vsub.f32 1.0, %v3614
        %v3743 = vsub.f32 1.0, %v3615
        %v3744 = vmax.f32 %v3616, 0.0
        %v3745 = vmax.f32 %v3617, 0.0
        %v3746 = vmax.f32 %v3618, 0.0
        %v3747 = vmax.f32 %v3619, 0.0
        %v3748 = vmax.f32 %v3620, 0.0
        %v3749 = vmax.f32 %v3621, 0.0
        %v3750 = vmax.f32 %v3622, 0.0
        %v3751 = vmax.f32 %v3623, 0.0
        %v3752 = vmax.f32 %v3624, 0.0
        %v3753 = vmax.f32 %v3625, 0.0
        %v3754 = vmax.f32 %v3626, 0.0
        %v3755 = vmax.f32 %v3627, 0.0
        %v3756 = vmax.f32 %v3628, 0.0
        %v3757 = vmax.f32 %v3629, 0.0
        %v3758 = vmax.f32 %v3630, 0.0
        %v3759 = vmax.f32 %v3631, 0.0
        %v3760 = vmax.f32 %v3632, 0.0
        %v3761 = vmax.f32 %v3633, 0.0
        %v3762 = vmax.f32 %v3634, 0.0
        %v3763 = vmax.f32 %v3635, 0.0
        %v3764 = vmax.f32 %v3636, 0.0
        %v3765 = vmax.f32 %v3637, 0.0
        %v3766 = vmax.f32 %v3638, 0.0
        %v3767 = vmax.f32 %v3639, 0.0
        %v3768 = vmax.f32 %v3640, 0.0
        %v3769 = vmax.f32 %v3641, 0.0
        %v3770 = vmax.f32 %v3642, 0.0
        %v3771 = vmax.f32 %v3643, 0.0
        %v3772 = vmax.f32 %v3644, 0.0
        %v3773 = vmax.f32 %v3645, 0.0
        %v3774 = vmax.f32 %v3646, 0.0
        %v3775 = vmax.f32 %v3647, 0.0
        %v3776 = vmax.f32 %v3648, 0.0
        %v3777 = vmax.f32 %v3649, 0.0
        %v3778 = vmax.f32 %v3650, 0.0
        %v3779 = vmax.f32 %v3651, 0.0
        %v3780 = vmax.f32 %v3652, 0.0
        %v3781 = vmax.f32 %v3653, 0.0
        %v3782 = vmax.f32 %v3654, 0.0
        %v3783 = vmax.f32 %v3655, 0.0
        %v3784 = vmax.f32 %v3656, 0.0
        %v3785 = vmax.f32 %v3657, 0.0
        %v3786 = vmax.f32 %v3658, 0.0
        %v3787 = vmax.f32 %v3659, 0.0
        %v3788 = vmax.f32 %v3660, 0.0
        %v3789 = vmax.f32 %v3661, 0.0
        %v3790 = vmax.f32 %v3662, 0.0
        %v3791 = vmax.f32 %v3663, 0.0
        %v3792 = vmax.f32 %v3664, 0.0
        %v3793 = vmax.f32 %v3665, 0.0
        %v3794 = vmax.f32 %v3666, 0.0
        %v3795 = vmax.f32 %v3667, 0.0
        %v3796 = vmax.f32 %v3668, 0.0
        %v3797 = vmax.f32 %v3669, 0.0
        %v3798 = vmax.f32 %v3670, 0.0
        %v3799 = vmax.f32 %v3671, 0.0
        %v3800 = vmax.f32 %v3672, 0.0
        %v3801 = vmax.f32 %v3673, 0.0
        %v3802 = vmax.f32 %v3674, 0.0
        %v3803 = vmax.f32 %v3675, 0.0
        %v3804 = vmax.f32 %v3676, 0.0
        %v3805 = vmax.f32 %v3677, 0.0
        %v3806 = vmax.f32 %v3678, 0.0
        %v3807 = vmax.f32 %v3679, 0.0
        %v3808 = vmax.f32 %v3680, 0.0
        %v3809 = vmax.f32 %v3681, 0.0
        %v3810 = vmax.f32 %v3682, 0.0
        %v3811 = vmax.f32 %v3683, 0.0
        %v3812 = vmax.f32 %v3684, 0.0
        %v3813 = vmax.f32 %v3685, 0.0
        %v3814 = vmax.f32 %v3686, 0.0
        %v3815 = vmax.f32 %v3687, 0.0
        %v3816 = vmax.f32 %v3688, 0.0
        %v3817 = vmax.f32 %v3689, 0.0
        %v3818 = vmax.f32 %v3690, 0.0
        %v3819 = vmax.f32 %v3691, 0.0
        %v3820 = vmax.f32 %v3692, 0.0
        %v3821 = vmax.f32 %v3693, 0.0
        %v3822 = vmax.f32 %v3694, 0.0
        %v3823 = vmax.f32 %v3695, 0.0
        %v3824 = vmax.f32 %v3696, 0.0
        %v3825 = vmax.f32 %v3697, 0.0
        %v3826 = vmax.f32 %v3698, 0.0
        %v3827 = vmax.f32 %v3699, 0.0
        %v3828 = vmax.f32 %v3700, 0.0
        %v3829 = vmax.f32 %v3701, 0.0
        %v3830 = vmax.f32 %v3702, 0.0
        %v3831 = vmax.f32 %v3703, 0.0
        %v3832 = vmax.f32 %v3704, 0.0
        %v3833 = vmax.f32 %v3705, 0.0
        %v3834 = vmax.f32 %v3706, 0.0
        %v3835 = vmax.f32 %v3707, 0.0
        %v3836 = vmax.f32 %v3708, 0.0
        %v3837 = vmax.f32 %v3709, 0.0
        %v3838 = vmax.f32 %v3710, 0.0
        %v3839 = vmax.f32 %v3711, 0.0
        %v3840 = vmax.f32 %v3712, 0.0
        %v3841 = vmax.f32 %v3713, 0.0
        %v3842 = vmax.f32 %v3714, 0.0
        %v3843 = vmax.f32 %v3715, 0.0
        %v3844 = vmax.f32 %v3716, 0.0
        %v3845 = vmax.f32 %v3717, 0.0
        %v3846 = vmax.f32 %v3718, 0.0
        %v3847 = vmax.f32 %v3719, 0.0
        %v3848 = vmax.f32 %v3720, 0.0
        %v3849 = vmax.f32 %v3721, 0.0
        %v3850 = vmax.f32 %v3722, 0.0
        %v3851 = vmax.f32 %v3723, 0.0
        %v3852 = vmax.f32 %v3724, 0.0
        %v3853 = vmax.f32 %v3725, 0.0
        %v3854 = vmax.f32 %v3726, 0.0
        %v3855 = vmax.f32 %v3727, 0.0
        %v3856 = vmax.f32 %v3728, 0.0
        %v3857 = vmax.f32 %v3729, 0.0
        %v3858 = vmax.f32 %v3730, 0.0
        %v3859 = vmax.f32 %v3731, 0.0
        %v3860 = vmax.f32 %v3732, 0.0
        %v3861 = vmax.f32 %v3733, 0.0
        %v3862 = vmax.f32 %v3734, 0.0
        %v3863 = vmax.f32 %v3735, 0.0
        %v3864 = vmax.f32 %v3736, 0.0
        %v3865 = vmax.f32 %v3737, 0.0
        %v3866 = vmax.f32 %v3738, 0.0
        %v3867 = vmax.f32 %v3739, 0.0
        %v3868 = vmax.f32 %v3740, 0.0
        %v3869 = vmax.f32 %v3741, 0.0
        %v3870 = vmax.f32 %v3742, 0.0
        %v3871 = vmax.f32 %v3743, 0.0
        %v3872 = vmul.f32 %v2080, %v3744
        %v3873 = vmul.f32 %v2081, %v3745
        %v3874 = vmul.f32 %v2082, %v3746
        %v3875 = vmul.f32 %v2083, %v3747
        %v3876 = vmul.f32 %v2084, %v3748
        %v3877 = vmul.f32 %v2085, %v3749
        %v3878 = vmul.f32 %v2086, %v3750
        %v3879 = vmul.f32 %v2087, %v3751
        %v3880 = vmul.f32 %v2088, %v3752
        %v3881 = vmul.f32 %v2089, %v3753
        %v3882 = vmul.f32 %v2090, %v3754
        %v3883 = vmul.f32 %v2091, %v3755
        %v3884 = vmul.f32 %v2092, %v3756
        %v3885 = vmul.f32 %v2093, %v3757
        %v3886 = vmul.f32 %v2094, %v3758
        %v3887 = vmul.f32 %v2095, %v3759
        %v3888 = vmul.f32 %v2096, %v3760
        %v3889 = vmul.f32 %v2097, %v3761
        %v3890 = vmul.f32 %v2098, %v3762
        %v3891 = vmul.f32 %v2099, %v3763
        %v3892 = vmul.f32 %v2100, %v3764
        %v3893 = vmul.f32 %v2101, %v3765
        %v3894 = vmul.f32 %v2102, %v3766
        %v3895 = vmul.f32 %v2103, %v3767
        %v3896 = vmul.f32 %v2104, %v3768
        %v3897 = vmul.f32 %v2105, %v3769
        %v3898 = vmul.f32 %v2106, %v3770
        %v3899 = vmul.f32 %v2107, %v3771
        %v3900 = vmul.f32 %v2108, %v3772
        %v3901 = vmul.f32 %v2109, %v3773
        %v3902 = vmul.f32 %v2110, %v3774
        %v3903 = vmul.f32 %v2111, %v3775
        %v3904 = vmul.f32 %v2112, %v3776
        %v3905 = vmul.f32 %v2113, %v3777
        %v3906 = vmul.f32 %v2114, %v3778
        %v3907 = vmul.f32 %v2115, %v3779
        %v3908 = vmul.f32 %v2116, %v3780
        %v3909 = vmul.f32 %v2117, %v3781
        %v3910 = vmul.f32 %v2118, %v3782
        %v3911 = vmul.f32 %v2119, %v3783
        %v3912 = vmul.f32 %v2120, %v3784
        %v3913 = vmul.f32 %v2121, %v3785
        %v3914 = vmul.f32 %v2122, %v3786
        %v3915 = vmul.f32 %v2123, %v3787
        %v3916 = vmul.f32 %v2124, %v3788
        %v3917 = vmul.f32 %v2125, %v3789
        %v3918 = vmul.f32 %v2126, %v3790
        %v3919 = vmul.f32 %v2127, %v3791
        %v3920 = vmul.f32 %v2128, %v3792
        %v3921 = vmul.f32 %v2129, %v3793
        %v3922 = vmul.f32 %v2130, %v3794
        %v3923 = vmul.f32 %v2131, %v3795
        %v3924 = vmul.f32 %v2132, %v3796
        %v3925 = vmul.f32 %v2133, %v3797
        %v3926 = vmul.f32 %v2134, %v3798
        %v3927 = vmul.f32 %v2135, %v3799
        %v3928 = vmul.f32 %v2136, %v3800
        %v3929 = vmul.f32 %v2137, %v3801
        %v3930 = vmul.f32 %v2138, %v3802
        %v3931 = vmul.f32 %v2139, %v3803
        %v3932 = vmul.f32 %v2140, %v3804
        %v3933 = vmul.f32 %v2141, %v3805
        %v3934 = vmul.f32 %v2142, %v3806
        %v3935 = vmul.f32 %v2143, %v3807
        %v3936 = vmul.f32 %v2144, %v3808
        %v3937 = vmul.f32 %v2145, %v3809
        %v3938 = vmul.f32 %v2146, %v3810
        %v3939 = vmul.f32 %v2147, %v3811
        %v3940 = vmul.f32 %v2148, %v3812
        %v3941 = vmul.f32 %v2149, %v3813
        %v3942 = vmul.f32 %v2150, %v3814
        %v3943 = vmul.f32 %v2151, %v3815
        %v3944 = vmul.f32 %v2152, %v3816
        %v3945 = vmul.f32 %v2153, %v3817
        %v3946 = vmul.f32 %v2154, %v3818
        %v3947 = vmul.f32 %v2155, %v3819
        %v3948 = vmul.f32 %v2156, %v3820
        %v3949 = vmul.f32 %v2157, %v3821
        %v3950 = vmul.f32 %v2158, %v3822
        %v3951 = vmul.f32 %v2159, %v3823
        %v3952 = vmul.f32 %v2160, %v3824
        %v3953 = vmul.f32 %v2161, %v3825
        %v3954 = vmul.f32 %v2162, %v3826
        %v3955 = vmul.f32 %v2163, %v3827
        %v3956 = vmul.f32 %v2164, %v3828
        %v3957 = vmul.f32 %v2165, %v3829
        %v3958 = vmul.f32 %v2166, %v3830
        %v3959 = vmul.f32 %v2167, %v3831
        %v3960 = vmul.f32 %v2168, %v3832
        %v3961 = vmul.f32 %v2169, %v3833
        %v3962 = vmul.f32 %v2170, %v3834
        %v3963 = vmul.f32 %v2171, %v3835
        %v3964 = vmul.f32 %v2172, %v3836
        %v3965 = vmul.f32 %v2173, %v3837
        %v3966 = vmul.f32 %v2174, %v3838
        %v3967 = vmul.f32 %v2175, %v3839
        %v3968 = vmul.f32 %v2176, %v3840
        %v3969 = vmul.f32 %v2177, %v3841
        %v3970 = vmul.f32 %v2178, %v3842
        %v3971 = vmul.f32 %v2179, %v3843
        %v3972 = vmul.f32 %v2180, %v3844
        %v3973 = vmul.f32 %v2181, %v3845
        %v3974 = vmul.f32 %v2182, %v3846
        %v3975 = vmul.f32 %v2183, %v3847
        %v3976 = vmul.f32 %v2184, %v3848
        %v3977 = vmul.f32 %v2185, %v3849
        %v3978 = vmul.f32 %v2186, %v3850
        %v3979 = vmul.f32 %v2187, %v3851
        %v3980 = vmul.f32 %v2188, %v3852
        %v3981 = vmul.f32 %v2189, %v3853
        %v3982 = vmul.f32 %v2190, %v3854
        %v3983 = vmul.f32 %v2191, %v3855
        %v3984 = vmul.f32 %v2192, %v3856
        %v3985 = vmul.f32 %v2193, %v3857
        %v3986 = vmul.f32 %v2194, %v3858
        %v3987 = vmul.f32 %v2195, %v3859
        %v3988 = vmul.f32 %v2196, %v3860
        %v3989 = vmul.f32 %v2197, %v3861
        %v3990 = vmul.f32 %v2198, %v3862
        %v3991 = vmul.f32 %v2199, %v3863
        %v3992 = vmul.f32 %v2200, %v3864
        %v3993 = vmul.f32 %v2201, %v3865
        %v3994 = vmul.f32 %v2202, %v3866
        %v3995 = vmul.f32 %v2203, %v3867
        %v3996 = vmul.f32 %v2204, %v3868
        %v3997 = vmul.f32 %v2205, %v3869
        %v3998 = vmul.f32 %v2206, %v3870
        %v3999 = vmul.f32 %v2207, %v3871
        %v4000 = vpack.c.bf16 %v3874, %v3872
        %v4001 = vpack.c.bf16 %v3875, %v3873
        %v4002 = vpack.c.bf16 %v3878, %v3876
        %v4003 = vpack.c.bf16 %v3879, %v3877
        %v4004 = vpack.c.bf16 %v3882, %v3880
        %v4005 = vpack.c.bf16 %v3883, %v3881
        %v4006 = vpack.c.bf16 %v3886, %v3884
        %v4007 = vpack.c.bf16 %v3887, %v3885
        %v4008 = vpack.c.bf16 %v3890, %v3888
        %v4009 = vpack.c.bf16 %v3891, %v3889
        %v4010 = vpack.c.bf16 %v3894, %v3892
        %v4011 = vpack.c.bf16 %v3895, %v3893
        %v4012 = vpack.c.bf16 %v3898, %v3896
        %v4013 = vpack.c.bf16 %v3899, %v3897
        %v4014 = vpack.c.bf16 %v3902, %v3900
        %v4015 = vpack.c.bf16 %v3903, %v3901
        %v4016 = vpack.c.bf16 %v3906, %v3904
        %v4017 = vpack.c.bf16 %v3907, %v3905
        %v4018 = vpack.c.bf16 %v3910, %v3908
        %v4019 = vpack.c.bf16 %v3911, %v3909
        %v4020 = vpack.c.bf16 %v3914, %v3912
        %v4021 = vpack.c.bf16 %v3915, %v3913
        %v4022 = vpack.c.bf16 %v3918, %v3916
        %v4023 = vpack.c.bf16 %v3919, %v3917
        %v4024 = vpack.c.bf16 %v3922, %v3920
        %v4025 = vpack.c.bf16 %v3923, %v3921
        %v4026 = vpack.c.bf16 %v3926, %v3924
        %v4027 = vpack.c.bf16 %v3927, %v3925
        %v4028 = vpack.c.bf16 %v3930, %v3928
        %v4029 = vpack.c.bf16 %v3931, %v3929
        %v4030 = vpack.c.bf16 %v3934, %v3932
        %v4031 = vpack.c.bf16 %v3935, %v3933
        %v4032 = vpack.c.bf16 %v3938, %v3936
        %v4033 = vpack.c.bf16 %v3939, %v3937
        %v4034 = vpack.c.bf16 %v3942, %v3940
        %v4035 = vpack.c.bf16 %v3943, %v3941
        %v4036 = vpack.c.bf16 %v3946, %v3944
        %v4037 = vpack.c.bf16 %v3947, %v3945
        %v4038 = vpack.c.bf16 %v3950, %v3948
        %v4039 = vpack.c.bf16 %v3951, %v3949
        %v4040 = vpack.c.bf16 %v3954, %v3952
        %v4041 = vpack.c.bf16 %v3955, %v3953
        %v4042 = vpack.c.bf16 %v3958, %v3956
        %v4043 = vpack.c.bf16 %v3959, %v3957
        %v4044 = vpack.c.bf16 %v3962, %v3960
        %v4045 = vpack.c.bf16 %v3963, %v3961
        %v4046 = vpack.c.bf16 %v3966, %v3964
        %v4047 = vpack.c.bf16 %v3967, %v3965
        %v4048 = vpack.c.bf16 %v3970, %v3968
        %v4049 = vpack.c.bf16 %v3971, %v3969
        %v4050 = vpack.c.bf16 %v3974, %v3972
        %v4051 = vpack.c.bf16 %v3975, %v3973
        %v4052 = vpack.c.bf16 %v3978, %v3976
        %v4053 = vpack.c.bf16 %v3979, %v3977
        %v4054 = vpack.c.bf16 %v3982, %v3980
        %v4055 = vpack.c.bf16 %v3983, %v3981
        %v4056 = vpack.c.bf16 %v3986, %v3984
        %v4057 = vpack.c.bf16 %v3987, %v3985
        %v4058 = vpack.c.bf16 %v3990, %v3988
        %v4059 = vpack.c.bf16 %v3991, %v3989
        %v4060 = vpack.c.bf16 %v3994, %v3992
        %v4061 = vpack.c.bf16 %v3995, %v3993
        %v4062 = vpack.c.bf16 %v3998, %v3996
        %v4063 = vpack.c.bf16 %v3999, %v3997
        %s4064 = sshra.s32 %s593, 3
        %s4065 = sand.u32 %s593, 7
        %s4066 = smul.addr %s4064, 4
        %s4067 = scalar_lea.vmem %s1, %s4066
        %v4068 = vld [vmem:[%s4067] sm:$0xf]
        %v4069 = vld [vmem:[%s4067 + $0x4] sm:$0xf]
        %v4070 = vld [vmem:[%s4067 + $0x8] sm:$0xf]
        %v4071 = vld [vmem:[%s4067 + $0xc] sm:$0xf]
        %v4072 = vld [vmem:[%s4067 + $0x10] sm:$0xf]
        %v4073 = vld [vmem:[%s4067 + $0x14] sm:$0xf]
        %v4074 = vld [vmem:[%s4067 + $0x18] sm:$0xf]
        %v4075 = vld [vmem:[%s4067 + $0x1c] sm:$0xf]
        %v4076 = vld [vmem:[%s4067 + $0x20] sm:$0xf]
        %v4077 = vld [vmem:[%s4067 + $0x24] sm:$0xf]
        %v4078 = vld [vmem:[%s4067 + $0x28] sm:$0xf]
        %v4079 = vld [vmem:[%s4067 + $0x2c] sm:$0xf]
        %v4080 = vld [vmem:[%s4067 + $0x30] sm:$0xf]
        %v4081 = vld [vmem:[%s4067 + $0x34] sm:$0xf]
        %v4082 = vld [vmem:[%s4067 + $0x38] sm:$0xf]
        %v4083 = vld [vmem:[%s4067 + $0x3c] sm:$0xf]
        %v4084 = vld [vmem:[%s4067 + $0x40] sm:$0xf]
        %v4085 = vld [vmem:[%s4067 + $0x44] sm:$0xf]
        %v4086 = vld [vmem:[%s4067 + $0x48] sm:$0xf]
        %v4087 = vld [vmem:[%s4067 + $0x4c] sm:$0xf]
        %v4088 = vld [vmem:[%s4067 + $0x50] sm:$0xf]
        %v4089 = vld [vmem:[%s4067 + $0x54] sm:$0xf]
        %v4090 = vld [vmem:[%s4067 + $0x58] sm:$0xf]
        %v4091 = vld [vmem:[%s4067 + $0x5c] sm:$0xf]
        %v4092 = vld [vmem:[%s4067 + $0x60] sm:$0xf]
        %v4093 = vld [vmem:[%s4067 + $0x64] sm:$0xf]
        %v4094 = vld [vmem:[%s4067 + $0x68] sm:$0xf]
        %v4095 = vld [vmem:[%s4067 + $0x6c] sm:$0xf]
        %v4096 = vld [vmem:[%s4067 + $0x70] sm:$0xf]
        %v4097 = vld [vmem:[%s4067 + $0x74] sm:$0xf]
        %v4098 = vld [vmem:[%s4067 + $0x78] sm:$0xf]
        %v4099 = vld [vmem:[%s4067 + $0x7c] sm:$0xf]
        %s4100 = smul.addr %s4064, 4
        %s4101 = scalar_lea.vmem %s2, %s4100
        %v4102 = vld [vmem:[%s4101] sm:$0xf]
        %v4103 = vld [vmem:[%s4101 + $0x4] sm:$0xf]
        %v4104 = vld [vmem:[%s4101 + $0x8] sm:$0xf]
        %v4105 = vld [vmem:[%s4101 + $0xc] sm:$0xf]
        %v4106 = vld [vmem:[%s4101 + $0x10] sm:$0xf]
        %v4107 = vld [vmem:[%s4101 + $0x14] sm:$0xf]
        %v4108 = vld [vmem:[%s4101 + $0x18] sm:$0xf]
        %v4109 = vld [vmem:[%s4101 + $0x1c] sm:$0xf]
        %v4110 = vld [vmem:[%s4101 + $0x20] sm:$0xf]
        %v4111 = vld [vmem:[%s4101 + $0x24] sm:$0xf]
        %v4112 = vld [vmem:[%s4101 + $0x28] sm:$0xf]
        %v4113 = vld [vmem:[%s4101 + $0x2c] sm:$0xf]
        %v4114 = vld [vmem:[%s4101 + $0x30] sm:$0xf]
        %v4115 = vld [vmem:[%s4101 + $0x34] sm:$0xf]
        %v4116 = vld [vmem:[%s4101 + $0x38] sm:$0xf]
        %v4117 = vld [vmem:[%s4101 + $0x3c] sm:$0xf]
        %v4118 = vld [vmem:[%s4101 + $0x40] sm:$0xf]
        %v4119 = vld [vmem:[%s4101 + $0x44] sm:$0xf]
        %v4120 = vld [vmem:[%s4101 + $0x48] sm:$0xf]
        %v4121 = vld [vmem:[%s4101 + $0x4c] sm:$0xf]
        %v4122 = vld [vmem:[%s4101 + $0x50] sm:$0xf]
        %v4123 = vld [vmem:[%s4101 + $0x54] sm:$0xf]
        %v4124 = vld [vmem:[%s4101 + $0x58] sm:$0xf]
        %v4125 = vld [vmem:[%s4101 + $0x5c] sm:$0xf]
        %v4126 = vld [vmem:[%s4101 + $0x60] sm:$0xf]
        %v4127 = vld [vmem:[%s4101 + $0x64] sm:$0xf]
        %v4128 = vld [vmem:[%s4101 + $0x68] sm:$0xf]
        %v4129 = vld [vmem:[%s4101 + $0x6c] sm:$0xf]
        %v4130 = vld [vmem:[%s4101 + $0x70] sm:$0xf]
        %v4131 = vld [vmem:[%s4101 + $0x74] sm:$0xf]
        %v4132 = vld [vmem:[%s4101 + $0x78] sm:$0xf]
        %v4133 = vld [vmem:[%s4101 + $0x7c] sm:$0xf]
        %v4166 = vunpack.c.l.b16 %v4102
        %v4167 = vunpack.c.l.b16 %v4103
        %v4168 = vunpack.c.l.b16 %v4104
        %v4169 = vunpack.c.l.b16 %v4105
        %v4170 = vunpack.c.l.b16 %v4106
        %v4171 = vunpack.c.l.b16 %v4107
        %v4172 = vunpack.c.l.b16 %v4108
        %v4173 = vunpack.c.l.b16 %v4109
        %v4174 = vunpack.c.l.b16 %v4110
        %v4175 = vunpack.c.l.b16 %v4111
        %v4176 = vunpack.c.l.b16 %v4112
        %v4177 = vunpack.c.l.b16 %v4113
        %v4178 = vunpack.c.l.b16 %v4114
        %v4179 = vunpack.c.l.b16 %v4115
        %v4180 = vunpack.c.l.b16 %v4116
        %v4181 = vunpack.c.l.b16 %v4117
        %v4182 = vunpack.c.l.b16 %v4118
        %v4183 = vunpack.c.l.b16 %v4119
        %v4184 = vunpack.c.l.b16 %v4120
        %v4185 = vunpack.c.l.b16 %v4121
        %v4186 = vunpack.c.l.b16 %v4122
        %v4187 = vunpack.c.l.b16 %v4123
        %v4188 = vunpack.c.l.b16 %v4124
        %v4189 = vunpack.c.l.b16 %v4125
        %v4190 = vunpack.c.l.b16 %v4126
        %v4191 = vunpack.c.l.b16 %v4127
        %v4192 = vunpack.c.l.b16 %v4128
        %v4193 = vunpack.c.l.b16 %v4129
        %v4194 = vunpack.c.l.b16 %v4130
        %v4195 = vunpack.c.l.b16 %v4131
        %v4196 = vunpack.c.l.b16 %v4132
        %v4197 = vunpack.c.l.b16 %v4133
        %v4198 = vpack.c.b16 %v4167, %v4166
        %v4199 = vpack.c.b16 %v4169, %v4168
        %v4200 = vpack.c.b16 %v4171, %v4170
        %v4201 = vpack.c.b16 %v4173, %v4172
        %v4202 = vpack.c.b16 %v4175, %v4174
        %v4203 = vpack.c.b16 %v4177, %v4176
        %v4204 = vpack.c.b16 %v4179, %v4178
        %v4205 = vpack.c.b16 %v4181, %v4180
        %v4206 = vpack.c.b16 %v4183, %v4182
        %v4207 = vpack.c.b16 %v4185, %v4184
        %v4208 = vpack.c.b16 %v4187, %v4186
        %v4209 = vpack.c.b16 %v4189, %v4188
        %v4210 = vpack.c.b16 %v4191, %v4190
        %v4211 = vpack.c.b16 %v4193, %v4192
        %v4212 = vpack.c.b16 %v4195, %v4194
        %v4213 = vpack.c.b16 %v4197, %v4196
        %4230 = vmatprep.subr.bf16.mxu0 0
        %4231 = vmatpush1.bf16.msra.mxu0 %v4198
        %4232 = vmatprep.subr.bf16.mxu0 0
        %4233 = vmatpush1.bf16.msra.mxu0 %v4199
        %4234 = vmatprep.subr.bf16.mxu0 0
        %4235 = vmatpush1.bf16.msra.mxu0 %v4200
        %4236 = vmatprep.subr.bf16.mxu0 0
        %4237 = vmatpush1.bf16.msra.mxu0 %v4201
        %4238 = vmatprep.subr.bf16.mxu0 0
        %4239 = vmatpush1.bf16.msra.mxu0 %v4202
        %4240 = vmatprep.subr.bf16.mxu0 0
        %4241 = vmatpush1.bf16.msra.mxu0 %v4203
        %4242 = vmatprep.subr.bf16.mxu0 0
        %4243 = vmatpush1.bf16.msra.mxu0 %v4204
        %4244 = vmatprep.subr.bf16.mxu0 0
        %4245 = vmatpush1.bf16.msra.mxu0 %v4205
        %4246 = vmatprep.subr.bf16.mxu0 0
        %4247 = vmatpush1.bf16.msra.mxu0 %v4206
        %4248 = vmatprep.subr.bf16.mxu0 0
        %4249 = vmatpush1.bf16.msra.mxu0 %v4207
        %4250 = vmatprep.subr.bf16.mxu0 0
        %4251 = vmatpush1.bf16.msra.mxu0 %v4208
        %4252 = vmatprep.subr.bf16.mxu0 0
        %4253 = vmatpush1.bf16.msra.mxu0 %v4209
        %4254 = vmatprep.subr.bf16.mxu0 0
        %4255 = vmatpush1.bf16.msra.mxu0 %v4210
        %4256 = vmatprep.subr.bf16.mxu0 0
        %4257 = vmatpush1.bf16.msra.mxu0 %v4211
        %4258 = vmatprep.subr.bf16.mxu0 0
        %4259 = vmatpush1.bf16.msra.mxu0 %v4212
        %4260 = vmatprep.subr.bf16.mxu0 0
        %4261 = vmatpush1.bf16.msra.mxu0 %v4213
        %4262 = vmatprep.mubr.bf16.mxu0 %v3297
        %4263 = vmatmul.mubr.bf16.gmra.mrb[0].mxu0 %v3296
        %v4264 = vpop.f32.mrb[0].mxu0
        %v4265 = vadd.f32 0.0, %v4264
        %v4266 = vpop.f32.mrb[0].mxu0
        %v4267 = vpop.f32.mrb[0].mxu0
        %v4268 = vadd.f32 0.0, %v4267
        %v4269 = vpop.f32.mrb[0].mxu0
        %4270 = vmatprep.mubr.bf16.mxu0 %v3299
        %4271 = vmatmul.mubr.bf16.gmra.mrb[0].mxu0 %v3298
        %v4272 = vpop.f32.mrb[0].mxu0
        %v4273 = vadd.f32 0.0, %v4272
        %v4274 = vpop.f32.mrb[0].mxu0
        %v4275 = vpop.f32.mrb[0].mxu0
        %v4276 = vadd.f32 0.0, %v4275
        %v4277 = vpop.f32.mrb[0].mxu0
        %4278 = vmatprep.mubr.bf16.mxu0 %v3301
        %4279 = vmatmul.mubr.bf16.gmra.mrb[0].mxu0 %v3300
        %v4280 = vpop.f32.mrb[0].mxu0
        %v4281 = vadd.f32 0.0, %v4280
        %v4282 = vpop.f32.mrb[0].mxu0
        %v4283 = vpop.f32.mrb[0].mxu0
        %v4284 = vadd.f32 0.0, %v4283
        %v4285 = vpop.f32.mrb[0].mxu0
        %4286 = vmatprep.mubr.bf16.mxu0 %v3303
        %4287 = vmatmul.mubr.bf16.gmra.mrb[0].mxu0 %v3302
        %v4288 = vpop.f32.mrb[0].mxu0
        %v4289 = vadd.f32 0.0, %v4288
        %v4290 = vpop.f32.mrb[0].mxu0
        %v4291 = vpop.f32.mrb[0].mxu0
        %v4292 = vadd.f32 0.0, %v4291
        %v4293 = vpop.f32.mrb[0].mxu0
        %4294 = vmatprep.mubr.bf16.mxu0 %v3305
        %4295 = vmatmul.mubr.bf16.gmra.mrb[0].mxu0 %v3304
        %v4296 = vpop.f32.mrb[0].mxu0
        %v4297 = vadd.f32 0.0, %v4296
        %v4298 = vpop.f32.mrb[0].mxu0
        %v4299 = vpop.f32.mrb[0].mxu0
        %v4300 = vadd.f32 0.0, %v4299
        %v4301 = vpop.f32.mrb[0].mxu0
        %4302 = vmatprep.mubr.bf16.mxu0 %v3307
        %4303 = vmatmul.mubr.bf16.gmra.mrb[0].mxu0 %v3306
        %v4304 = vpop.f32.mrb[0].mxu0
        %v4305 = vadd.f32 0.0, %v4304
        %v4306 = vpop.f32.mrb[0].mxu0
        %v4307 = vpop.f32.mrb[0].mxu0
        %v4308 = vadd.f32 0.0, %v4307
        %v4309 = vpop.f32.mrb[0].mxu0
        %4310 = vmatprep.mubr.bf16.mxu0 %v3309
        %4311 = vmatmul.mubr.bf16.gmra.mrb[0].mxu0 %v3308
        %v4312 = vpop.f32.mrb[0].mxu0
        %v4313 = vadd.f32 0.0, %v4312
        %v4314 = vpop.f32.mrb[0].mxu0
        %v4315 = vpop.f32.mrb[0].mxu0
        %v4316 = vadd.f32 0.0, %v4315
        %v4317 = vpop.f32.mrb[0].mxu0
        %4318 = vmatprep.mubr.bf16.mxu0 %v3311
        %4319 = vmatmul.mubr.bf16.gmra.mrb[0].mxu0 %v3310
        %v4320 = vpop.f32.mrb[0].mxu0
        %v4321 = vadd.f32 0.0, %v4320
        %v4322 = vpop.f32.mrb[0].mxu0
        %v4323 = vpop.f32.mrb[0].mxu0
        %v4324 = vadd.f32 0.0, %v4323
        %v4325 = vpop.f32.mrb[0].mxu0
        %4326 = vmatprep.mubr.bf16.mxu0 %v3313
        %4327 = vmatmul.mubr.bf16.gmra.mrb[0].mxu0 %v3312
        %v4328 = vpop.f32.mrb[0].mxu0
        %v4329 = vadd.f32 0.0, %v4328
        %v4330 = vpop.f32.mrb[0].mxu0
        %v4331 = vpop.f32.mrb[0].mxu0
        %v4332 = vadd.f32 0.0, %v4331
        %v4333 = vpop.f32.mrb[0].mxu0
        %4334 = vmatprep.mubr.bf16.mxu0 %v3315
        %4335 = vmatmul.mubr.bf16.gmra.mrb[0].mxu0 %v3314
        %v4336 = vpop.f32.mrb[0].mxu0
        %v4337 = vadd.f32 0.0, %v4336
        %v4338 = vpop.f32.mrb[0].mxu0
        %v4339 = vpop.f32.mrb[0].mxu0
        %v4340 = vadd.f32 0.0, %v4339
        %v4341 = vpop.f32.mrb[0].mxu0
        %4342 = vmatprep.mubr.bf16.mxu0 %v3317
        %4343 = vmatmul.mubr.bf16.gmra.mrb[0].mxu0 %v3316
        %v4344 = vpop.f32.mrb[0].mxu0
        %v4345 = vadd.f32 0.0, %v4344
        %v4346 = vpop.f32.mrb[0].mxu0
        %v4347 = vpop.f32.mrb[0].mxu0
        %v4348 = vadd.f32 0.0, %v4347
        %v4349 = vpop.f32.mrb[0].mxu0
        %4350 = vmatprep.mubr.bf16.mxu0 %v3319
        %4351 = vmatmul.mubr.bf16.gmra.mrb[0].mxu0 %v3318
        %v4352 = vpop.f32.mrb[0].mxu0
        %v4353 = vadd.f32 0.0, %v4352
        %v4354 = vpop.f32.mrb[0].mxu0
        %v4355 = vpop.f32.mrb[0].mxu0
        %v4356 = vadd.f32 0.0, %v4355
        %v4357 = vpop.f32.mrb[0].mxu0
        %4358 = vmatprep.mubr.bf16.mxu0 %v3321
        %4359 = vmatmul.mubr.bf16.gmra.mrb[0].mxu0 %v3320
        %v4360 = vpop.f32.mrb[0].mxu0
        %v4361 = vadd.f32 0.0, %v4360
        %v4362 = vpop.f32.mrb[0].mxu0
        %v4363 = vpop.f32.mrb[0].mxu0
        %v4364 = vadd.f32 0.0, %v4363
        %v4365 = vpop.f32.mrb[0].mxu0
        %4366 = vmatprep.mubr.bf16.mxu0 %v3323
        %4367 = vmatmul.mubr.bf16.gmra.mrb[0].mxu0 %v3322
        %v4368 = vpop.f32.mrb[0].mxu0
        %v4369 = vadd.f32 0.0, %v4368
        %v4370 = vpop.f32.mrb[0].mxu0
        %v4371 = vpop.f32.mrb[0].mxu0
        %v4372 = vadd.f32 0.0, %v4371
        %v4373 = vpop.f32.mrb[0].mxu0
        %4374 = vmatprep.mubr.bf16.mxu0 %v3325
        %4375 = vmatmul.mubr.bf16.gmra.mrb[0].mxu0 %v3324
        %v4376 = vpop.f32.mrb[0].mxu0
        %v4377 = vadd.f32 0.0, %v4376
        %v4378 = vpop.f32.mrb[0].mxu0
        %v4379 = vpop.f32.mrb[0].mxu0
        %v4380 = vadd.f32 0.0, %v4379
        %v4381 = vpop.f32.mrb[0].mxu0
        %4382 = vmatprep.mubr.bf16.mxu0 %v3327
        %4383 = vmatmul.mubr.bf16.gmra.mrb[0].mxu0 %v3326
        %v4384 = vpop.f32.mrb[0].mxu0
        %v4385 = vadd.f32 0.0, %v4384
        %v4386 = vpop.f32.mrb[0].mxu0
        %v4387 = vpop.f32.mrb[0].mxu0
        %v4388 = vadd.f32 0.0, %v4387
        %v4389 = vpop.f32.mrb[0].mxu0
        %4390 = vmatprep.mubr.bf16.mxu0 %v3329
        %4391 = vmatmul.mubr.bf16.gmra.mrb[0].mxu0 %v3328
        %v4392 = vpop.f32.mrb[0].mxu0
        %v4393 = vadd.f32 0.0, %v4392
        %v4394 = vpop.f32.mrb[0].mxu0
        %v4395 = vpop.f32.mrb[0].mxu0
        %v4396 = vadd.f32 0.0, %v4395
        %v4397 = vpop.f32.mrb[0].mxu0
        %4398 = vmatprep.mubr.bf16.mxu0 %v3331
        %4399 = vmatmul.mubr.bf16.gmra.mrb[0].mxu0 %v3330
        %v4400 = vpop.f32.mrb[0].mxu0
        %v4401 = vadd.f32 0.0, %v4400
        %v4402 = vpop.f32.mrb[0].mxu0
        %v4403 = vpop.f32.mrb[0].mxu0
        %v4404 = vadd.f32 0.0, %v4403
        %v4405 = vpop.f32.mrb[0].mxu0
        %4406 = vmatprep.mubr.bf16.mxu0 %v3333
        %4407 = vmatmul.mubr.bf16.gmra.mrb[0].mxu0 %v3332
        %v4408 = vpop.f32.mrb[0].mxu0
        %v4409 = vadd.f32 0.0, %v4408
        %v4410 = vpop.f32.mrb[0].mxu0
        %v4411 = vpop.f32.mrb[0].mxu0
        %v4412 = vadd.f32 0.0, %v4411
        %v4413 = vpop.f32.mrb[0].mxu0
        %4414 = vmatprep.mubr.bf16.mxu0 %v3335
        %4415 = vmatmul.mubr.bf16.gmra.mrb[0].mxu0 %v3334
        %v4416 = vpop.f32.mrb[0].mxu0
        %v4417 = vadd.f32 0.0, %v4416
        %v4418 = vpop.f32.mrb[0].mxu0
        %v4419 = vpop.f32.mrb[0].mxu0
        %v4420 = vadd.f32 0.0, %v4419
        %v4421 = vpop.f32.mrb[0].mxu0
        %4422 = vmatprep.mubr.bf16.mxu0 %v3337
        %4423 = vmatmul.mubr.bf16.gmra.mrb[0].mxu0 %v3336
        %v4424 = vpop.f32.mrb[0].mxu0
        %v4425 = vadd.f32 0.0, %v4424
        %v4426 = vpop.f32.mrb[0].mxu0
        %v4427 = vpop.f32.mrb[0].mxu0
        %v4428 = vadd.f32 0.0, %v4427
        %v4429 = vpop.f32.mrb[0].mxu0
        %4430 = vmatprep.mubr.bf16.mxu0 %v3339
        %4431 = vmatmul.mubr.bf16.gmra.mrb[0].mxu0 %v3338
        %v4432 = vpop.f32.mrb[0].mxu0
        %v4433 = vadd.f32 0.0, %v4432
        %v4434 = vpop.f32.mrb[0].mxu0
        %v4435 = vpop.f32.mrb[0].mxu0
        %v4436 = vadd.f32 0.0, %v4435
        %v4437 = vpop.f32.mrb[0].mxu0
        %4438 = vmatprep.mubr.bf16.mxu0 %v3341
        %4439 = vmatmul.mubr.bf16.gmra.mrb[0].mxu0 %v3340
        %v4440 = vpop.f32.mrb[0].mxu0
        %v4441 = vadd.f32 0.0, %v4440
        %v4442 = vpop.f32.mrb[0].mxu0
        %v4443 = vpop.f32.mrb[0].mxu0
        %v4444 = vadd.f32 0.0, %v4443
        %v4445 = vpop.f32.mrb[0].mxu0
        %4446 = vmatprep.mubr.bf16.mxu0 %v3343
        %4447 = vmatmul.mubr.bf16.gmra.mrb[0].mxu0 %v3342
        %v4448 = vpop.f32.mrb[0].mxu0
        %v4449 = vadd.f32 0.0, %v4448
        %v4450 = vpop.f32.mrb[0].mxu0
        %v4451 = vpop.f32.mrb[0].mxu0
        %v4452 = vadd.f32 0.0, %v4451
        %v4453 = vpop.f32.mrb[0].mxu0
        %4454 = vmatprep.mubr.bf16.mxu0 %v3345
        %4455 = vmatmul.mubr.bf16.gmra.mrb[0].mxu0 %v3344
        %v4456 = vpop.f32.mrb[0].mxu0
        %v4457 = vadd.f32 0.0, %v4456
        %v4458 = vpop.f32.mrb[0].mxu0
        %v4459 = vpop.f32.mrb[0].mxu0
        %v4460 = vadd.f32 0.0, %v4459
        %v4461 = vpop.f32.mrb[0].mxu0
        %4462 = vmatprep.mubr.bf16.mxu0 %v3347
        %4463 = vmatmul.mubr.bf16.gmra.mrb[0].mxu0 %v3346
        %v4464 = vpop.f32.mrb[0].mxu0
        %v4465 = vadd.f32 0.0, %v4464
        %v4466 = vpop.f32.mrb[0].mxu0
        %v4467 = vpop.f32.mrb[0].mxu0
        %v4468 = vadd.f32 0.0, %v4467
        %v4469 = vpop.f32.mrb[0].mxu0
        %4470 = vmatprep.mubr.bf16.mxu0 %v3349
        %4471 = vmatmul.mubr.bf16.gmra.mrb[0].mxu0 %v3348
        %v4472 = vpop.f32.mrb[0].mxu0
        %v4473 = vadd.f32 0.0, %v4472
        %v4474 = vpop.f32.mrb[0].mxu0
        %v4475 = vpop.f32.mrb[0].mxu0
        %v4476 = vadd.f32 0.0, %v4475
        %v4477 = vpop.f32.mrb[0].mxu0
        %4478 = vmatprep.mubr.bf16.mxu0 %v3351
        %4479 = vmatmul.mubr.bf16.gmra.mrb[0].mxu0 %v3350
        %v4480 = vpop.f32.mrb[0].mxu0
        %v4481 = vadd.f32 0.0, %v4480
        %v4482 = vpop.f32.mrb[0].mxu0
        %v4483 = vpop.f32.mrb[0].mxu0
        %v4484 = vadd.f32 0.0, %v4483
        %v4485 = vpop.f32.mrb[0].mxu0
        %4486 = vmatprep.mubr.bf16.mxu0 %v3353
        %4487 = vmatmul.mubr.bf16.gmra.mrb[0].mxu0 %v3352
        %v4488 = vpop.f32.mrb[0].mxu0
        %v4489 = vadd.f32 0.0, %v4488
        %v4490 = vpop.f32.mrb[0].mxu0
        %v4491 = vpop.f32.mrb[0].mxu0
        %v4492 = vadd.f32 0.0, %v4491
        %v4493 = vpop.f32.mrb[0].mxu0
        %4494 = vmatprep.mubr.bf16.mxu0 %v3355
        %4495 = vmatmul.mubr.bf16.gmra.mrb[0].mxu0 %v3354
        %v4496 = vpop.f32.mrb[0].mxu0
        %v4497 = vadd.f32 0.0, %v4496
        %v4498 = vpop.f32.mrb[0].mxu0
        %v4499 = vpop.f32.mrb[0].mxu0
        %v4500 = vadd.f32 0.0, %v4499
        %v4501 = vpop.f32.mrb[0].mxu0
        %4502 = vmatprep.mubr.bf16.mxu0 %v3357
        %4503 = vmatmul.mubr.bf16.gmra.mrb[0].mxu0 %v3356
        %v4504 = vpop.f32.mrb[0].mxu0
        %v4505 = vadd.f32 0.0, %v4504
        %v4506 = vpop.f32.mrb[0].mxu0
        %v4507 = vpop.f32.mrb[0].mxu0
        %v4508 = vadd.f32 0.0, %v4507
        %v4509 = vpop.f32.mrb[0].mxu0
        %4510 = vmatprep.mubr.bf16.mxu0 %v3359
        %4511 = vmatmul.mubr.bf16.gmra.mrb[0].mxu0 %v3358
        %v4512 = vpop.f32.mrb[0].mxu0
        %v4513 = vadd.f32 0.0, %v4512
        %v4514 = vpop.f32.mrb[0].mxu0
        %v4515 = vpop.f32.mrb[0].mxu0
        %v4516 = vadd.f32 0.0, %v4515
        %v4517 = vpop.f32.mrb[0].mxu0
        %4518 = vdwg.mxu0
        %v4551 = vunpack.c.l.b16 %v4068
        %v4552 = vunpack.c.l.b16 %v4069
        %v4553 = vunpack.c.l.b16 %v4070
        %v4554 = vunpack.c.l.b16 %v4071
        %v4555 = vunpack.c.l.b16 %v4072
        %v4556 = vunpack.c.l.b16 %v4073
        %v4557 = vunpack.c.l.b16 %v4074
        %v4558 = vunpack.c.l.b16 %v4075
        %v4559 = vunpack.c.l.b16 %v4076
        %v4560 = vunpack.c.l.b16 %v4077
        %v4561 = vunpack.c.l.b16 %v4078
        %v4562 = vunpack.c.l.b16 %v4079
        %v4563 = vunpack.c.l.b16 %v4080
        %v4564 = vunpack.c.l.b16 %v4081
        %v4565 = vunpack.c.l.b16 %v4082
        %v4566 = vunpack.c.l.b16 %v4083
        %v4567 = vunpack.c.l.b16 %v4084
        %v4568 = vunpack.c.l.b16 %v4085
        %v4569 = vunpack.c.l.b16 %v4086
        %v4570 = vunpack.c.l.b16 %v4087
        %v4571 = vunpack.c.l.b16 %v4088
        %v4572 = vunpack.c.l.b16 %v4089
        %v4573 = vunpack.c.l.b16 %v4090
        %v4574 = vunpack.c.l.b16 %v4091
        %v4575 = vunpack.c.l.b16 %v4092
        %v4576 = vunpack.c.l.b16 %v4093
        %v4577 = vunpack.c.l.b16 %v4094
        %v4578 = vunpack.c.l.b16 %v4095
        %v4579 = vunpack.c.l.b16 %v4096
        %v4580 = vunpack.c.l.b16 %v4097
        %v4581 = vunpack.c.l.b16 %v4098
        %v4582 = vunpack.c.l.b16 %v4099
        %v4583 = vpack.c.b16 %v4552, %v4551
        %v4584 = vpack.c.b16 %v4554, %v4553
        %v4585 = vpack.c.b16 %v4556, %v4555
        %v4586 = vpack.c.b16 %v4558, %v4557
        %v4587 = vpack.c.b16 %v4560, %v4559
        %v4588 = vpack.c.b16 %v4562, %v4561
        %v4589 = vpack.c.b16 %v4564, %v4563
        %v4590 = vpack.c.b16 %v4566, %v4565
        %v4591 = vpack.c.b16 %v4568, %v4567
        %v4592 = vpack.c.b16 %v4570, %v4569
        %v4593 = vpack.c.b16 %v4572, %v4571
        %v4594 = vpack.c.b16 %v4574, %v4573
        %v4595 = vpack.c.b16 %v4576, %v4575
        %v4596 = vpack.c.b16 %v4578, %v4577
        %v4597 = vpack.c.b16 %v4580, %v4579
        %v4598 = vpack.c.b16 %v4582, %v4581
        %4615 = vmatprep.subr.bf16.mxu0 0
        %4616 = vmatpush1.bf16.msra.mxu0 %v4583
        %4617 = vmatprep.subr.bf16.mxu0 0
        %4618 = vmatpush1.bf16.msra.mxu0 %v4584
        %4619 = vmatprep.subr.bf16.mxu0 0
        %4620 = vmatpush1.bf16.msra.mxu0 %v4585
        %4621 = vmatprep.subr.bf16.mxu0 0
        %4622 = vmatpush1.bf16.msra.mxu0 %v4586
        %4623 = vmatprep.subr.bf16.mxu0 0
        %4624 = vmatpush1.bf16.msra.mxu0 %v4587
        %4625 = vmatprep.subr.bf16.mxu0 0
        %4626 = vmatpush1.bf16.msra.mxu0 %v4588
        %4627 = vmatprep.subr.bf16.mxu0 0
        %4628 = vmatpush1.bf16.msra.mxu0 %v4589
        %4629 = vmatprep.subr.bf16.mxu0 0
        %4630 = vmatpush1.bf16.msra.mxu0 %v4590
        %4631 = vmatprep.subr.bf16.mxu0 0
        %4632 = vmatpush1.bf16.msra.mxu0 %v4591
        %4633 = vmatprep.subr.bf16.mxu0 0
        %4634 = vmatpush1.bf16.msra.mxu0 %v4592
        %4635 = vmatprep.subr.bf16.mxu0 0
        %4636 = vmatpush1.bf16.msra.mxu0 %v4593
        %4637 = vmatprep.subr.bf16.mxu0 0
        %4638 = vmatpush1.bf16.msra.mxu0 %v4594
        %4639 = vmatprep.subr.bf16.mxu0 0
        %4640 = vmatpush1.bf16.msra.mxu0 %v4595
        %4641 = vmatprep.subr.bf16.mxu0 0
        %4642 = vmatpush1.bf16.msra.mxu0 %v4596
        %4643 = vmatprep.subr.bf16.mxu0 0
        %4644 = vmatpush1.bf16.msra.mxu0 %v4597
        %4645 = vmatprep.subr.bf16.mxu0 0
        %4646 = vmatpush1.bf16.msra.mxu0 %v4598
        %4647 = vmatprep.mubr.bf16.mxu0 %v3105
        %4648 = vmatmul.mubr.bf16.gmra.mrb[0].mxu0 %v3104
        %v4649 = vpop.f32.mrb[0].mxu0
        %v4650 = vadd.f32 %v4265, %v4649
        %v4651 = vpop.f32.mrb[0].mxu0
        %v4652 = vpop.f32.mrb[0].mxu0
        %v4653 = vadd.f32 %v4268, %v4652
        %v4654 = vpop.f32.mrb[0].mxu0
        %4655 = vmatprep.mubr.bf16.mxu0 %v3107
        %4656 = vmatmul.mubr.bf16.gmra.mrb[0].mxu0 %v3106
        %v4657 = vpop.f32.mrb[0].mxu0
        %v4658 = vadd.f32 %v4273, %v4657
        %v4659 = vpop.f32.mrb[0].mxu0
        %v4660 = vpop.f32.mrb[0].mxu0
        %v4661 = vadd.f32 %v4276, %v4660
        %v4662 = vpop.f32.mrb[0].mxu0
        %4663 = vmatprep.mubr.bf16.mxu0 %v3109
        %4664 = vmatmul.mubr.bf16.gmra.mrb[0].mxu0 %v3108
        %v4665 = vpop.f32.mrb[0].mxu0
        %v4666 = vadd.f32 %v4281, %v4665
        %v4667 = vpop.f32.mrb[0].mxu0
        %v4668 = vpop.f32.mrb[0].mxu0
        %v4669 = vadd.f32 %v4284, %v4668
        %v4670 = vpop.f32.mrb[0].mxu0
        %4671 = vmatprep.mubr.bf16.mxu0 %v3111
        %4672 = vmatmul.mubr.bf16.gmra.mrb[0].mxu0 %v3110
        %v4673 = vpop.f32.mrb[0].mxu0
        %v4674 = vadd.f32 %v4289, %v4673
        %v4675 = vpop.f32.mrb[0].mxu0
        %v4676 = vpop.f32.mrb[0].mxu0
        %v4677 = vadd.f32 %v4292, %v4676
        %v4678 = vpop.f32.mrb[0].mxu0
        %4679 = vmatprep.mubr.bf16.mxu0 %v3113
        %4680 = vmatmul.mubr.bf16.gmra.mrb[0].mxu0 %v3112
        %v4681 = vpop.f32.mrb[0].mxu0
        %v4682 = vadd.f32 %v4297, %v4681
        %v4683 = vpop.f32.mrb[0].mxu0
        %v4684 = vpop.f32.mrb[0].mxu0
        %v4685 = vadd.f32 %v4300, %v4684
        %v4686 = vpop.f32.mrb[0].mxu0
        %4687 = vmatprep.mubr.bf16.mxu0 %v3115
        %4688 = vmatmul.mubr.bf16.gmra.mrb[0].mxu0 %v3114
        %v4689 = vpop.f32.mrb[0].mxu0
        %v4690 = vadd.f32 %v4305, %v4689
        %v4691 = vpop.f32.mrb[0].mxu0
        %v4692 = vpop.f32.mrb[0].mxu0
        %v4693 = vadd.f32 %v4308, %v4692
        %v4694 = vpop.f32.mrb[0].mxu0
        %4695 = vmatprep.mubr.bf16.mxu0 %v3117
        %4696 = vmatmul.mubr.bf16.gmra.mrb[0].mxu0 %v3116
        %v4697 = vpop.f32.mrb[0].mxu0
        %v4698 = vadd.f32 %v4313, %v4697
        %v4699 = vpop.f32.mrb[0].mxu0
        %v4700 = vpop.f32.mrb[0].mxu0
        %v4701 = vadd.f32 %v4316, %v4700
        %v4702 = vpop.f32.mrb[0].mxu0
        %4703 = vmatprep.mubr.bf16.mxu0 %v3119
        %4704 = vmatmul.mubr.bf16.gmra.mrb[0].mxu0 %v3118
        %v4705 = vpop.f32.mrb[0].mxu0
        %v4706 = vadd.f32 %v4321, %v4705
        %v4707 = vpop.f32.mrb[0].mxu0
        %v4708 = vpop.f32.mrb[0].mxu0
        %v4709 = vadd.f32 %v4324, %v4708
        %v4710 = vpop.f32.mrb[0].mxu0
        %4711 = vmatprep.mubr.bf16.mxu0 %v3121
        %4712 = vmatmul.mubr.bf16.gmra.mrb[0].mxu0 %v3120
        %v4713 = vpop.f32.mrb[0].mxu0
        %v4714 = vadd.f32 %v4329, %v4713
        %v4715 = vpop.f32.mrb[0].mxu0
        %v4716 = vpop.f32.mrb[0].mxu0
        %v4717 = vadd.f32 %v4332, %v4716
        %v4718 = vpop.f32.mrb[0].mxu0
        %4719 = vmatprep.mubr.bf16.mxu0 %v3123
        %4720 = vmatmul.mubr.bf16.gmra.mrb[0].mxu0 %v3122
        %v4721 = vpop.f32.mrb[0].mxu0
        %v4722 = vadd.f32 %v4337, %v4721
        %v4723 = vpop.f32.mrb[0].mxu0
        %v4724 = vpop.f32.mrb[0].mxu0
        %v4725 = vadd.f32 %v4340, %v4724
        %v4726 = vpop.f32.mrb[0].mxu0
        %4727 = vmatprep.mubr.bf16.mxu0 %v3125
        %4728 = vmatmul.mubr.bf16.gmra.mrb[0].mxu0 %v3124
        %v4729 = vpop.f32.mrb[0].mxu0
        %v4730 = vadd.f32 %v4345, %v4729
        %v4731 = vpop.f32.mrb[0].mxu0
        %v4732 = vpop.f32.mrb[0].mxu0
        %v4733 = vadd.f32 %v4348, %v4732
        %v4734 = vpop.f32.mrb[0].mxu0
        %4735 = vmatprep.mubr.bf16.mxu0 %v3127
        %4736 = vmatmul.mubr.bf16.gmra.mrb[0].mxu0 %v3126
        %v4737 = vpop.f32.mrb[0].mxu0
        %v4738 = vadd.f32 %v4353, %v4737
        %v4739 = vpop.f32.mrb[0].mxu0
        %v4740 = vpop.f32.mrb[0].mxu0
        %v4741 = vadd.f32 %v4356, %v4740
        %v4742 = vpop.f32.mrb[0].mxu0
        %4743 = vmatprep.mubr.bf16.mxu0 %v3129
        %4744 = vmatmul.mubr.bf16.gmra.mrb[0].mxu0 %v3128
        %v4745 = vpop.f32.mrb[0].mxu0
        %v4746 = vadd.f32 %v4361, %v4745
        %v4747 = vpop.f32.mrb[0].mxu0
        %v4748 = vpop.f32.mrb[0].mxu0
        %v4749 = vadd.f32 %v4364, %v4748
        %v4750 = vpop.f32.mrb[0].mxu0
        %4751 = vmatprep.mubr.bf16.mxu0 %v3131
        %4752 = vmatmul.mubr.bf16.gmra.mrb[0].mxu0 %v3130
        %v4753 = vpop.f32.mrb[0].mxu0
        %v4754 = vadd.f32 %v4369, %v4753
        %v4755 = vpop.f32.mrb[0].mxu0
        %v4756 = vpop.f32.mrb[0].mxu0
        %v4757 = vadd.f32 %v4372, %v4756
        %v4758 = vpop.f32.mrb[0].mxu0
        %4759 = vmatprep.mubr.bf16.mxu0 %v3133
        %4760 = vmatmul.mubr.bf16.gmra.mrb[0].mxu0 %v3132
        %v4761 = vpop.f32.mrb[0].mxu0
        %v4762 = vadd.f32 %v4377, %v4761
        %v4763 = vpop.f32.mrb[0].mxu0
        %v4764 = vpop.f32.mrb[0].mxu0
        %v4765 = vadd.f32 %v4380, %v4764
        %v4766 = vpop.f32.mrb[0].mxu0
        %4767 = vmatprep.mubr.bf16.mxu0 %v3135
        %4768 = vmatmul.mubr.bf16.gmra.mrb[0].mxu0 %v3134
        %v4769 = vpop.f32.mrb[0].mxu0
        %v4770 = vadd.f32 %v4385, %v4769
        %v4771 = vpop.f32.mrb[0].mxu0
        %v4772 = vpop.f32.mrb[0].mxu0
        %v4773 = vadd.f32 %v4388, %v4772
        %v4774 = vpop.f32.mrb[0].mxu0
        %4775 = vmatprep.mubr.bf16.mxu0 %v3137
        %4776 = vmatmul.mubr.bf16.gmra.mrb[0].mxu0 %v3136
        %v4777 = vpop.f32.mrb[0].mxu0
        %v4778 = vadd.f32 %v4393, %v4777
        %v4779 = vpop.f32.mrb[0].mxu0
        %v4780 = vpop.f32.mrb[0].mxu0
        %v4781 = vadd.f32 %v4396, %v4780
        %v4782 = vpop.f32.mrb[0].mxu0
        %4783 = vmatprep.mubr.bf16.mxu0 %v3139
        %4784 = vmatmul.mubr.bf16.gmra.mrb[0].mxu0 %v3138
        %v4785 = vpop.f32.mrb[0].mxu0
        %v4786 = vadd.f32 %v4401, %v4785
        %v4787 = vpop.f32.mrb[0].mxu0
        %v4788 = vpop.f32.mrb[0].mxu0
        %v4789 = vadd.f32 %v4404, %v4788
        %v4790 = vpop.f32.mrb[0].mxu0
        %4791 = vmatprep.mubr.bf16.mxu0 %v3141
        %4792 = vmatmul.mubr.bf16.gmra.mrb[0].mxu0 %v3140
        %v4793 = vpop.f32.mrb[0].mxu0
        %v4794 = vadd.f32 %v4409, %v4793
        %v4795 = vpop.f32.mrb[0].mxu0
        %v4796 = vpop.f32.mrb[0].mxu0
        %v4797 = vadd.f32 %v4412, %v4796
        %v4798 = vpop.f32.mrb[0].mxu0
        %4799 = vmatprep.mubr.bf16.mxu0 %v3143
        %4800 = vmatmul.mubr.bf16.gmra.mrb[0].mxu0 %v3142
        %v4801 = vpop.f32.mrb[0].mxu0
        %v4802 = vadd.f32 %v4417, %v4801
        %v4803 = vpop.f32.mrb[0].mxu0
        %v4804 = vpop.f32.mrb[0].mxu0
        %v4805 = vadd.f32 %v4420, %v4804
        %v4806 = vpop.f32.mrb[0].mxu0
        %4807 = vmatprep.mubr.bf16.mxu0 %v3145
        %4808 = vmatmul.mubr.bf16.gmra.mrb[0].mxu0 %v3144
        %v4809 = vpop.f32.mrb[0].mxu0
        %v4810 = vadd.f32 %v4425, %v4809
        %v4811 = vpop.f32.mrb[0].mxu0
        %v4812 = vpop.f32.mrb[0].mxu0
        %v4813 = vadd.f32 %v4428, %v4812
        %v4814 = vpop.f32.mrb[0].mxu0
        %4815 = vmatprep.mubr.bf16.mxu0 %v3147
        %4816 = vmatmul.mubr.bf16.gmra.mrb[0].mxu0 %v3146
        %v4817 = vpop.f32.mrb[0].mxu0
        %v4818 = vadd.f32 %v4433, %v4817
        %v4819 = vpop.f32.mrb[0].mxu0
        %v4820 = vpop.f32.mrb[0].mxu0
        %v4821 = vadd.f32 %v4436, %v4820
        %v4822 = vpop.f32.mrb[0].mxu0
        %4823 = vmatprep.mubr.bf16.mxu0 %v3149
        %4824 = vmatmul.mubr.bf16.gmra.mrb[0].mxu0 %v3148
        %v4825 = vpop.f32.mrb[0].mxu0
        %v4826 = vadd.f32 %v4441, %v4825
        %v4827 = vpop.f32.mrb[0].mxu0
        %v4828 = vpop.f32.mrb[0].mxu0
        %v4829 = vadd.f32 %v4444, %v4828
        %v4830 = vpop.f32.mrb[0].mxu0
        %4831 = vmatprep.mubr.bf16.mxu0 %v3151
        %4832 = vmatmul.mubr.bf16.gmra.mrb[0].mxu0 %v3150
        %v4833 = vpop.f32.mrb[0].mxu0
        %v4834 = vadd.f32 %v4449, %v4833
        %v4835 = vpop.f32.mrb[0].mxu0
        %v4836 = vpop.f32.mrb[0].mxu0
        %v4837 = vadd.f32 %v4452, %v4836
        %v4838 = vpop.f32.mrb[0].mxu0
        %4839 = vmatprep.mubr.bf16.mxu0 %v3153
        %4840 = vmatmul.mubr.bf16.gmra.mrb[0].mxu0 %v3152
        %v4841 = vpop.f32.mrb[0].mxu0
        %v4842 = vadd.f32 %v4457, %v4841
        %v4843 = vpop.f32.mrb[0].mxu0
        %v4844 = vpop.f32.mrb[0].mxu0
        %v4845 = vadd.f32 %v4460, %v4844
        %v4846 = vpop.f32.mrb[0].mxu0
        %4847 = vmatprep.mubr.bf16.mxu0 %v3155
        %4848 = vmatmul.mubr.bf16.gmra.mrb[0].mxu0 %v3154
        %v4849 = vpop.f32.mrb[0].mxu0
        %v4850 = vadd.f32 %v4465, %v4849
        %v4851 = vpop.f32.mrb[0].mxu0
        %v4852 = vpop.f32.mrb[0].mxu0
        %v4853 = vadd.f32 %v4468, %v4852
        %v4854 = vpop.f32.mrb[0].mxu0
        %4855 = vmatprep.mubr.bf16.mxu0 %v3157
        %4856 = vmatmul.mubr.bf16.gmra.mrb[0].mxu0 %v3156
        %v4857 = vpop.f32.mrb[0].mxu0
        %v4858 = vadd.f32 %v4473, %v4857
        %v4859 = vpop.f32.mrb[0].mxu0
        %v4860 = vpop.f32.mrb[0].mxu0
        %v4861 = vadd.f32 %v4476, %v4860
        %v4862 = vpop.f32.mrb[0].mxu0
        %4863 = vmatprep.mubr.bf16.mxu0 %v3159
        %4864 = vmatmul.mubr.bf16.gmra.mrb[0].mxu0 %v3158
        %v4865 = vpop.f32.mrb[0].mxu0
        %v4866 = vadd.f32 %v4481, %v4865
        %v4867 = vpop.f32.mrb[0].mxu0
        %v4868 = vpop.f32.mrb[0].mxu0
        %v4869 = vadd.f32 %v4484, %v4868
        %v4870 = vpop.f32.mrb[0].mxu0
        %4871 = vmatprep.mubr.bf16.mxu0 %v3161
        %4872 = vmatmul.mubr.bf16.gmra.mrb[0].mxu0 %v3160
        %v4873 = vpop.f32.mrb[0].mxu0
        %v4874 = vadd.f32 %v4489, %v4873
        %v4875 = vpop.f32.mrb[0].mxu0
        %v4876 = vpop.f32.mrb[0].mxu0
        %v4877 = vadd.f32 %v4492, %v4876
        %v4878 = vpop.f32.mrb[0].mxu0
        %4879 = vmatprep.mubr.bf16.mxu0 %v3163
        %4880 = vmatmul.mubr.bf16.gmra.mrb[0].mxu0 %v3162
        %v4881 = vpop.f32.mrb[0].mxu0
        %v4882 = vadd.f32 %v4497, %v4881
        %v4883 = vpop.f32.mrb[0].mxu0
        %v4884 = vpop.f32.mrb[0].mxu0
        %v4885 = vadd.f32 %v4500, %v4884
        %v4886 = vpop.f32.mrb[0].mxu0
        %4887 = vmatprep.mubr.bf16.mxu0 %v3165
        %4888 = vmatmul.mubr.bf16.gmra.mrb[0].mxu0 %v3164
        %v4889 = vpop.f32.mrb[0].mxu0
        %v4890 = vadd.f32 %v4505, %v4889
        %v4891 = vpop.f32.mrb[0].mxu0
        %v4892 = vpop.f32.mrb[0].mxu0
        %v4893 = vadd.f32 %v4508, %v4892
        %v4894 = vpop.f32.mrb[0].mxu0
        %4895 = vmatprep.mubr.bf16.mxu0 %v3167
        %4896 = vmatmul.mubr.bf16.gmra.mrb[0].mxu0 %v3166
        %v4897 = vpop.f32.mrb[0].mxu0
        %v4898 = vadd.f32 %v4513, %v4897
        %v4899 = vpop.f32.mrb[0].mxu0
        %v4900 = vpop.f32.mrb[0].mxu0
        %v4901 = vadd.f32 %v4516, %v4900
        %v4902 = vpop.f32.mrb[0].mxu0
        %4903 = vdwg.mxu0
        %s4904 = smul.addr %s4064, 4
        %s4905 = scalar_lea.vmem %s3, %s4904
        %v4906 = vld [vmem:[%s4905] sm:$0xf]
        %v4907 = vld [vmem:[%s4905 + $0x4] sm:$0xf]
        %v4908 = vld [vmem:[%s4905 + $0x8] sm:$0xf]
        %v4909 = vld [vmem:[%s4905 + $0xc] sm:$0xf]
        %v4910 = vld [vmem:[%s4905 + $0x10] sm:$0xf]
        %v4911 = vld [vmem:[%s4905 + $0x14] sm:$0xf]
        %v4912 = vld [vmem:[%s4905 + $0x18] sm:$0xf]
        %v4913 = vld [vmem:[%s4905 + $0x1c] sm:$0xf]
        %v4914 = vld [vmem:[%s4905 + $0x20] sm:$0xf]
        %v4915 = vld [vmem:[%s4905 + $0x24] sm:$0xf]
        %v4916 = vld [vmem:[%s4905 + $0x28] sm:$0xf]
        %v4917 = vld [vmem:[%s4905 + $0x2c] sm:$0xf]
        %v4918 = vld [vmem:[%s4905 + $0x30] sm:$0xf]
        %v4919 = vld [vmem:[%s4905 + $0x34] sm:$0xf]
        %v4920 = vld [vmem:[%s4905 + $0x38] sm:$0xf]
        %v4921 = vld [vmem:[%s4905 + $0x3c] sm:$0xf]
        %v4922 = vld [vmem:[%s4905 + $0x40] sm:$0xf]
        %v4923 = vld [vmem:[%s4905 + $0x44] sm:$0xf]
        %v4924 = vld [vmem:[%s4905 + $0x48] sm:$0xf]
        %v4925 = vld [vmem:[%s4905 + $0x4c] sm:$0xf]
        %v4926 = vld [vmem:[%s4905 + $0x50] sm:$0xf]
        %v4927 = vld [vmem:[%s4905 + $0x54] sm:$0xf]
        %v4928 = vld [vmem:[%s4905 + $0x58] sm:$0xf]
        %v4929 = vld [vmem:[%s4905 + $0x5c] sm:$0xf]
        %v4930 = vld [vmem:[%s4905 + $0x60] sm:$0xf]
        %v4931 = vld [vmem:[%s4905 + $0x64] sm:$0xf]
        %v4932 = vld [vmem:[%s4905 + $0x68] sm:$0xf]
        %v4933 = vld [vmem:[%s4905 + $0x6c] sm:$0xf]
        %v4934 = vld [vmem:[%s4905 + $0x70] sm:$0xf]
        %v4935 = vld [vmem:[%s4905 + $0x74] sm:$0xf]
        %v4936 = vld [vmem:[%s4905 + $0x78] sm:$0xf]
        %v4937 = vld [vmem:[%s4905 + $0x7c] sm:$0xf]
        %v4970 = vunpack.c.l.b16 %v4906
        %v4971 = vunpack.c.l.b16 %v4907
        %v4972 = vunpack.c.l.b16 %v4908
        %v4973 = vunpack.c.l.b16 %v4909
        %v4974 = vunpack.c.l.b16 %v4910
        %v4975 = vunpack.c.l.b16 %v4911
        %v4976 = vunpack.c.l.b16 %v4912
        %v4977 = vunpack.c.l.b16 %v4913
        %v4978 = vunpack.c.l.b16 %v4914
        %v4979 = vunpack.c.l.b16 %v4915
        %v4980 = vunpack.c.l.b16 %v4916
        %v4981 = vunpack.c.l.b16 %v4917
        %v4982 = vunpack.c.l.b16 %v4918
        %v4983 = vunpack.c.l.b16 %v4919
        %v4984 = vunpack.c.l.b16 %v4920
        %v4985 = vunpack.c.l.b16 %v4921
        %v4986 = vunpack.c.l.b16 %v4922
        %v4987 = vunpack.c.l.b16 %v4923
        %v4988 = vunpack.c.l.b16 %v4924
        %v4989 = vunpack.c.l.b16 %v4925
        %v4990 = vunpack.c.l.b16 %v4926
        %v4991 = vunpack.c.l.b16 %v4927
        %v4992 = vunpack.c.l.b16 %v4928
        %v4993 = vunpack.c.l.b16 %v4929
        %v4994 = vunpack.c.l.b16 %v4930
        %v4995 = vunpack.c.l.b16 %v4931
        %v4996 = vunpack.c.l.b16 %v4932
        %v4997 = vunpack.c.l.b16 %v4933
        %v4998 = vunpack.c.l.b16 %v4934
        %v4999 = vunpack.c.l.b16 %v4935
        %v5000 = vunpack.c.l.b16 %v4936
        %v5001 = vunpack.c.l.b16 %v4937
        %v5002 = vpack.c.b16 %v4971, %v4970
        %v5003 = vpack.c.b16 %v4973, %v4972
        %v5004 = vpack.c.b16 %v4975, %v4974
        %v5005 = vpack.c.b16 %v4977, %v4976
        %v5006 = vpack.c.b16 %v4979, %v4978
        %v5007 = vpack.c.b16 %v4981, %v4980
        %v5008 = vpack.c.b16 %v4983, %v4982
        %v5009 = vpack.c.b16 %v4985, %v4984
        %v5010 = vpack.c.b16 %v4987, %v4986
        %v5011 = vpack.c.b16 %v4989, %v4988
        %v5012 = vpack.c.b16 %v4991, %v4990
        %v5013 = vpack.c.b16 %v4993, %v4992
        %v5014 = vpack.c.b16 %v4995, %v4994
        %v5015 = vpack.c.b16 %v4997, %v4996
        %v5016 = vpack.c.b16 %v4999, %v4998
        %v5017 = vpack.c.b16 %v5001, %v5000
        %5034 = vmatprep.subr.bf16.mxu0 0
        %5035 = vmatpush1.bf16.msra.mxu0 %v5002
        %5036 = vmatprep.subr.bf16.mxu0 0
        %5037 = vmatpush1.bf16.msra.mxu0 %v5003
        %5038 = vmatprep.subr.bf16.mxu0 0
        %5039 = vmatpush1.bf16.msra.mxu0 %v5004
        %5040 = vmatprep.subr.bf16.mxu0 0
        %5041 = vmatpush1.bf16.msra.mxu0 %v5005
        %5042 = vmatprep.subr.bf16.mxu0 0
        %5043 = vmatpush1.bf16.msra.mxu0 %v5006
        %5044 = vmatprep.subr.bf16.mxu0 0
        %5045 = vmatpush1.bf16.msra.mxu0 %v5007
        %5046 = vmatprep.subr.bf16.mxu0 0
        %5047 = vmatpush1.bf16.msra.mxu0 %v5008
        %5048 = vmatprep.subr.bf16.mxu0 0
        %5049 = vmatpush1.bf16.msra.mxu0 %v5009
        %5050 = vmatprep.subr.bf16.mxu0 0
        %5051 = vmatpush1.bf16.msra.mxu0 %v5010
        %5052 = vmatprep.subr.bf16.mxu0 0
        %5053 = vmatpush1.bf16.msra.mxu0 %v5011
        %5054 = vmatprep.subr.bf16.mxu0 0
        %5055 = vmatpush1.bf16.msra.mxu0 %v5012
        %5056 = vmatprep.subr.bf16.mxu0 0
        %5057 = vmatpush1.bf16.msra.mxu0 %v5013
        %5058 = vmatprep.subr.bf16.mxu0 0
        %5059 = vmatpush1.bf16.msra.mxu0 %v5014
        %5060 = vmatprep.subr.bf16.mxu0 0
        %5061 = vmatpush1.bf16.msra.mxu0 %v5015
        %5062 = vmatprep.subr.bf16.mxu0 0
        %5063 = vmatpush1.bf16.msra.mxu0 %v5016
        %5064 = vmatprep.subr.bf16.mxu0 0
        %5065 = vmatpush1.bf16.msra.mxu0 %v5017
        %5066 = vmatprep.mubr.bf16.mxu0 %v4001
        %5067 = vmatmul.mubr.bf16.gmra.mrb[0].mxu0 %v4000
        %v5068 = vpop.f32.mrb[0].mxu0
        %v5069 = vadd.f32 0.0, %v5068
        %v5070 = vpop.f32.mrb[0].mxu0
        %v5071 = vpop.f32.mrb[0].mxu0
        %v5072 = vadd.f32 0.0, %v5071
        %v5073 = vpop.f32.mrb[0].mxu0
        %5074 = vmatprep.mubr.bf16.mxu0 %v4003
        %5075 = vmatmul.mubr.bf16.gmra.mrb[0].mxu0 %v4002
        %v5076 = vpop.f32.mrb[0].mxu0
        %v5077 = vadd.f32 0.0, %v5076
        %v5078 = vpop.f32.mrb[0].mxu0
        %v5079 = vpop.f32.mrb[0].mxu0
        %v5080 = vadd.f32 0.0, %v5079
        %v5081 = vpop.f32.mrb[0].mxu0
        %5082 = vmatprep.mubr.bf16.mxu0 %v4005
        %5083 = vmatmul.mubr.bf16.gmra.mrb[0].mxu0 %v4004
        %v5084 = vpop.f32.mrb[0].mxu0
        %v5085 = vadd.f32 0.0, %v5084
        %v5086 = vpop.f32.mrb[0].mxu0
        %v5087 = vpop.f32.mrb[0].mxu0
        %v5088 = vadd.f32 0.0, %v5087
        %v5089 = vpop.f32.mrb[0].mxu0
        %5090 = vmatprep.mubr.bf16.mxu0 %v4007
        %5091 = vmatmul.mubr.bf16.gmra.mrb[0].mxu0 %v4006
        %v5092 = vpop.f32.mrb[0].mxu0
        %v5093 = vadd.f32 0.0, %v5092
        %v5094 = vpop.f32.mrb[0].mxu0
        %v5095 = vpop.f32.mrb[0].mxu0
        %v5096 = vadd.f32 0.0, %v5095
        %v5097 = vpop.f32.mrb[0].mxu0
        %5098 = vmatprep.mubr.bf16.mxu0 %v4009
        %5099 = vmatmul.mubr.bf16.gmra.mrb[0].mxu0 %v4008
        %v5100 = vpop.f32.mrb[0].mxu0
        %v5101 = vadd.f32 0.0, %v5100
        %v5102 = vpop.f32.mrb[0].mxu0
        %v5103 = vpop.f32.mrb[0].mxu0
        %v5104 = vadd.f32 0.0, %v5103
        %v5105 = vpop.f32.mrb[0].mxu0
        %5106 = vmatprep.mubr.bf16.mxu0 %v4011
        %5107 = vmatmul.mubr.bf16.gmra.mrb[0].mxu0 %v4010
        %v5108 = vpop.f32.mrb[0].mxu0
        %v5109 = vadd.f32 0.0, %v5108
        %v5110 = vpop.f32.mrb[0].mxu0
        %v5111 = vpop.f32.mrb[0].mxu0
        %v5112 = vadd.f32 0.0, %v5111
        %v5113 = vpop.f32.mrb[0].mxu0
        %5114 = vmatprep.mubr.bf16.mxu0 %v4013
        %5115 = vmatmul.mubr.bf16.gmra.mrb[0].mxu0 %v4012
        %v5116 = vpop.f32.mrb[0].mxu0
        %v5117 = vadd.f32 0.0, %v5116
        %v5118 = vpop.f32.mrb[0].mxu0
        %v5119 = vpop.f32.mrb[0].mxu0
        %v5120 = vadd.f32 0.0, %v5119
        %v5121 = vpop.f32.mrb[0].mxu0
        %5122 = vmatprep.mubr.bf16.mxu0 %v4015
        %5123 = vmatmul.mubr.bf16.gmra.mrb[0].mxu0 %v4014
        %v5124 = vpop.f32.mrb[0].mxu0
        %v5125 = vadd.f32 0.0, %v5124
        %v5126 = vpop.f32.mrb[0].mxu0
        %v5127 = vpop.f32.mrb[0].mxu0
        %v5128 = vadd.f32 0.0, %v5127
        %v5129 = vpop.f32.mrb[0].mxu0
        %5130 = vmatprep.mubr.bf16.mxu0 %v4017
        %5131 = vmatmul.mubr.bf16.gmra.mrb[0].mxu0 %v4016
        %v5132 = vpop.f32.mrb[0].mxu0
        %v5133 = vadd.f32 0.0, %v5132
        %v5134 = vpop.f32.mrb[0].mxu0
        %v5135 = vpop.f32.mrb[0].mxu0
        %v5136 = vadd.f32 0.0, %v5135
        %v5137 = vpop.f32.mrb[0].mxu0
        %5138 = vmatprep.mubr.bf16.mxu0 %v4019
        %5139 = vmatmul.mubr.bf16.gmra.mrb[0].mxu0 %v4018
        %v5140 = vpop.f32.mrb[0].mxu0
        %v5141 = vadd.f32 0.0, %v5140
        %v5142 = vpop.f32.mrb[0].mxu0
        %v5143 = vpop.f32.mrb[0].mxu0
        %v5144 = vadd.f32 0.0, %v5143
        %v5145 = vpop.f32.mrb[0].mxu0
        %5146 = vmatprep.mubr.bf16.mxu0 %v4021
        %5147 = vmatmul.mubr.bf16.gmra.mrb[0].mxu0 %v4020
        %v5148 = vpop.f32.mrb[0].mxu0
        %v5149 = vadd.f32 0.0, %v5148
        %v5150 = vpop.f32.mrb[0].mxu0
        %v5151 = vpop.f32.mrb[0].mxu0
        %v5152 = vadd.f32 0.0, %v5151
        %v5153 = vpop.f32.mrb[0].mxu0
        %5154 = vmatprep.mubr.bf16.mxu0 %v4023
        %5155 = vmatmul.mubr.bf16.gmra.mrb[0].mxu0 %v4022
        %v5156 = vpop.f32.mrb[0].mxu0
        %v5157 = vadd.f32 0.0, %v5156
        %v5158 = vpop.f32.mrb[0].mxu0
        %v5159 = vpop.f32.mrb[0].mxu0
        %v5160 = vadd.f32 0.0, %v5159
        %v5161 = vpop.f32.mrb[0].mxu0
        %5162 = vmatprep.mubr.bf16.mxu0 %v4025
        %5163 = vmatmul.mubr.bf16.gmra.mrb[0].mxu0 %v4024
        %v5164 = vpop.f32.mrb[0].mxu0
        %v5165 = vadd.f32 0.0, %v5164
        %v5166 = vpop.f32.mrb[0].mxu0
        %v5167 = vpop.f32.mrb[0].mxu0
        %v5168 = vadd.f32 0.0, %v5167
        %v5169 = vpop.f32.mrb[0].mxu0
        %5170 = vmatprep.mubr.bf16.mxu0 %v4027
        %5171 = vmatmul.mubr.bf16.gmra.mrb[0].mxu0 %v4026
        %v5172 = vpop.f32.mrb[0].mxu0
        %v5173 = vadd.f32 0.0, %v5172
        %v5174 = vpop.f32.mrb[0].mxu0
        %v5175 = vpop.f32.mrb[0].mxu0
        %v5176 = vadd.f32 0.0, %v5175
        %v5177 = vpop.f32.mrb[0].mxu0
        %5178 = vmatprep.mubr.bf16.mxu0 %v4029
        %5179 = vmatmul.mubr.bf16.gmra.mrb[0].mxu0 %v4028
        %v5180 = vpop.f32.mrb[0].mxu0
        %v5181 = vadd.f32 0.0, %v5180
        %v5182 = vpop.f32.mrb[0].mxu0
        %v5183 = vpop.f32.mrb[0].mxu0
        %v5184 = vadd.f32 0.0, %v5183
        %v5185 = vpop.f32.mrb[0].mxu0
        %5186 = vmatprep.mubr.bf16.mxu0 %v4031
        %5187 = vmatmul.mubr.bf16.gmra.mrb[0].mxu0 %v4030
        %v5188 = vpop.f32.mrb[0].mxu0
        %v5189 = vadd.f32 0.0, %v5188
        %v5190 = vpop.f32.mrb[0].mxu0
        %v5191 = vpop.f32.mrb[0].mxu0
        %v5192 = vadd.f32 0.0, %v5191
        %v5193 = vpop.f32.mrb[0].mxu0
        %5194 = vmatprep.mubr.bf16.mxu0 %v4033
        %5195 = vmatmul.mubr.bf16.gmra.mrb[0].mxu0 %v4032
        %v5196 = vpop.f32.mrb[0].mxu0
        %v5197 = vadd.f32 0.0, %v5196
        %v5198 = vpop.f32.mrb[0].mxu0
        %v5199 = vpop.f32.mrb[0].mxu0
        %v5200 = vadd.f32 0.0, %v5199
        %v5201 = vpop.f32.mrb[0].mxu0
        %5202 = vmatprep.mubr.bf16.mxu0 %v4035
        %5203 = vmatmul.mubr.bf16.gmra.mrb[0].mxu0 %v4034
        %v5204 = vpop.f32.mrb[0].mxu0
        %v5205 = vadd.f32 0.0, %v5204
        %v5206 = vpop.f32.mrb[0].mxu0
        %v5207 = vpop.f32.mrb[0].mxu0
        %v5208 = vadd.f32 0.0, %v5207
        %v5209 = vpop.f32.mrb[0].mxu0
        %5210 = vmatprep.mubr.bf16.mxu0 %v4037
        %5211 = vmatmul.mubr.bf16.gmra.mrb[0].mxu0 %v4036
        %v5212 = vpop.f32.mrb[0].mxu0
        %v5213 = vadd.f32 0.0, %v5212
        %v5214 = vpop.f32.mrb[0].mxu0
        %v5215 = vpop.f32.mrb[0].mxu0
        %v5216 = vadd.f32 0.0, %v5215
        %v5217 = vpop.f32.mrb[0].mxu0
        %5218 = vmatprep.mubr.bf16.mxu0 %v4039
        %5219 = vmatmul.mubr.bf16.gmra.mrb[0].mxu0 %v4038
        %v5220 = vpop.f32.mrb[0].mxu0
        %v5221 = vadd.f32 0.0, %v5220
        %v5222 = vpop.f32.mrb[0].mxu0
        %v5223 = vpop.f32.mrb[0].mxu0
        %v5224 = vadd.f32 0.0, %v5223
        %v5225 = vpop.f32.mrb[0].mxu0
        %5226 = vmatprep.mubr.bf16.mxu0 %v4041
        %5227 = vmatmul.mubr.bf16.gmra.mrb[0].mxu0 %v4040
        %v5228 = vpop.f32.mrb[0].mxu0
        %v5229 = vadd.f32 0.0, %v5228
        %v5230 = vpop.f32.mrb[0].mxu0
        %v5231 = vpop.f32.mrb[0].mxu0
        %v5232 = vadd.f32 0.0, %v5231
        %v5233 = vpop.f32.mrb[0].mxu0
        %5234 = vmatprep.mubr.bf16.mxu0 %v4043
        %5235 = vmatmul.mubr.bf16.gmra.mrb[0].mxu0 %v4042
        %v5236 = vpop.f32.mrb[0].mxu0
        %v5237 = vadd.f32 0.0, %v5236
        %v5238 = vpop.f32.mrb[0].mxu0
        %v5239 = vpop.f32.mrb[0].mxu0
        %v5240 = vadd.f32 0.0, %v5239
        %v5241 = vpop.f32.mrb[0].mxu0
        %5242 = vmatprep.mubr.bf16.mxu0 %v4045
        %5243 = vmatmul.mubr.bf16.gmra.mrb[0].mxu0 %v4044
        %v5244 = vpop.f32.mrb[0].mxu0
        %v5245 = vadd.f32 0.0, %v5244
        %v5246 = vpop.f32.mrb[0].mxu0
        %v5247 = vpop.f32.mrb[0].mxu0
        %v5248 = vadd.f32 0.0, %v5247
        %v5249 = vpop.f32.mrb[0].mxu0
        %5250 = vmatprep.mubr.bf16.mxu0 %v4047
        %5251 = vmatmul.mubr.bf16.gmra.mrb[0].mxu0 %v4046
        %v5252 = vpop.f32.mrb[0].mxu0
        %v5253 = vadd.f32 0.0, %v5252
        %v5254 = vpop.f32.mrb[0].mxu0
        %v5255 = vpop.f32.mrb[0].mxu0
        %v5256 = vadd.f32 0.0, %v5255
        %v5257 = vpop.f32.mrb[0].mxu0
        %5258 = vmatprep.mubr.bf16.mxu0 %v4049
        %5259 = vmatmul.mubr.bf16.gmra.mrb[0].mxu0 %v4048
        %v5260 = vpop.f32.mrb[0].mxu0
        %v5261 = vadd.f32 0.0, %v5260
        %v5262 = vpop.f32.mrb[0].mxu0
        %v5263 = vpop.f32.mrb[0].mxu0
        %v5264 = vadd.f32 0.0, %v5263
        %v5265 = vpop.f32.mrb[0].mxu0
        %5266 = vmatprep.mubr.bf16.mxu0 %v4051
        %5267 = vmatmul.mubr.bf16.gmra.mrb[0].mxu0 %v4050
        %v5268 = vpop.f32.mrb[0].mxu0
        %v5269 = vadd.f32 0.0, %v5268
        %v5270 = vpop.f32.mrb[0].mxu0
        %v5271 = vpop.f32.mrb[0].mxu0
        %v5272 = vadd.f32 0.0, %v5271
        %v5273 = vpop.f32.mrb[0].mxu0
        %5274 = vmatprep.mubr.bf16.mxu0 %v4053
        %5275 = vmatmul.mubr.bf16.gmra.mrb[0].mxu0 %v4052
        %v5276 = vpop.f32.mrb[0].mxu0
        %v5277 = vadd.f32 0.0, %v5276
        %v5278 = vpop.f32.mrb[0].mxu0
        %v5279 = vpop.f32.mrb[0].mxu0
        %v5280 = vadd.f32 0.0, %v5279
        %v5281 = vpop.f32.mrb[0].mxu0
        %5282 = vmatprep.mubr.bf16.mxu0 %v4055
        %5283 = vmatmul.mubr.bf16.gmra.mrb[0].mxu0 %v4054
        %v5284 = vpop.f32.mrb[0].mxu0
        %v5285 = vadd.f32 0.0, %v5284
        %v5286 = vpop.f32.mrb[0].mxu0
        %v5287 = vpop.f32.mrb[0].mxu0
        %v5288 = vadd.f32 0.0, %v5287
        %v5289 = vpop.f32.mrb[0].mxu0
        %5290 = vmatprep.mubr.bf16.mxu0 %v4057
        %5291 = vmatmul.mubr.bf16.gmra.mrb[0].mxu0 %v4056
        %v5292 = vpop.f32.mrb[0].mxu0
        %v5293 = vadd.f32 0.0, %v5292
        %v5294 = vpop.f32.mrb[0].mxu0
        %v5295 = vpop.f32.mrb[0].mxu0
        %v5296 = vadd.f32 0.0, %v5295
        %v5297 = vpop.f32.mrb[0].mxu0
        %5298 = vmatprep.mubr.bf16.mxu0 %v4059
        %5299 = vmatmul.mubr.bf16.gmra.mrb[0].mxu0 %v4058
        %v5300 = vpop.f32.mrb[0].mxu0
        %v5301 = vadd.f32 0.0, %v5300
        %v5302 = vpop.f32.mrb[0].mxu0
        %v5303 = vpop.f32.mrb[0].mxu0
        %v5304 = vadd.f32 0.0, %v5303
        %v5305 = vpop.f32.mrb[0].mxu0
        %5306 = vmatprep.mubr.bf16.mxu0 %v4061
        %5307 = vmatmul.mubr.bf16.gmra.mrb[0].mxu0 %v4060
        %v5308 = vpop.f32.mrb[0].mxu0
        %v5309 = vadd.f32 0.0, %v5308
        %v5310 = vpop.f32.mrb[0].mxu0
        %v5311 = vpop.f32.mrb[0].mxu0
        %v5312 = vadd.f32 0.0, %v5311
        %v5313 = vpop.f32.mrb[0].mxu0
        %5314 = vmatprep.mubr.bf16.mxu0 %v4063
        %5315 = vmatmul.mubr.bf16.gmra.mrb[0].mxu0 %v4062
        %v5316 = vpop.f32.mrb[0].mxu0
        %v5317 = vadd.f32 0.0, %v5316
        %v5318 = vpop.f32.mrb[0].mxu0
        %v5319 = vpop.f32.mrb[0].mxu0
        %v5320 = vadd.f32 0.0, %v5319
        %v5321 = vpop.f32.mrb[0].mxu0
        %5322 = vdwg.mxu0
        %v5323 = vadd.f32 %v4650, %v5069
        %v5324 = vadd.f32 %v4653, %v5072
        %v5325 = vadd.f32 %v4658, %v5077
        %v5326 = vadd.f32 %v4661, %v5080
        %v5327 = vadd.f32 %v4666, %v5085
        %v5328 = vadd.f32 %v4669, %v5088
        %v5329 = vadd.f32 %v4674, %v5093
        %v5330 = vadd.f32 %v4677, %v5096
        %v5331 = vadd.f32 %v4682, %v5101
        %v5332 = vadd.f32 %v4685, %v5104
        %v5333 = vadd.f32 %v4690, %v5109
        %v5334 = vadd.f32 %v4693, %v5112
        %v5335 = vadd.f32 %v4698, %v5117
        %v5336 = vadd.f32 %v4701, %v5120
        %v5337 = vadd.f32 %v4706, %v5125
        %v5338 = vadd.f32 %v4709, %v5128
        %v5339 = vadd.f32 %v4714, %v5133
        %v5340 = vadd.f32 %v4717, %v5136
        %v5341 = vadd.f32 %v4722, %v5141
        %v5342 = vadd.f32 %v4725, %v5144
        %v5343 = vadd.f32 %v4730, %v5149
        %v5344 = vadd.f32 %v4733, %v5152
        %v5345 = vadd.f32 %v4738, %v5157
        %v5346 = vadd.f32 %v4741, %v5160
        %v5347 = vadd.f32 %v4746, %v5165
        %v5348 = vadd.f32 %v4749, %v5168
        %v5349 = vadd.f32 %v4754, %v5173
        %v5350 = vadd.f32 %v4757, %v5176
        %v5351 = vadd.f32 %v4762, %v5181
        %v5352 = vadd.f32 %v4765, %v5184
        %v5353 = vadd.f32 %v4770, %v5189
        %v5354 = vadd.f32 %v4773, %v5192
        %v5355 = vadd.f32 %v4778, %v5197
        %v5356 = vadd.f32 %v4781, %v5200
        %v5357 = vadd.f32 %v4786, %v5205
        %v5358 = vadd.f32 %v4789, %v5208
        %v5359 = vadd.f32 %v4794, %v5213
        %v5360 = vadd.f32 %v4797, %v5216
        %v5361 = vadd.f32 %v4802, %v5221
        %v5362 = vadd.f32 %v4805, %v5224
        %v5363 = vadd.f32 %v4810, %v5229
        %v5364 = vadd.f32 %v4813, %v5232
        %v5365 = vadd.f32 %v4818, %v5237
        %v5366 = vadd.f32 %v4821, %v5240
        %v5367 = vadd.f32 %v4826, %v5245
        %v5368 = vadd.f32 %v4829, %v5248
        %v5369 = vadd.f32 %v4834, %v5253
        %v5370 = vadd.f32 %v4837, %v5256
        %v5371 = vadd.f32 %v4842, %v5261
        %v5372 = vadd.f32 %v4845, %v5264
        %v5373 = vadd.f32 %v4850, %v5269
        %v5374 = vadd.f32 %v4853, %v5272
        %v5375 = vadd.f32 %v4858, %v5277
        %v5376 = vadd.f32 %v4861, %v5280
        %v5377 = vadd.f32 %v4866, %v5285
        %v5378 = vadd.f32 %v4869, %v5288
        %v5379 = vadd.f32 %v4874, %v5293
        %v5380 = vadd.f32 %v4877, %v5296
        %v5381 = vadd.f32 %v4882, %v5301
        %v5382 = vadd.f32 %v4885, %v5304
        %v5383 = vadd.f32 %v4890, %v5309
        %v5384 = vadd.f32 %v4893, %v5312
        %v5385 = vadd.f32 %v4898, %v5317
        %v5386 = vadd.f32 %v4901, %v5320
        %v5387 = vld [vmem:[%s199] sm:$0xff]
        %v5388 = vld [vmem:[%s199 + $0x8] sm:$0xff]
        %v5389 = vld [vmem:[%s199 + $0x10] sm:$0xff]
        %v5390 = vld [vmem:[%s199 + $0x18] sm:$0xff]
        %v5391 = vld [vmem:[%s199 + $0x20] sm:$0xff]
        %v5392 = vld [vmem:[%s199 + $0x28] sm:$0xff]
        %v5393 = vld [vmem:[%s199 + $0x30] sm:$0xff]
        %v5394 = vld [vmem:[%s199 + $0x38] sm:$0xff]
        %v5395 = vld [vmem:[%s199 + $0x40] sm:$0xff]
        %v5396 = vld [vmem:[%s199 + $0x48] sm:$0xff]
        %v5397 = vld [vmem:[%s199 + $0x50] sm:$0xff]
        %v5398 = vld [vmem:[%s199 + $0x58] sm:$0xff]
        %v5399 = vld [vmem:[%s199 + $0x60] sm:$0xff]
        %v5400 = vld [vmem:[%s199 + $0x68] sm:$0xff]
        %v5401 = vld [vmem:[%s199 + $0x70] sm:$0xff]
        %v5402 = vld [vmem:[%s199 + $0x78] sm:$0xff]
        %v5403 = vld [vmem:[%s199 + $0x80] sm:$0xff]
        %v5404 = vld [vmem:[%s199 + $0x88] sm:$0xff]
        %v5405 = vld [vmem:[%s199 + $0x90] sm:$0xff]
        %v5406 = vld [vmem:[%s199 + $0x98] sm:$0xff]
        %v5407 = vld [vmem:[%s199 + $0xa0] sm:$0xff]
        %v5408 = vld [vmem:[%s199 + $0xa8] sm:$0xff]
        %v5409 = vld [vmem:[%s199 + $0xb0] sm:$0xff]
        %v5410 = vld [vmem:[%s199 + $0xb8] sm:$0xff]
        %v5411 = vld [vmem:[%s199 + $0xc0] sm:$0xff]
        %v5412 = vld [vmem:[%s199 + $0xc8] sm:$0xff]
        %v5413 = vld [vmem:[%s199 + $0xd0] sm:$0xff]
        %v5414 = vld [vmem:[%s199 + $0xd8] sm:$0xff]
        %v5415 = vld [vmem:[%s199 + $0xe0] sm:$0xff]
        %v5416 = vld [vmem:[%s199 + $0xe8] sm:$0xff]
        %v5417 = vld [vmem:[%s199 + $0xf0] sm:$0xff]
        %v5418 = vld [vmem:[%s199 + $0xf8] sm:$0xff]
        %v5419 = vld [vmem:[%s199 + $0x100] sm:$0xff]
        %v5420 = vld [vmem:[%s199 + $0x108] sm:$0xff]
        %v5421 = vld [vmem:[%s199 + $0x110] sm:$0xff]
        %v5422 = vld [vmem:[%s199 + $0x118] sm:$0xff]
        %v5423 = vld [vmem:[%s199 + $0x120] sm:$0xff]
        %v5424 = vld [vmem:[%s199 + $0x128] sm:$0xff]
        %v5425 = vld [vmem:[%s199 + $0x130] sm:$0xff]
        %v5426 = vld [vmem:[%s199 + $0x138] sm:$0xff]
        %v5427 = vld [vmem:[%s199 + $0x140] sm:$0xff]
        %v5428 = vld [vmem:[%s199 + $0x148] sm:$0xff]
        %v5429 = vld [vmem:[%s199 + $0x150] sm:$0xff]
        %v5430 = vld [vmem:[%s199 + $0x158] sm:$0xff]
        %v5431 = vld [vmem:[%s199 + $0x160] sm:$0xff]
        %v5432 = vld [vmem:[%s199 + $0x168] sm:$0xff]
        %v5433 = vld [vmem:[%s199 + $0x170] sm:$0xff]
        %v5434 = vld [vmem:[%s199 + $0x178] sm:$0xff]
        %v5435 = vld [vmem:[%s199 + $0x180] sm:$0xff]
        %v5436 = vld [vmem:[%s199 + $0x188] sm:$0xff]
        %v5437 = vld [vmem:[%s199 + $0x190] sm:$0xff]
        %v5438 = vld [vmem:[%s199 + $0x198] sm:$0xff]
        %v5439 = vld [vmem:[%s199 + $0x1a0] sm:$0xff]
        %v5440 = vld [vmem:[%s199 + $0x1a8] sm:$0xff]
        %v5441 = vld [vmem:[%s199 + $0x1b0] sm:$0xff]
        %v5442 = vld [vmem:[%s199 + $0x1b8] sm:$0xff]
        %v5443 = vld [vmem:[%s199 + $0x1c0] sm:$0xff]
        %v5444 = vld [vmem:[%s199 + $0x1c8] sm:$0xff]
        %v5445 = vld [vmem:[%s199 + $0x1d0] sm:$0xff]
        %v5446 = vld [vmem:[%s199 + $0x1d8] sm:$0xff]
        %v5447 = vld [vmem:[%s199 + $0x1e0] sm:$0xff]
        %v5448 = vld [vmem:[%s199 + $0x1e8] sm:$0xff]
        %v5449 = vld [vmem:[%s199 + $0x1f0] sm:$0xff]
        %v5450 = vld [vmem:[%s199 + $0x1f8] sm:$0xff]
        %v5451 = vadd.f32 %v5387, %v5323
        %v5452 = vadd.f32 %v5388, %v5324
        %v5453 = vadd.f32 %v5389, %v5325
        %v5454 = vadd.f32 %v5390, %v5326
        %v5455 = vadd.f32 %v5391, %v5327
        %v5456 = vadd.f32 %v5392, %v5328
        %v5457 = vadd.f32 %v5393, %v5329
        %v5458 = vadd.f32 %v5394, %v5330
        %v5459 = vadd.f32 %v5395, %v5331
        %v5460 = vadd.f32 %v5396, %v5332
        %v5461 = vadd.f32 %v5397, %v5333
        %v5462 = vadd.f32 %v5398, %v5334
        %v5463 = vadd.f32 %v5399, %v5335
        %v5464 = vadd.f32 %v5400, %v5336
        %v5465 = vadd.f32 %v5401, %v5337
        %v5466 = vadd.f32 %v5402, %v5338
        %v5467 = vadd.f32 %v5403, %v5339
        %v5468 = vadd.f32 %v5404, %v5340
        %v5469 = vadd.f32 %v5405, %v5341
        %v5470 = vadd.f32 %v5406, %v5342
        %v5471 = vadd.f32 %v5407, %v5343
        %v5472 = vadd.f32 %v5408, %v5344
        %v5473 = vadd.f32 %v5409, %v5345
        %v5474 = vadd.f32 %v5410, %v5346
        %v5475 = vadd.f32 %v5411, %v5347
        %v5476 = vadd.f32 %v5412, %v5348
        %v5477 = vadd.f32 %v5413, %v5349
        %v5478 = vadd.f32 %v5414, %v5350
        %v5479 = vadd.f32 %v5415, %v5351
        %v5480 = vadd.f32 %v5416, %v5352
        %v5481 = vadd.f32 %v5417, %v5353
        %v5482 = vadd.f32 %v5418, %v5354
        %v5483 = vadd.f32 %v5419, %v5355
        %v5484 = vadd.f32 %v5420, %v5356
        %v5485 = vadd.f32 %v5421, %v5357
        %v5486 = vadd.f32 %v5422, %v5358
        %v5487 = vadd.f32 %v5423, %v5359
        %v5488 = vadd.f32 %v5424, %v5360
        %v5489 = vadd.f32 %v5425, %v5361
        %v5490 = vadd.f32 %v5426, %v5362
        %v5491 = vadd.f32 %v5427, %v5363
        %v5492 = vadd.f32 %v5428, %v5364
        %v5493 = vadd.f32 %v5429, %v5365
        %v5494 = vadd.f32 %v5430, %v5366
        %v5495 = vadd.f32 %v5431, %v5367
        %v5496 = vadd.f32 %v5432, %v5368
        %v5497 = vadd.f32 %v5433, %v5369
        %v5498 = vadd.f32 %v5434, %v5370
        %v5499 = vadd.f32 %v5435, %v5371
        %v5500 = vadd.f32 %v5436, %v5372
        %v5501 = vadd.f32 %v5437, %v5373
        %v5502 = vadd.f32 %v5438, %v5374
        %v5503 = vadd.f32 %v5439, %v5375
        %v5504 = vadd.f32 %v5440, %v5376
        %v5505 = vadd.f32 %v5441, %v5377
        %v5506 = vadd.f32 %v5442, %v5378
        %v5507 = vadd.f32 %v5443, %v5379
        %v5508 = vadd.f32 %v5444, %v5380
        %v5509 = vadd.f32 %v5445, %v5381
        %v5510 = vadd.f32 %v5446, %v5382
        %v5511 = vadd.f32 %v5447, %v5383
        %v5512 = vadd.f32 %v5448, %v5384
        %v5513 = vadd.f32 %v5449, %v5385
        %v5514 = vadd.f32 %v5450, %v5386
        %5515 = vst [vmem:[%s199] sm:$0xff] %v5451
        %5516 = vst [vmem:[%s199 + $0x8] sm:$0xff] %v5452
        %5517 = vst [vmem:[%s199 + $0x10] sm:$0xff] %v5453
        %5518 = vst [vmem:[%s199 + $0x18] sm:$0xff] %v5454
        %5519 = vst [vmem:[%s199 + $0x20] sm:$0xff] %v5455
        %5520 = vst [vmem:[%s199 + $0x28] sm:$0xff] %v5456
        %5521 = vst [vmem:[%s199 + $0x30] sm:$0xff] %v5457
        %5522 = vst [vmem:[%s199 + $0x38] sm:$0xff] %v5458
        %5523 = vst [vmem:[%s199 + $0x40] sm:$0xff] %v5459
        %5524 = vst [vmem:[%s199 + $0x48] sm:$0xff] %v5460
        %5525 = vst [vmem:[%s199 + $0x50] sm:$0xff] %v5461
        %5526 = vst [vmem:[%s199 + $0x58] sm:$0xff] %v5462
        %5527 = vst [vmem:[%s199 + $0x60] sm:$0xff] %v5463
        %5528 = vst [vmem:[%s199 + $0x68] sm:$0xff] %v5464
        %5529 = vst [vmem:[%s199 + $0x70] sm:$0xff] %v5465
        %5530 = vst [vmem:[%s199 + $0x78] sm:$0xff] %v5466
        %5531 = vst [vmem:[%s199 + $0x80] sm:$0xff] %v5467
        %5532 = vst [vmem:[%s199 + $0x88] sm:$0xff] %v5468
        %5533 = vst [vmem:[%s199 + $0x90] sm:$0xff] %v5469
        %5534 = vst [vmem:[%s199 + $0x98] sm:$0xff] %v5470
        %5535 = vst [vmem:[%s199 + $0xa0] sm:$0xff] %v5471
        %5536 = vst [vmem:[%s199 + $0xa8] sm:$0xff] %v5472
        %5537 = vst [vmem:[%s199 + $0xb0] sm:$0xff] %v5473
        %5538 = vst [vmem:[%s199 + $0xb8] sm:$0xff] %v5474
        %5539 = vst [vmem:[%s199 + $0xc0] sm:$0xff] %v5475
        %5540 = vst [vmem:[%s199 + $0xc8] sm:$0xff] %v5476
        %5541 = vst [vmem:[%s199 + $0xd0] sm:$0xff] %v5477
        %5542 = vst [vmem:[%s199 + $0xd8] sm:$0xff] %v5478
        %5543 = vst [vmem:[%s199 + $0xe0] sm:$0xff] %v5479
        %5544 = vst [vmem:[%s199 + $0xe8] sm:$0xff] %v5480
        %5545 = vst [vmem:[%s199 + $0xf0] sm:$0xff] %v5481
        %5546 = vst [vmem:[%s199 + $0xf8] sm:$0xff] %v5482
        %5547 = vst [vmem:[%s199 + $0x100] sm:$0xff] %v5483
        %5548 = vst [vmem:[%s199 + $0x108] sm:$0xff] %v5484
        %5549 = vst [vmem:[%s199 + $0x110] sm:$0xff] %v5485
        %5550 = vst [vmem:[%s199 + $0x118] sm:$0xff] %v5486
        %5551 = vst [vmem:[%s199 + $0x120] sm:$0xff] %v5487
        %5552 = vst [vmem:[%s199 + $0x128] sm:$0xff] %v5488
        %5553 = vst [vmem:[%s199 + $0x130] sm:$0xff] %v5489
        %5554 = vst [vmem:[%s199 + $0x138] sm:$0xff] %v5490
        %5555 = vst [vmem:[%s199 + $0x140] sm:$0xff] %v5491
        %5556 = vst [vmem:[%s199 + $0x148] sm:$0xff] %v5492
        %5557 = vst [vmem:[%s199 + $0x150] sm:$0xff] %v5493
        %5558 = vst [vmem:[%s199 + $0x158] sm:$0xff] %v5494
        %5559 = vst [vmem:[%s199 + $0x160] sm:$0xff] %v5495
        %5560 = vst [vmem:[%s199 + $0x168] sm:$0xff] %v5496
        %5561 = vst [vmem:[%s199 + $0x170] sm:$0xff] %v5497
        %5562 = vst [vmem:[%s199 + $0x178] sm:$0xff] %v5498
        %5563 = vst [vmem:[%s199 + $0x180] sm:$0xff] %v5499
        %5564 = vst [vmem:[%s199 + $0x188] sm:$0xff] %v5500
        %5565 = vst [vmem:[%s199 + $0x190] sm:$0xff] %v5501
        %5566 = vst [vmem:[%s199 + $0x198] sm:$0xff] %v5502
        %5567 = vst [vmem:[%s199 + $0x1a0] sm:$0xff] %v5503
        %5568 = vst [vmem:[%s199 + $0x1a8] sm:$0xff] %v5504
        %5569 = vst [vmem:[%s199 + $0x1b0] sm:$0xff] %v5505
        %5570 = vst [vmem:[%s199 + $0x1b8] sm:$0xff] %v5506
        %5571 = vst [vmem:[%s199 + $0x1c0] sm:$0xff] %v5507
        %5572 = vst [vmem:[%s199 + $0x1c8] sm:$0xff] %v5508
        %5573 = vst [vmem:[%s199 + $0x1d0] sm:$0xff] %v5509
        %5574 = vst [vmem:[%s199 + $0x1d8] sm:$0xff] %v5510
        %5575 = vst [vmem:[%s199 + $0x1e0] sm:$0xff] %v5511
        %5576 = vst [vmem:[%s199 + $0x1e8] sm:$0xff] %v5512
        %5577 = vst [vmem:[%s199 + $0x1f0] sm:$0xff] %v5513
        %5578 = vst [vmem:[%s199 + $0x1f8] sm:$0xff] %v5514
      $region41: #{triplane_forward.1} parent=35 // loop_footer
        %s592 = sadd.s32 1, %s588
      $region42: #{triplane_forward.1} parent=35 // loop_footer_branch
        %587 = sbr.rel target = $region38
      $region43: #{triplane_forward.1} parent=35 // loop_exit
        _
      %s5579 = smul.u32 64, %s15
      %p5580 = scmp.lt.s32.totalorder %s5579, 511
      %s5581 = scalar_select %p5580, %s5579, 511
      %s5582 = smul.addr %s5581, 8
      %s5583 = scalar_lea.vmem %s4, %s5582
      // Predicated region
      $region44: #{triplane_forward.1} parent=35 // pred_check
        %p5584 = pneg %p122
      $region45: #{triplane_forward.1} parent=35 // pred_check_branch
        %5586 = sbr.rel (%p5584) target = $region47
      $region46: #{triplane_forward.1} parent=35 // pred_region
        %s5587 = smul.u32 64, %s15
      $region47: #{triplane_forward.1} parent=35 // pred_fallthru
        _
    $region36: #{triplane_forward.1} parent=5 // pred_fallthru
      _
    %p5588 = scmp.le.s32.totalorder 2, %s10
    // Predicated region
    $region48: #{triplane_forward.1} parent=5 // pred_check
      %p5589 = pneg %p5588
    $region49: #{triplane_forward.1} parent=5 // pred_check_branch
      %5591 = sbr.rel (%p5589) target = $region51
    $region50: #{triplane_forward.1} parent=5 // pred_region
      %s5592 = ssub.s32 %s10, 2
      // Predicated region
      $region52: #{triplane_forward.1} parent=50 // pred_check
        %p5593 = pneg %p128
      $region53: #{triplane_forward.1} parent=50 // pred_check_branch
        %5595 = sbr.rel (%p5593) target = $region55
      $region54: #{triplane_forward.1} parent=50 // pred_region
        %s5596 = smul.u32 64, %s16
        %p5597 = scmp.lt.s32.totalorder %s5596, 511
        %s5598 = scalar_select %p5597, %s5596, 511
        %s5599 = smul.addr %s5598, 8
        %s5600 = scalar_lea.vmem %s4, %s5599
      $region55: #{triplane_forward.1} parent=50 // pred_fallthru
        _
    $region51: #{triplane_forward.1} parent=5 // pred_fallthru
      _
  $region6: #{triplane_forward.1} parent=0 // loop_footer
    %s14 = sadd.s32 1, %s10
  $region7: #{triplane_forward.1} parent=0 // loop_footer_branch
    %9 = sbr.rel target = $region3
  $region8: #{triplane_forward.1} parent=0 // loop_exit
    _

</llo_original>
